<compile_context>
chip_gen: v6e
topology: v6e:2x2x1
jax: 0.10.0
libtpu: 0.0.40
codegen_flags: <defaults>
</compile_context>

<pallas_src>
import functools

import jax
import jax.numpy as jnp
from jax.experimental import pallas as pl
from jax.experimental.pallas import tpu as pltpu

NEG_SLOPE = 0.01                      # nn.LeakyReLU default (MoE experts' MLP)
_SELU_ALPHA = 1.6732632423543772
_SELU_SCALE = 1.0507009873554805


def _selu(x):
    return _SELU_SCALE * jnp.where(x > 0, x, _SELU_ALPHA * (jnp.exp(x) - 1.0))


def _leaky_relu(x):
    return jnp.where(x > 0, x, NEG_SLOPE * x)


def _round_up(v, m):
    return ((v + m - 1) // m) * m


@functools.lru_cache(maxsize=1)
def _vmem_limit_bytes():
    # Generation-aware scoped-VMEM cap: leave headroom on v7x (64 MiB physical),
    # allow more on v5e/v6e (128 MiB).
    try:
        cap = pltpu.get_tpu_info().vmem_capacity_bytes
    except Exception:
        cap = 128 * 1024 * 1024
    return int(min(64 * 1024 * 1024, 0.6 * cap))


# ----------------------------- Pallas kernels ------------------------------
def _frontend_kernel(des_ref, tw_ref, nc_ref, wd_ref, wt_ref, wnc_ref, bf_ref,
                     wi_ref, bi_ref, o_ref):
    bf16 = jnp.bfloat16
    # Branch weights live in disjoint lane ranges of a 128-wide output, so the sum
    # of the three matmuls reproduces torch.cat((d, t, n, c), dim=1) exactly.
    acc = jnp.dot(des_ref[...].astype(bf16), wd_ref[...],
                  preferred_element_type=jnp.float32)
    acc += jnp.dot(tw_ref[...].astype(bf16), wt_ref[...],
                   preferred_element_type=jnp.float32)
    acc += jnp.dot(nc_ref[...].astype(bf16), wnc_ref[...],
                   preferred_element_type=jnp.float32)
    x = _selu(acc + bf_ref[...])                 # SELU(0)==0 -> zero padding stays exact
    y = jnp.dot(x.astype(bf16), wi_ref[...], preferred_element_type=jnp.float32)
    o_ref[...] = _selu(y + bi_ref[...]).astype(o_ref.dtype)


def _rgcn_layer_kernel(a_ref, dinv_ref, x_ref, w0_ref, w1_ref, wr_ref, b_ref, o_ref):
    bf16 = jnp.bfloat16
    tr = o_ref.shape[0]
    xb = x_ref[...]                                            # (n_pad, emb) bf16, resident
    # Unnormalized 0/1 adjacency tiles; 1/in_deg applied as an f32 post-scale (VPU).
    h0 = jnp.dot(a_ref[0], xb, preferred_element_type=jnp.float32) * dinv_ref[:, 0:1]
    h1 = jnp.dot(a_ref[1], xb, preferred_element_type=jnp.float32) * dinv_ref[:, 1:2]
    row0 = pl.multiple_of(pl.program_id(0) * tr, tr)
    x_tile = x_ref[pl.ds(row0, tr), :]                         # root-term rows of this tile
    acc = jnp.dot(h0.astype(bf16), w0_ref[...], preferred_element_type=jnp.float32)
    acc += jnp.dot(h1.astype(bf16), w1_ref[...], preferred_element_type=jnp.float32)
    acc += jnp.dot(x_tile, wr_ref[...], preferred_element_type=jnp.float32)
    o_ref[...] = (acc + b_ref[...]).astype(o_ref.dtype)


def _moe_kernel(x_ref, wg_ref, w1_ref, b1_ref, w2_ref, b2_ref, o_ref):
    bf16 = jnp.bfloat16
    xb = x_ref[...]                                            # (tr, emb) bf16
    gate = jnp.dot(xb, wg_ref[...], preferred_element_type=jnp.float32)  # lanes 0,1 real
    # Both experts packed: W1 = [w1_0 | w1_1], W2 = blockdiag(w2_0_pad, w2_1_pad).
    h = jnp.dot(xb, w1_ref[...], preferred_element_type=jnp.float32) + b1_ref[...]
    h = _leaky_relu(h)                                         # (tr, 2*emb)
    y = jnp.dot(h.astype(bf16), w2_ref[...], preferred_element_type=jnp.float32) + b2_ref[...]
    emb = o_ref.shape[1]
    sel = gate[:, 0:1] >= gate[:, 1:2]                         # top-1; ties -> expert 0
    o_ref[...] = jnp.where(sel, y[:, :emb], y[:, emb:])        # k=1 -> gate weight == 1.0


# ----------------------------- kernel wrappers ------------------------------
def frontend(des, tweet, nc, p, *, emb, tm):
    n_pad = des.shape[0]
    grid = (n_pad // tm,)

    def row(a):
        return pl.BlockSpec((tm, a.shape[1]), lambda i: (i, 0))

    def rep(a):   # whole-array operand; same block every grid step (DMA'd once)
        return pl.BlockSpec(a.shape, lambda i: (0, 0))

    args = (des, tweet, nc,
            p["wd"], p["wt"], p["wnc"], p["b_front"], p["wi"], p["bi"])
    in_specs = [row(des), row(tweet), row(nc)] + [rep(a) for a in args[3:]]
    return pl.pallas_call(
        _frontend_kernel,
        out_shape=jax.ShapeDtypeStruct((n_pad, emb), jnp.bfloat16),
        grid=grid,
        in_specs=in_specs,
        out_specs=pl.BlockSpec((tm, emb), lambda i: (i, 0)),
        compiler_params=pltpu.CompilerParams(
            dimension_semantics=("parallel",),
            vmem_limit_bytes=_vmem_limit_bytes()),
    )(*args)


def rgcn_layer(x, adj, dinv, w0, w1, wr, b, *, tr):
    n_pad, emb = x.shape
    grid = (n_pad // tr,)
    return pl.pallas_call(
        _rgcn_layer_kernel,
        out_shape=jax.ShapeDtypeStruct((n_pad, emb), jnp.bfloat16),
        grid=grid,
        in_specs=[
            pl.BlockSpec((2, tr, n_pad), lambda i: (0, i, 0)),   # A rows: streamed per tile
            pl.BlockSpec((tr, 2), lambda i: (i, 0)),             # 1/in_deg per relation
            pl.BlockSpec((n_pad, emb), lambda i: (0, 0)),        # x: resident, loaded once
            pl.BlockSpec((emb, emb), lambda i: (0, 0)),          # W0
            pl.BlockSpec((emb, emb), lambda i: (0, 0)),          # W1
            pl.BlockSpec((emb, emb), lambda i: (0, 0)),          # root
            pl.BlockSpec((1, emb), lambda i: (0, 0)),            # bias
        ],
        out_specs=pl.BlockSpec((tr, emb), lambda i: (i, 0)),
        compiler_params=pltpu.CompilerParams(
            dimension_semantics=("parallel",),
            vmem_limit_bytes=_vmem_limit_bytes()),
    )(adj, dinv, x, w0, w1, wr, b)


def moe_head(x, p, *, tr):
    n_pad, emb = x.shape
    grid = (n_pad // tr,)

    def rep(a):
        return pl.BlockSpec(a.shape, lambda i: (0, 0))

    return pl.pallas_call(
        _moe_kernel,
        out_shape=jax.ShapeDtypeStruct((n_pad, emb), jnp.float32),
        grid=grid,
        in_specs=[pl.BlockSpec((tr, emb), lambda i: (i, 0)),
                  rep(p["wg"]), rep(p["w1p"]), rep(p["b1p"]),
                  rep(p["w2p"]), rep(p["b2p"])],
        out_specs=pl.BlockSpec((tr, emb), lambda i: (i, 0)),     # lane-dense (tr, 128) store
        compiler_params=pltpu.CompilerParams(
            dimension_semantics=("parallel",),
            vmem_limit_bytes=_vmem_limit_bytes()),
    )(x, p["wg"], p["w1p"], p["b1p"], p["w2p"], p["b2p"])


# ------------------------------- JAX glue -----------------------------------
def build_graph_tensors(edge_index, edge_type, num_nodes):
    """Unnormalized 0/1 adjacency (2, N, N) built directly in bf16 (one scatter) plus
    f32 1/in_deg of shape (N, 2).  For a static graph, precompute this once and pass
    it to the forward via `graph_tensors=` to avoid rebuilding per inference."""
    src, dst = edge_index[0], edge_index[1]
    adj = jnp.zeros((2, num_nodes, num_nodes), jnp.bfloat16)
    adj = adj.at[edge_type, dst, src].add(jnp.ones(src.shape, jnp.bfloat16))
    deg = jnp.zeros((num_nodes, 2), jnp.float32).at[dst, edge_type].add(1.0)
    dinv = 1.0 / jnp.maximum(deg, 1.0)       # zero in-degree -> zero contribution
    return adj, dinv


def pack_params(params, emb):
    q = emb // 4
    bf16, f32 = jnp.bfloat16, jnp.float32

    def place(w, lane0):
        full = jnp.zeros((w.shape[0], emb), f32)
        return full.at[:, lane0:lane0 + w.shape[1]].set(w).astype(bf16)

    # num_prop + cat_prop share one operand; K padded only to a 16-row bf16 tile.
    nk, ck = params["w_num"].shape[0], params["w_cat"].shape[0]
    k_nc = _round_up(nk + ck, 16)
    wnc = jnp.zeros((k_nc, emb), f32)
    wnc = wnc.at[:nk, 2 * q:3 * q].set(params["w_num"])
    wnc = wnc.at[nk:nk + ck, 3 * q:4 * q].set(params["w_cat"])

    b_front = jnp.concatenate(
        [params["b_des"], params["b_tweet"], params["b_num"], params["b_cat"]])[None, :]

    out_size = params["moe_w2_0"].shape[1]
    assert out_size <= emb, "MoE output packing assumes output_size <= embedding dim"
    n_gate = params["moe_w_gate"].shape[1]
    wg = jnp.zeros((emb, emb), f32).at[:, :n_gate].set(params["moe_w_gate"])
    w1p = jnp.concatenate([params["moe_w1_0"], params["moe_w1_1"]], axis=1)
    b1p = jnp.concatenate([params["moe_b1_0"], params["moe_b1_1"]])[None, :]
    w2p = jnp.zeros((2 * emb, 2 * emb), f32)
    w2p = w2p.at[:emb, :out_size].set(params["moe_w2_0"])
    w2p = w2p.at[emb:, emb:emb + out_size].set(params["moe_w2_1"])
    b2p = jnp.zeros((1, 2 * emb), f32)
    b2p = b2p.at[0, :out_size].set(params["moe_b2_0"])
    b2p = b2p.at[0, emb:emb + out_size].set(params["moe_b2_1"])

    packed = {
        "wd": place(params["w_des"], 0 * q),
        "wt": place(params["w_tweet"], 1 * q),
        "wnc": wnc.astype(bf16),
        "b_front": b_front.astype(f32),
        "wi": params["w_in"].astype(bf16),
        "bi": params["b_in"][None, :].astype(f32),
        "wg": wg.astype(bf16),
        "w1p": w1p.astype(bf16), "b1p": b1p.astype(f32),
        "w2p": w2p.astype(bf16), "b2p": b2p.astype(f32),
    }
    for tag, pre in (("r1", "rgcn1"), ("r2", "rgcn2")):
        packed[f"{tag}_w0"] = params[f"{pre}_w0"].astype(bf16)
        packed[f"{tag}_w1"] = params[f"{pre}_w1"].astype(bf16)
        packed[f"{tag}_root"] = params[f"{pre}_root"].astype(bf16)
        packed[f"{tag}_b"] = params[f"{pre}_bias"][None, :].astype(f32)
    return packed


def botrgcn_fmoe_double_forward(params, des, tweet, num_prop, cat_prop,
                                edge_index, edge_type, *, row_tile=256,
                                graph_tensors=None):
    n = des.shape[0]
    emb = params["w_in"].shape[0]
    out_size = params["moe_w2_0"].shape[1]

    tr = row_tile if n >= row_tile else _round_up(n, 8)
    n_pad = _round_up(n, tr)                       # pad rows instead of whole-array tiles
    # Larger frontend tile when the padded node count allows (mem-bound; sweep 256-1024).
    tm = 512 if (n_pad >= 512 and n_pad % 512 == 0) else tr

    packed = pack_params(params, emb)

    def pad_rows(a):
        return a if a.shape[0] == n_pad else jnp.pad(a, ((0, n_pad - a.shape[0]), (0, 0)))

    nc = jnp.concatenate([num_prop, cat_prop], axis=1)
    nc = jnp.pad(nc, ((0, 0), (0, packed["wnc"].shape[0] - nc.shape[1])))

    x = frontend(pad_rows(des), pad_rows(tweet), pad_rows(nc), packed,
                 emb=emb, tm=tm)                                    # (n_pad, emb) bf16

    if graph_tensors is None:
        adj, dinv = build_graph_tensors(edge_index, edge_type, n_pad)
    else:
        adj, dinv = graph_tensors

    # rgcn, rgcn, rgcn2, rgcn2  (F.dropout is identity in eval mode)
    for tag in ("r1", "r1", "r2", "r2"):
        x = rgcn_layer(x, adj, dinv, packed[f"{tag}_w0"], packed[f"{tag}_w1"],
                       packed[f"{tag}_root"], packed[f"{tag}_b"], tr=tr)

    y = moe_head(x, packed, tr=tr)                                  # (n_pad, 128) f32
    return y[:n, :out_size]


def init_params(key, des_size, tweet_size, num_prop_size, cat_prop_size,
                emb, out_size, n_experts=2):
    assert n_experts == 2, "kernel is specialized for expert_size=2, k=1"
    q = emb // 4
    ks = iter(jax.random.split(key, 32))

    def w(shape, fan_in):
        return jax.random.normal(next(ks), shape, jnp.float32) / jnp.sqrt(float(fan_in))

    p = {
        "w_des": w((des_size, q), des_size), "b_des": w((q,), des_size),
        "w_tweet": w((tweet_size, q), tweet_size), "b_tweet": w((q,), tweet_size),
        "w_num": w((num_prop_size, q), num_prop_size), "b_num": w((q,), num_prop_size),
        "w_cat": w((cat_prop_size, q), cat_prop_size), "b_cat": w((q,), cat_prop_size),
        "w_in": w((emb, emb), emb), "b_in": w((emb,), emb),
        "rgcn1_w0": w((emb, emb), emb), "rgcn1_w1": w((emb, emb), emb),
        "rgcn1_root": w((emb, emb), emb), "rgcn1_bias": w((emb,), emb),
        "rgcn2_w0": w((emb, emb), emb), "rgcn2_w1": w((emb, emb), emb),
        "rgcn2_root": w((emb, emb), emb), "rgcn2_bias": w((emb,), emb),
        "moe_w_gate": w((emb, n_experts), emb),
    }
    for e in range(n_experts):
        p[f"moe_w1_{e}"] = w((emb, emb), emb)
        p[f"moe_b1_{e}"] = w((emb,), emb)
        p[f"moe_w2_{e}"] = w((emb, out_size), emb)
        p[f"moe_b2_{e}"] = w((out_size,), emb)
    return p


if __name__ == "__main__":
    # Small shapes consistent with the module (des/tweet feature dims shrunk,
    # embedding_dimension kept at 128, num_prop/cat_prop at their defaults).
    N, N_EDGES = 256, 1024
    DES_SIZE, TWEET_SIZE = 256, 256
    NUM_PROP_SIZE, CAT_PROP_SIZE = 5, 3
    EMB, OUT_SIZE, N_EXPERTS = 128, 2, 2

    key = jax.random.PRNGKey(0)
    kp, kd, kt, kn, kc, ks, kr, ke = jax.random.split(key, 8)
    params = init_params(kp, DES_SIZE, TWEET_SIZE, NUM_PROP_SIZE, CAT_PROP_SIZE,
                         EMB, OUT_SIZE, N_EXPERTS)

    des = jax.random.normal(kd, (N, DES_SIZE), jnp.float32)
    tweet = jax.random.normal(kt, (N, TWEET_SIZE), jnp.float32)
    num_prop = jax.random.normal(kn, (N, NUM_PROP_SIZE), jnp.float32)
    cat_prop = jax.random.normal(kc, (N, CAT_PROP_SIZE), jnp.float32)
    edge_index = jnp.stack(
        [jax.random.randint(ks, (N_EDGES,), 0, N, jnp.int32),
         jax.random.randint(kr, (N_EDGES,), 0, N, jnp.int32)], axis=0)
    edge_type = jax.random.randint(ke, (N_EDGES,), 0, 2, jnp.int32)

    out = jax.jit(botrgcn_fmoe_double_forward)(
        params, des, tweet, num_prop, cat_prop, edge_index, edge_type)
    out = jax.block_until_ready(out)
    assert out.shape == (N, OUT_SIZE) and out.dtype == jnp.float32
    assert bool(jnp.all(jnp.isfinite(out)))
    print("KERNEL_OK")
</pallas_src>

<mosaic_0001>
module attributes {stable_mosaic.version = 11 : i64} {
  func.func private @main(%arg0: i32) attributes {dimension_semantics = [#tpu.dimension_semantics<core_parallel>], iteration_bounds = array<i64: 2>, tpu.core_type = #tpu.core_type<sc_scalar_subcore>, window_params = []} {
    return
  }
}

module attributes {stable_mosaic.version = 11 : i64} {
  func.func private @main(%arg0: i32) attributes {dimension_semantics = [#tpu.dimension_semantics<core_parallel>], iteration_bounds = array<i64: 2>, tpu.core_type = #tpu.core_type<sc_scalar_subcore>, window_params = []} {
    return
  }
}

module attributes {stable_mosaic.version = 11 : i64} {
  func.func @_frontend_kernel(%arg0: i32, %arg1: memref<256x256xf32, #tpu.memory_space<vmem>>, %arg2: memref<256x256xf32, #tpu.memory_space<vmem>>, %arg3: memref<256x16xf32, #tpu.memory_space<vmem>>, %arg4: memref<256x128xbf16, #tpu.memory_space<vmem>>, %arg5: memref<256x128xbf16, #tpu.memory_space<vmem>>, %arg6: memref<16x128xbf16, #tpu.memory_space<vmem>>, %arg7: memref<1x128xf32, #tpu.memory_space<vmem>>, %arg8: memref<128x128xbf16, #tpu.memory_space<vmem>>, %arg9: memref<1x128xf32, #tpu.memory_space<vmem>>, %arg10: memref<256x128xbf16, #tpu.memory_space<vmem>>) attributes {dimension_semantics = [#tpu.dimension_semantics<parallel>], iteration_bounds = array<i64: 1>, scalar_prefetch = 0 : i64, scratch_operands = 0 : i64, tpu.core_type = #tpu.core_type<tc>, window_params = [{transform_indices = @transform_0, window_bounds = array<i64: 256, 256>}, {transform_indices = @transform_1, window_bounds = array<i64: 256, 256>}, {transform_indices = @transform_2, window_bounds = array<i64: 256, 16>}, {pipeline_mode = #tpu.pipeline_mode<synchronous>, transform_indices = @transform_3, window_bounds = array<i64: 256, 128>}, {pipeline_mode = #tpu.pipeline_mode<synchronous>, transform_indices = @transform_4, window_bounds = array<i64: 256, 128>}, {pipeline_mode = #tpu.pipeline_mode<synchronous>, transform_indices = @transform_5, window_bounds = array<i64: 16, 128>}, {pipeline_mode = #tpu.pipeline_mode<synchronous>, transform_indices = @transform_6, window_bounds = array<i64: 1, 128>}, {pipeline_mode = #tpu.pipeline_mode<synchronous>, transform_indices = @transform_7, window_bounds = array<i64: 128, 128>}, {pipeline_mode = #tpu.pipeline_mode<synchronous>, transform_indices = @transform_8, window_bounds = array<i64: 1, 128>}, {transform_indices = @transform_9, window_bounds = array<i64: 256, 128>}]} {
    %c0 = arith.constant 0 : index
    %c0_0 = arith.constant 0 : index
    %0 = vector.load %arg1[%c0, %c0_0] : memref<256x256xf32, #tpu.memory_space<vmem>>, vector<256x256xf32>
    %1 = arith.truncf %0 : vector<256x256xf32> to vector<256x256xbf16>
    %c0_1 = arith.constant 0 : index
    %c0_2 = arith.constant 0 : index
    %2 = vector.load %arg4[%c0_1, %c0_2] : memref<256x128xbf16, #tpu.memory_space<vmem>>, vector<256x128xbf16>
    %cst = arith.constant dense<0.000000e+00> : vector<256x128xf32>
    %3 = tpu.matmul %1, %2, %cst {dimension_numbers = #tpu.dot_dimension_numbers<[1], [0], [0], [1], [0, 0, 1, 1], [], []>} : vector<256x256xbf16>, vector<256x128xbf16>, vector<256x128xf32> -> vector<256x128xf32>
    %c0_3 = arith.constant 0 : index
    %c0_4 = arith.constant 0 : index
    %4 = vector.load %arg2[%c0_3, %c0_4] : memref<256x256xf32, #tpu.memory_space<vmem>>, vector<256x256xf32>
    %5 = arith.truncf %4 : vector<256x256xf32> to vector<256x256xbf16>
    %c0_5 = arith.constant 0 : index
    %c0_6 = arith.constant 0 : index
    %6 = vector.load %arg5[%c0_5, %c0_6] : memref<256x128xbf16, #tpu.memory_space<vmem>>, vector<256x128xbf16>
    %cst_7 = arith.constant dense<0.000000e+00> : vector<256x128xf32>
    %7 = tpu.matmul %5, %6, %cst_7 {dimension_numbers = #tpu.dot_dimension_numbers<[1], [0], [0], [1], [0, 0, 1, 1], [], []>} : vector<256x256xbf16>, vector<256x128xbf16>, vector<256x128xf32> -> vector<256x128xf32>
    %8 = arith.addf %3, %7 : vector<256x128xf32>
    %c0_8 = arith.constant 0 : index
    %c0_9 = arith.constant 0 : index
    %9 = vector.load %arg3[%c0_8, %c0_9] : memref<256x16xf32, #tpu.memory_space<vmem>>, vector<256x16xf32>
    %10 = arith.truncf %9 : vector<256x16xf32> to vector<256x16xbf16>
    %c0_10 = arith.constant 0 : index
    %c0_11 = arith.constant 0 : index
    %11 = vector.load %arg6[%c0_10, %c0_11] : memref<16x128xbf16, #tpu.memory_space<vmem>>, vector<16x128xbf16>
    %cst_12 = arith.constant dense<0.000000e+00> : vector<256x128xf32>
    %12 = tpu.matmul %10, %11, %cst_12 {dimension_numbers = #tpu.dot_dimension_numbers<[1], [0], [0], [1], [0, 0, 1, 1], [], []>} : vector<256x16xbf16>, vector<16x128xbf16>, vector<256x128xf32> -> vector<256x128xf32>
    %13 = arith.addf %8, %12 : vector<256x128xf32>
    %c0_13 = arith.constant 0 : index
    %c0_14 = arith.constant 0 : index
    %14 = vector.load %arg7[%c0_13, %c0_14] : memref<1x128xf32, #tpu.memory_space<vmem>>, vector<1x128xf32>
    %15 = vector.broadcast %14 : vector<1x128xf32> to vector<256x128xf32>
    %16 = arith.addf %13, %15 : vector<256x128xf32>
    %cst_15 = arith.constant 0.000000e+00 : f32
    %17 = vector.broadcast %cst_15 : f32 to vector<256x128xf32>
    %18 = arith.cmpf ogt, %16, %17 : vector<256x128xf32>
    %19 = math.exp %16 : vector<256x128xf32>
    %cst_16 = arith.constant 1.000000e+00 : f32
    %20 = vector.broadcast %cst_16 : f32 to vector<256x128xf32>
    %21 = arith.subf %19, %20 : vector<256x128xf32>
    %cst_17 = arith.constant 1.67326319 : f32
    %22 = vector.broadcast %cst_17 : f32 to vector<256x128xf32>
    %23 = arith.mulf %22, %21 : vector<256x128xf32>
    %24 = arith.select %18, %16, %23 : vector<256x128xi1>, vector<256x128xf32>
    %cst_18 = arith.constant 1.05070102 : f32
    %25 = vector.broadcast %cst_18 : f32 to vector<256x128xf32>
    %26 = arith.mulf %25, %24 : vector<256x128xf32>
    %27 = arith.truncf %26 : vector<256x128xf32> to vector<256x128xbf16>
    %c0_19 = arith.constant 0 : index
    %c0_20 = arith.constant 0 : index
    %28 = vector.load %arg8[%c0_19, %c0_20] : memref<128x128xbf16, #tpu.memory_space<vmem>>, vector<128x128xbf16>
    %cst_21 = arith.constant dense<0.000000e+00> : vector<256x128xf32>
    %29 = tpu.matmul %27, %28, %cst_21 {dimension_numbers = #tpu.dot_dimension_numbers<[1], [0], [0], [1], [0, 0, 1, 1], [], []>} : vector<256x128xbf16>, vector<128x128xbf16>, vector<256x128xf32> -> vector<256x128xf32>
    %c0_22 = arith.constant 0 : index
    %c0_23 = arith.constant 0 : index
    %30 = vector.load %arg9[%c0_22, %c0_23] : memref<1x128xf32, #tpu.memory_space<vmem>>, vector<1x128xf32>
    %31 = vector.broadcast %30 : vector<1x128xf32> to vector<256x128xf32>
    %32 = arith.addf %29, %31 : vector<256x128xf32>
    %cst_24 = arith.constant 0.000000e+00 : f32
    %33 = vector.broadcast %cst_24 : f32 to vector<256x128xf32>
    %34 = arith.cmpf ogt, %32, %33 : vector<256x128xf32>
    %35 = math.exp %32 : vector<256x128xf32>
    %cst_25 = arith.constant 1.000000e+00 : f32
    %36 = vector.broadcast %cst_25 : f32 to vector<256x128xf32>
    %37 = arith.subf %35, %36 : vector<256x128xf32>
    %cst_26 = arith.constant 1.67326319 : f32
    %38 = vector.broadcast %cst_26 : f32 to vector<256x128xf32>
    %39 = arith.mulf %38, %37 : vector<256x128xf32>
    %40 = arith.select %34, %32, %39 : vector<256x128xi1>, vector<256x128xf32>
    %cst_27 = arith.constant 1.05070102 : f32
    %41 = vector.broadcast %cst_27 : f32 to vector<256x128xf32>
    %42 = arith.mulf %41, %40 : vector<256x128xf32>
    %43 = arith.truncf %42 : vector<256x128xf32> to vector<256x128xbf16>
    %c0_28 = arith.constant 0 : index
    %c0_29 = arith.constant 0 : index
    %44 = vector.load %arg10[%c0_28, %c0_29] : memref<256x128xbf16, #tpu.memory_space<vmem>>, vector<256x128xbf16>
    tpu.vector_store %arg10[%c0_28, %c0_29], %43 {strides = array<i32>} : memref<256x128xbf16, #tpu.memory_space<vmem>>, vector<256x128xbf16>,
    return
  }
  func.func @transform_0(%arg0: i32) -> (i32, i32) {
    %c0_i32 = arith.constant 0 : i32
    %c0_i32_0 = arith.constant 0 : i32
    return %arg0, %c0_i32 : i32, i32
  }
  func.func @transform_1(%arg0: i32) -> (i32, i32) {
    %c0_i32 = arith.constant 0 : i32
    %c0_i32_0 = arith.constant 0 : i32
    return %arg0, %c0_i32 : i32, i32
  }
  func.func @transform_2(%arg0: i32) -> (i32, i32) {
    %c0_i32 = arith.constant 0 : i32
    %c0_i32_0 = arith.constant 0 : i32
    return %arg0, %c0_i32 : i32, i32
  }
  func.func @transform_3(%arg0: i32) -> (i32, i32) {
    %c0_i32 = arith.constant 0 : i32
    %c0_i32_0 = arith.constant 0 : i32
    %c0_i32_1 = arith.constant 0 : i32
    return %c0_i32, %c0_i32_0 : i32, i32
  }
  func.func @transform_4(%arg0: i32) -> (i32, i32) {
    %c0_i32 = arith.constant 0 : i32
    %c0_i32_0 = arith.constant 0 : i32
    %c0_i32_1 = arith.constant 0 : i32
    return %c0_i32, %c0_i32_0 : i32, i32
  }
  func.func @transform_5(%arg0: i32) -> (i32, i32) {
    %c0_i32 = arith.constant 0 : i32
    %c0_i32_0 = arith.constant 0 : i32
    %c0_i32_1 = arith.constant 0 : i32
    return %c0_i32, %c0_i32_0 : i32, i32
  }
  func.func @transform_6(%arg0: i32) -> (i32, i32) {
    %c0_i32 = arith.constant 0 : i32
    %c0_i32_0 = arith.constant 0 : i32
    %c0_i32_1 = arith.constant 0 : i32
    return %c0_i32, %c0_i32_0 : i32, i32
  }
  func.func @transform_7(%arg0: i32) -> (i32, i32) {
    %c0_i32 = arith.constant 0 : i32
    %c0_i32_0 = arith.constant 0 : i32
    %c0_i32_1 = arith.constant 0 : i32
    return %c0_i32, %c0_i32_0 : i32, i32
  }
  func.func @transform_8(%arg0: i32) -> (i32, i32) {
    %c0_i32 = arith.constant 0 : i32
    %c0_i32_0 = arith.constant 0 : i32
    %c0_i32_1 = arith.constant 0 : i32
    return %c0_i32, %c0_i32_0 : i32, i32
  }
  func.func @transform_9(%arg0: i32) -> (i32, i32) {
    %c0_i32 = arith.constant 0 : i32
    %c0_i32_0 = arith.constant 0 : i32
    return %arg0, %c0_i32 : i32, i32
  }
}

module attributes {stable_mosaic.version = 11 : i64} {
  func.func @_rgcn_layer_kernel(%arg0: i32, %arg1: memref<2x256x256xbf16, #tpu.memory_space<vmem>>, %arg2: memref<256x2xf32, #tpu.memory_space<vmem>>, %arg3: memref<256x128xbf16, #tpu.memory_space<vmem>>, %arg4: memref<128x128xbf16, #tpu.memory_space<vmem>>, %arg5: memref<128x128xbf16, #tpu.memory_space<vmem>>, %arg6: memref<128x128xbf16, #tpu.memory_space<vmem>>, %arg7: memref<1x128xf32, #tpu.memory_space<vmem>>, %arg8: memref<256x128xbf16, #tpu.memory_space<vmem>>) attributes {dimension_semantics = [#tpu.dimension_semantics<parallel>], iteration_bounds = array<i64: 1>, scalar_prefetch = 0 : i64, scratch_operands = 0 : i64, tpu.core_type = #tpu.core_type<tc>, window_params = [{transform_indices = @transform_0, window_bounds = array<i64: 2, 256, 256>}, {transform_indices = @transform_1, window_bounds = array<i64: 256, 2>}, {pipeline_mode = #tpu.pipeline_mode<synchronous>, transform_indices = @transform_2, window_bounds = array<i64: 256, 128>}, {pipeline_mode = #tpu.pipeline_mode<synchronous>, transform_indices = @transform_3, window_bounds = array<i64: 128, 128>}, {pipeline_mode = #tpu.pipeline_mode<synchronous>, transform_indices = @transform_4, window_bounds = array<i64: 128, 128>}, {pipeline_mode = #tpu.pipeline_mode<synchronous>, transform_indices = @transform_5, window_bounds = array<i64: 128, 128>}, {pipeline_mode = #tpu.pipeline_mode<synchronous>, transform_indices = @transform_6, window_bounds = array<i64: 1, 128>}, {transform_indices = @transform_7, window_bounds = array<i64: 256, 128>}]} {
    %c0 = arith.constant 0 : index
    %c0_0 = arith.constant 0 : index
    %0 = vector.load %arg3[%c0, %c0_0] : memref<256x128xbf16, #tpu.memory_space<vmem>>, vector<256x128xbf16>
    %c0_1 = arith.constant 0 : index
    %c0_2 = arith.constant 0 : index
    %c0_3 = arith.constant 0 : index
    %1 = vector.load %arg1[%c0_1, %c0_2, %c0_3] : memref<2x256x256xbf16, #tpu.memory_space<vmem>>, vector<1x256x256xbf16>
    %2 = vector.shape_cast %1 : vector<1x256x256xbf16> to vector<256x256xbf16>
    %cst = arith.constant dense<0.000000e+00> : vector<256x128xf32>
    %3 = tpu.matmul %2, %0, %cst {dimension_numbers = #tpu.dot_dimension_numbers<[1], [0], [0], [1], [0, 0, 1, 1], [], []>} : vector<256x256xbf16>, vector<256x128xbf16>, vector<256x128xf32> -> vector<256x128xf32>
    %c0_4 = arith.constant 0 : index
    %c0_5 = arith.constant 0 : index
    %4 = vector.load %arg2[%c0_4, %c0_5] : memref<256x2xf32, #tpu.memory_space<vmem>>, vector<256x1xf32>
    %5 = vector.broadcast %4 : vector<256x1xf32> to vector<256x128xf32>
    %6 = arith.mulf %3, %5 : vector<256x128xf32>
    %c1 = arith.constant 1 : index
    %c0_6 = arith.constant 0 : index
    %c0_7 = arith.constant 0 : index
    %7 = vector.load %arg1[%c1, %c0_6, %c0_7] : memref<2x256x256xbf16, #tpu.memory_space<vmem>>, vector<1x256x256xbf16>
    %8 = vector.shape_cast %7 : vector<1x256x256xbf16> to vector<256x256xbf16>
    %cst_8 = arith.constant dense<0.000000e+00> : vector<256x128xf32>
    %9 = tpu.matmul %8, %0, %cst_8 {dimension_numbers = #tpu.dot_dimension_numbers<[1], [0], [0], [1], [0, 0, 1, 1], [], []>} : vector<256x256xbf16>, vector<256x128xbf16>, vector<256x128xf32> -> vector<256x128xf32>
    %c0_9 = arith.constant 0 : index
    %c1_10 = arith.constant 1 : index
    %10 = vector.load %arg2[%c0_9, %c1_10] : memref<256x2xf32, #tpu.memory_space<vmem>>, vector<256x1xf32>
    %11 = vector.broadcast %10 : vector<256x1xf32> to vector<256x128xf32>
    %12 = arith.mulf %9, %11 : vector<256x128xf32>
    %c256_i32 = arith.constant 256 : i32
    %13 = arith.muli %arg0, %c256_i32 : i32
    %14 = tpu.assume_multiple %13, 256 : i32
    %15 = arith.index_cast %14 : i32 to index
    %c0_11 = arith.constant 0 : index
    %16 = vector.load %arg3[%15, %c0_11] : memref<256x128xbf16, #tpu.memory_space<vmem>>, vector<256x128xbf16>
    %17 = arith.truncf %6 : vector<256x128xf32> to vector<256x128xbf16>
    %c0_12 = arith.constant 0 : index
    %c0_13 = arith.constant 0 : index
    %18 = vector.load %arg4[%c0_12, %c0_13] : memref<128x128xbf16, #tpu.memory_space<vmem>>, vector<128x128xbf16>
    %cst_14 = arith.constant dense<0.000000e+00> : vector<256x128xf32>
    %19 = tpu.matmul %17, %18, %cst_14 {dimension_numbers = #tpu.dot_dimension_numbers<[1], [0], [0], [1], [0, 0, 1, 1], [], []>} : vector<256x128xbf16>, vector<128x128xbf16>, vector<256x128xf32> -> vector<256x128xf32>
    %20 = arith.truncf %12 : vector<256x128xf32> to vector<256x128xbf16>
    %c0_15 = arith.constant 0 : index
    %c0_16 = arith.constant 0 : index
    %21 = vector.load %arg5[%c0_15, %c0_16] : memref<128x128xbf16, #tpu.memory_space<vmem>>, vector<128x128xbf16>
    %cst_17 = arith.constant dense<0.000000e+00> : vector<256x128xf32>
    %22 = tpu.matmul %20, %21, %cst_17 {dimension_numbers = #tpu.dot_dimension_numbers<[1], [0], [0], [1], [0, 0, 1, 1], [], []>} : vector<256x128xbf16>, vector<128x128xbf16>, vector<256x128xf32> -> vector<256x128xf32>
    %23 = arith.addf %19, %22 : vector<256x128xf32>
    %c0_18 = arith.constant 0 : index
    %c0_19 = arith.constant 0 : index
    %24 = vector.load %arg6[%c0_18, %c0_19] : memref<128x128xbf16, #tpu.memory_space<vmem>>, vector<128x128xbf16>
    %cst_20 = arith.constant dense<0.000000e+00> : vector<256x128xf32>
    %25 = tpu.matmul %16, %24, %cst_20 {dimension_numbers = #tpu.dot_dimension_numbers<[1], [0], [0], [1], [0, 0, 1, 1], [], []>} : vector<256x128xbf16>, vector<128x128xbf16>, vector<256x128xf32> -> vector<256x128xf32>
    %26 = arith.addf %23, %25 : vector<256x128xf32>
    %c0_21 = arith.constant 0 : index
    %c0_22 = arith.constant 0 : index
    %27 = vector.load %arg7[%c0_21, %c0_22] : memref<1x128xf32, #tpu.memory_space<vmem>>, vector<1x128xf32>
    %28 = vector.broadcast %27 : vector<1x128xf32> to vector<256x128xf32>
    %29 = arith.addf %26, %28 : vector<256x128xf32>
    %30 = arith.truncf %29 : vector<256x128xf32> to vector<256x128xbf16>
    %c0_23 = arith.constant 0 : index
    %c0_24 = arith.constant 0 : index
    %31 = vector.load %arg8[%c0_23, %c0_24] : memref<256x128xbf16, #tpu.memory_space<vmem>>, vector<256x128xbf16>
    tpu.vector_store %arg8[%c0_23, %c0_24], %30 {strides = array<i32>} : memref<256x128xbf16, #tpu.memory_space<vmem>>, vector<256x128xbf16>,
    return
  }
  func.func @transform_0(%arg0: i32) -> (i32, i32, i32) {
    %c0_i32 = arith.constant 0 : i32
    %c0_i32_0 = arith.constant 0 : i32
    %c0_i32_1 = arith.constant 0 : i32
    return %c0_i32, %arg0, %c0_i32_0 : i32, i32, i32
  }
  func.func @transform_1(%arg0: i32) -> (i32, i32) {
    %c0_i32 = arith.constant 0 : i32
    %c0_i32_0 = arith.constant 0 : i32
    return %arg0, %c0_i32 : i32, i32
  }
  func.func @transform_2(%arg0: i32) -> (i32, i32) {
    %c0_i32 = arith.constant 0 : i32
    %c0_i32_0 = arith.constant 0 : i32
    %c0_i32_1 = arith.constant 0 : i32
    return %c0_i32, %c0_i32_0 : i32, i32
  }
  func.func @transform_3(%arg0: i32) -> (i32, i32) {
    %c0_i32 = arith.constant 0 : i32
    %c0_i32_0 = arith.constant 0 : i32
    %c0_i32_1 = arith.constant 0 : i32
    return %c0_i32, %c0_i32_0 : i32, i32
  }
  func.func @transform_4(%arg0: i32) -> (i32, i32) {
    %c0_i32 = arith.constant 0 : i32
    %c0_i32_0 = arith.constant 0 : i32
    %c0_i32_1 = arith.constant 0 : i32
    return %c0_i32, %c0_i32_0 : i32, i32
  }
  func.func @transform_5(%arg0: i32) -> (i32, i32) {
    %c0_i32 = arith.constant 0 : i32
    %c0_i32_0 = arith.constant 0 : i32
    %c0_i32_1 = arith.constant 0 : i32
    return %c0_i32, %c0_i32_0 : i32, i32
  }
  func.func @transform_6(%arg0: i32) -> (i32, i32) {
    %c0_i32 = arith.constant 0 : i32
    %c0_i32_0 = arith.constant 0 : i32
    %c0_i32_1 = arith.constant 0 : i32
    return %c0_i32, %c0_i32_0 : i32, i32
  }
  func.func @transform_7(%arg0: i32) -> (i32, i32) {
    %c0_i32 = arith.constant 0 : i32
    %c0_i32_0 = arith.constant 0 : i32
    return %arg0, %c0_i32 : i32, i32
  }
}

module attributes {stable_mosaic.version = 11 : i64} {
  func.func @_moe_kernel(%arg0: i32, %arg1: memref<256x128xbf16, #tpu.memory_space<vmem>>, %arg2: memref<128x128xbf16, #tpu.memory_space<vmem>>, %arg3: memref<128x256xbf16, #tpu.memory_space<vmem>>, %arg4: memref<1x256xf32, #tpu.memory_space<vmem>>, %arg5: memref<256x256xbf16, #tpu.memory_space<vmem>>, %arg6: memref<1x256xf32, #tpu.memory_space<vmem>>, %arg7: memref<256x128xf32, #tpu.memory_space<vmem>>) attributes {dimension_semantics = [#tpu.dimension_semantics<parallel>], iteration_bounds = array<i64: 1>, scalar_prefetch = 0 : i64, scratch_operands = 0 : i64, tpu.core_type = #tpu.core_type<tc>, window_params = [{transform_indices = @transform_0, window_bounds = array<i64: 256, 128>}, {pipeline_mode = #tpu.pipeline_mode<synchronous>, transform_indices = @transform_1, window_bounds = array<i64: 128, 128>}, {pipeline_mode = #tpu.pipeline_mode<synchronous>, transform_indices = @transform_2, window_bounds = array<i64: 128, 256>}, {pipeline_mode = #tpu.pipeline_mode<synchronous>, transform_indices = @transform_3, window_bounds = array<i64: 1, 256>}, {pipeline_mode = #tpu.pipeline_mode<synchronous>, transform_indices = @transform_4, window_bounds = array<i64: 256, 256>}, {pipeline_mode = #tpu.pipeline_mode<synchronous>, transform_indices = @transform_5, window_bounds = array<i64: 1, 256>}, {transform_indices = @transform_6, window_bounds = array<i64: 256, 128>}]} {
    %c0 = arith.constant 0 : index
    %c0_0 = arith.constant 0 : index
    %0 = vector.load %arg1[%c0, %c0_0] : memref<256x128xbf16, #tpu.memory_space<vmem>>, vector<256x128xbf16>
    %c0_1 = arith.constant 0 : index
    %c0_2 = arith.constant 0 : index
    %1 = vector.load %arg2[%c0_1, %c0_2] : memref<128x128xbf16, #tpu.memory_space<vmem>>, vector<128x128xbf16>
    %cst = arith.constant dense<0.000000e+00> : vector<256x128xf32>
    %2 = tpu.matmul %0, %1, %cst {dimension_numbers = #tpu.dot_dimension_numbers<[1], [0], [0], [1], [0, 0, 1, 1], [], []>} : vector<256x128xbf16>, vector<128x128xbf16>, vector<256x128xf32> -> vector<256x128xf32>
    %c0_3 = arith.constant 0 : index
    %c0_4 = arith.constant 0 : index
    %3 = vector.load %arg3[%c0_3, %c0_4] : memref<128x256xbf16, #tpu.memory_space<vmem>>, vector<128x256xbf16>
    %cst_5 = arith.constant dense<0.000000e+00> : vector<256x256xf32>
    %4 = tpu.matmul %0, %3, %cst_5 {dimension_numbers = #tpu.dot_dimension_numbers<[1], [0], [0], [1], [0, 0, 1, 1], [], []>} : vector<256x128xbf16>, vector<128x256xbf16>, vector<256x256xf32> -> vector<256x256xf32>
    %c0_6 = arith.constant 0 : index
    %c0_7 = arith.constant 0 : index
    %5 = vector.load %arg4[%c0_6, %c0_7] : memref<1x256xf32, #tpu.memory_space<vmem>>, vector<1x256xf32>
    %6 = vector.broadcast %5 : vector<1x256xf32> to vector<256x256xf32>
    %7 = arith.addf %4, %6 : vector<256x256xf32>
    %cst_8 = arith.constant 0.000000e+00 : f32
    %8 = vector.broadcast %cst_8 : f32 to vector<256x256xf32>
    %9 = arith.cmpf ogt, %7, %8 : vector<256x256xf32>
    %cst_9 = arith.constant 0.00999999977 : f32
    %10 = vector.broadcast %cst_9 : f32 to vector<256x256xf32>
    %11 = arith.mulf %10, %7 : vector<256x256xf32>
    %12 = arith.select %9, %7, %11 : vector<256x256xi1>, vector<256x256xf32>
    %13 = arith.truncf %12 : vector<256x256xf32> to vector<256x256xbf16>
    %c0_10 = arith.constant 0 : index
    %c0_11 = arith.constant 0 : index
    %14 = vector.load %arg5[%c0_10, %c0_11] : memref<256x256xbf16, #tpu.memory_space<vmem>>, vector<256x256xbf16>
    %cst_12 = arith.constant dense<0.000000e+00> : vector<256x256xf32>
    %15 = tpu.matmul %13, %14, %cst_12 {dimension_numbers = #tpu.dot_dimension_numbers<[1], [0], [0], [1], [0, 0, 1, 1], [], []>} : vector<256x256xbf16>, vector<256x256xbf16>, vector<256x256xf32> -> vector<256x256xf32>
    %c0_13 = arith.constant 0 : index
    %c0_14 = arith.constant 0 : index
    %16 = vector.load %arg6[%c0_13, %c0_14] : memref<1x256xf32, #tpu.memory_space<vmem>>, vector<1x256xf32>
    %17 = vector.broadcast %16 : vector<1x256xf32> to vector<256x256xf32>
    %18 = arith.addf %15, %17 : vector<256x256xf32>
    %19 = vector.extract_strided_slice %2 {offsets = [0, 0], sizes = [256, 1], strides = [1, 1]} : vector<256x128xf32> to vector<256x1xf32>
    %20 = vector.extract_strided_slice %2 {offsets = [0, 1], sizes = [256, 1], strides = [1, 1]} : vector<256x128xf32> to vector<256x1xf32>
    %21 = arith.cmpf oge, %19, %20 : vector<256x1xf32>
    %22 = vector.extract_strided_slice %18 {offsets = [0, 0], sizes = [256, 128], strides = [1, 1]} : vector<256x256xf32> to vector<256x128xf32>
    %23 = vector.extract_strided_slice %18 {offsets = [0, 128], sizes = [256, 128], strides = [1, 1]} : vector<256x256xf32> to vector<256x128xf32>
    %24 = vector.shape_cast %21 : vector<256x1xi1> to vector<256x1xi1>
    %25 = vector.broadcast %24 : vector<256x1xi1> to vector<256x128xi1>
    %26 = arith.select %25, %22, %23 : vector<256x128xi1>, vector<256x128xf32>
    %c0_15 = arith.constant 0 : index
    %c0_16 = arith.constant 0 : index
    %27 = vector.load %arg7[%c0_15, %c0_16] : memref<256x128xf32, #tpu.memory_space<vmem>>, vector<256x128xf32>
    tpu.vector_store %arg7[%c0_15, %c0_16], %26 {strides = array<i32>} : memref<256x128xf32, #tpu.memory_space<vmem>>, vector<256x128xf32>,
    return
  }
  func.func @transform_0(%arg0: i32) -> (i32, i32) {
    %c0_i32 = arith.constant 0 : i32
    %c0_i32_0 = arith.constant 0 : i32
    return %arg0, %c0_i32 : i32, i32
  }
  func.func @transform_1(%arg0: i32) -> (i32, i32) {
    %c0_i32 = arith.constant 0 : i32
    %c0_i32_0 = arith.constant 0 : i32
    %c0_i32_1 = arith.constant 0 : i32
    return %c0_i32, %c0_i32_0 : i32, i32
  }
  func.func @transform_2(%arg0: i32) -> (i32, i32) {
    %c0_i32 = arith.constant 0 : i32
    %c0_i32_0 = arith.constant 0 : i32
    %c0_i32_1 = arith.constant 0 : i32
    return %c0_i32, %c0_i32_0 : i32, i32
  }
  func.func @transform_3(%arg0: i32) -> (i32, i32) {
    %c0_i32 = arith.constant 0 : i32
    %c0_i32_0 = arith.constant 0 : i32
    %c0_i32_1 = arith.constant 0 : i32
    return %c0_i32, %c0_i32_0 : i32, i32
  }
  func.func @transform_4(%arg0: i32) -> (i32, i32) {
    %c0_i32 = arith.constant 0 : i32
    %c0_i32_0 = arith.constant 0 : i32
    %c0_i32_1 = arith.constant 0 : i32
    return %c0_i32, %c0_i32_0 : i32, i32
  }
  func.func @transform_5(%arg0: i32) -> (i32, i32) {
    %c0_i32 = arith.constant 0 : i32
    %c0_i32_0 = arith.constant 0 : i32
    %c0_i32_1 = arith.constant 0 : i32
    return %c0_i32, %c0_i32_0 : i32, i32
  }
  func.func @transform_6(%arg0: i32) -> (i32, i32) {
    %c0_i32 = arith.constant 0 : i32
    %c0_i32_0 = arith.constant 0 : i32
    return %arg0, %c0_i32 : i32, i32
  }
}

</mosaic_0001>

<llo_original>
// kernel: botrgcn_fmoe_double_forward.11
$region0: #{botrgcn_fmoe_double_forward.11}
  #allocation0 [shape = 'u32[]', space=smem, size = 0x4, offset = 0x4, fixed_abs, tag = 'smem constant byte address 0x4 - core index']
  #allocation1 [shape = 'u32[144,128]{1,0:T(1,128)}', space=vmem, size = 0x12000, scoped, tag = 'internal scratch']
  %s0 = inlined_call_operand.vmem [shape: bf16[256,128], index: 0, kind: input, shape index: {}]
  %s1 = inlined_call_operand.vmem [shape: bf16[128,128], index: 1, kind: input, shape index: {}]
  %s2 = inlined_call_operand.vmem [shape: bf16[128,256], index: 2, kind: input, shape index: {}]
  %s3 = inlined_call_operand.vmem [shape: f32[1,256], index: 3, kind: input, shape index: {}]
  %s4 = inlined_call_operand.vmem [shape: bf16[256,256], index: 4, kind: input, shape index: {}]
  %s5 = inlined_call_operand.vmem [shape: f32[1,256], index: 5, kind: input, shape index: {}]
  %s6 = inlined_call_operand.vmem [shape: f32[256,128], index: 6, kind: output, shape index: {}]
  %s7 = sld [smem:[#allocation0]]
  $region34: #{botrgcn_fmoe_double_forward.11} parent=0
    _
  %s9 = ssub.s32 1, %s7
  %s10 = scalar_select 0, %s9, %s7
  // Predicated region
  $region2: #{botrgcn_fmoe_double_forward.11} parent=0 // pred_check
    _
  $region3: #{botrgcn_fmoe_double_forward.11} parent=0 // pred_check_branch
    %12 = sbr.rel (0) target = $region5
  $region4: #{botrgcn_fmoe_double_forward.11} parent=0 // pred_region
    _
  $region5: #{botrgcn_fmoe_double_forward.11} parent=0 // pred_fallthru
    _
  // Predicated region
  $region6: #{botrgcn_fmoe_double_forward.11} parent=0 // pred_check
    _
  $region7: #{botrgcn_fmoe_double_forward.11} parent=0 // pred_check_branch
    %14 = sbr.rel (0) target = $region9
  $region8: #{botrgcn_fmoe_double_forward.11} parent=0 // pred_region
    _
  $region9: #{botrgcn_fmoe_double_forward.11} parent=0 // pred_fallthru
    _
  // Predicated region
  $region10: #{botrgcn_fmoe_double_forward.11} parent=0 // pred_check
    _
  $region11: #{botrgcn_fmoe_double_forward.11} parent=0 // pred_check_branch
    %16 = sbr.rel (0) target = $region13
  $region12: #{botrgcn_fmoe_double_forward.11} parent=0 // pred_region
    _
  $region13: #{botrgcn_fmoe_double_forward.11} parent=0 // pred_fallthru
    _
  // Predicated region
  $region14: #{botrgcn_fmoe_double_forward.11} parent=0 // pred_check
    _
  $region15: #{botrgcn_fmoe_double_forward.11} parent=0 // pred_check_branch
    %18 = sbr.rel (0) target = $region17
  $region16: #{botrgcn_fmoe_double_forward.11} parent=0 // pred_region
    _
  $region17: #{botrgcn_fmoe_double_forward.11} parent=0 // pred_fallthru
    _
  // Predicated region
  $region18: #{botrgcn_fmoe_double_forward.11} parent=0 // pred_check
    _
  $region19: #{botrgcn_fmoe_double_forward.11} parent=0 // pred_check_branch
    %20 = sbr.rel (0) target = $region21
  $region20: #{botrgcn_fmoe_double_forward.11} parent=0 // pred_region
    _
  $region21: #{botrgcn_fmoe_double_forward.11} parent=0 // pred_fallthru
    _
  // Predicated region
  $region22: #{botrgcn_fmoe_double_forward.11} parent=0 // pred_check
    _
  $region23: #{botrgcn_fmoe_double_forward.11} parent=0 // pred_check_branch
    %22 = sbr.rel (0) target = $region25
  $region24: #{botrgcn_fmoe_double_forward.11} parent=0 // pred_region
    _
  $region25: #{botrgcn_fmoe_double_forward.11} parent=0 // pred_fallthru
    _
  %v24 = vld [vmem:[%s0] sm:$0xf]
  %v25 = vld [vmem:[%s0 + $0x4] sm:$0xf]
  %v26 = vld [vmem:[%s0 + $0x8] sm:$0xf]
  %v27 = vld [vmem:[%s0 + $0xc] sm:$0xf]
  %v28 = vld [vmem:[%s0 + $0x10] sm:$0xf]
  %v29 = vld [vmem:[%s0 + $0x14] sm:$0xf]
  %v30 = vld [vmem:[%s0 + $0x18] sm:$0xf]
  %v31 = vld [vmem:[%s0 + $0x1c] sm:$0xf]
  %v32 = vld [vmem:[%s0 + $0x20] sm:$0xf]
  %v33 = vld [vmem:[%s0 + $0x24] sm:$0xf]
  %v34 = vld [vmem:[%s0 + $0x28] sm:$0xf]
  %v35 = vld [vmem:[%s0 + $0x2c] sm:$0xf]
  %v36 = vld [vmem:[%s0 + $0x30] sm:$0xf]
  %v37 = vld [vmem:[%s0 + $0x34] sm:$0xf]
  %v38 = vld [vmem:[%s0 + $0x38] sm:$0xf]
  %v39 = vld [vmem:[%s0 + $0x3c] sm:$0xf]
  %v40 = vld [vmem:[%s0 + $0x40] sm:$0xf]
  %v41 = vld [vmem:[%s0 + $0x44] sm:$0xf]
  %v42 = vld [vmem:[%s0 + $0x48] sm:$0xf]
  %v43 = vld [vmem:[%s0 + $0x4c] sm:$0xf]
  %v44 = vld [vmem:[%s0 + $0x50] sm:$0xf]
  %v45 = vld [vmem:[%s0 + $0x54] sm:$0xf]
  %v46 = vld [vmem:[%s0 + $0x58] sm:$0xf]
  %v47 = vld [vmem:[%s0 + $0x5c] sm:$0xf]
  %v48 = vld [vmem:[%s0 + $0x60] sm:$0xf]
  %v49 = vld [vmem:[%s0 + $0x64] sm:$0xf]
  %v50 = vld [vmem:[%s0 + $0x68] sm:$0xf]
  %v51 = vld [vmem:[%s0 + $0x6c] sm:$0xf]
  %v52 = vld [vmem:[%s0 + $0x70] sm:$0xf]
  %v53 = vld [vmem:[%s0 + $0x74] sm:$0xf]
  %v54 = vld [vmem:[%s0 + $0x78] sm:$0xf]
  %v55 = vld [vmem:[%s0 + $0x7c] sm:$0xf]
  %v56 = vld [vmem:[%s1] sm:$0xf]
  %v57 = vld [vmem:[%s1 + $0x4] sm:$0xf]
  %v58 = vld [vmem:[%s1 + $0x8] sm:$0xf]
  %v59 = vld [vmem:[%s1 + $0xc] sm:$0xf]
  %v60 = vld [vmem:[%s1 + $0x10] sm:$0xf]
  %v61 = vld [vmem:[%s1 + $0x14] sm:$0xf]
  %v62 = vld [vmem:[%s1 + $0x18] sm:$0xf]
  %v63 = vld [vmem:[%s1 + $0x1c] sm:$0xf]
  %v64 = vld [vmem:[%s1 + $0x20] sm:$0xf]
  %v65 = vld [vmem:[%s1 + $0x24] sm:$0xf]
  %v66 = vld [vmem:[%s1 + $0x28] sm:$0xf]
  %v67 = vld [vmem:[%s1 + $0x2c] sm:$0xf]
  %v68 = vld [vmem:[%s1 + $0x30] sm:$0xf]
  %v69 = vld [vmem:[%s1 + $0x34] sm:$0xf]
  %v70 = vld [vmem:[%s1 + $0x38] sm:$0xf]
  %v71 = vld [vmem:[%s1 + $0x3c] sm:$0xf]
  %v104 = vunpack.c.l.b16 %v24
  %v105 = vunpack.c.l.b16 %v25
  %v106 = vunpack.c.l.b16 %v26
  %v107 = vunpack.c.l.b16 %v27
  %v108 = vunpack.c.l.b16 %v28
  %v109 = vunpack.c.l.b16 %v29
  %v110 = vunpack.c.l.b16 %v30
  %v111 = vunpack.c.l.b16 %v31
  %v112 = vunpack.c.l.b16 %v32
  %v113 = vunpack.c.l.b16 %v33
  %v114 = vunpack.c.l.b16 %v34
  %v115 = vunpack.c.l.b16 %v35
  %v116 = vunpack.c.l.b16 %v36
  %v117 = vunpack.c.l.b16 %v37
  %v118 = vunpack.c.l.b16 %v38
  %v119 = vunpack.c.l.b16 %v39
  %v120 = vunpack.c.l.b16 %v40
  %v121 = vunpack.c.l.b16 %v41
  %v122 = vunpack.c.l.b16 %v42
  %v123 = vunpack.c.l.b16 %v43
  %v124 = vunpack.c.l.b16 %v44
  %v125 = vunpack.c.l.b16 %v45
  %v126 = vunpack.c.l.b16 %v46
  %v127 = vunpack.c.l.b16 %v47
  %v128 = vunpack.c.l.b16 %v48
  %v129 = vunpack.c.l.b16 %v49
  %v130 = vunpack.c.l.b16 %v50
  %v131 = vunpack.c.l.b16 %v51
  %v132 = vunpack.c.l.b16 %v52
  %v133 = vunpack.c.l.b16 %v53
  %v134 = vunpack.c.l.b16 %v54
  %v135 = vunpack.c.l.b16 %v55
  %v136 = vpack.c.b16 %v105, %v104
  %v137 = vpack.c.b16 %v107, %v106
  %v138 = vpack.c.b16 %v109, %v108
  %v139 = vpack.c.b16 %v111, %v110
  %v140 = vpack.c.b16 %v113, %v112
  %v141 = vpack.c.b16 %v115, %v114
  %v142 = vpack.c.b16 %v117, %v116
  %v143 = vpack.c.b16 %v119, %v118
  %v144 = vpack.c.b16 %v121, %v120
  %v145 = vpack.c.b16 %v123, %v122
  %v146 = vpack.c.b16 %v125, %v124
  %v147 = vpack.c.b16 %v127, %v126
  %v148 = vpack.c.b16 %v129, %v128
  %v149 = vpack.c.b16 %v131, %v130
  %v150 = vpack.c.b16 %v133, %v132
  %v151 = vpack.c.b16 %v135, %v134
  %v184 = vunpack.c.l.b16 %v56
  %v185 = vunpack.c.l.b16 %v57
  %v186 = vunpack.c.l.b16 %v58
  %v187 = vunpack.c.l.b16 %v59
  %v188 = vunpack.c.l.b16 %v60
  %v189 = vunpack.c.l.b16 %v61
  %v190 = vunpack.c.l.b16 %v62
  %v191 = vunpack.c.l.b16 %v63
  %v192 = vunpack.c.l.b16 %v64
  %v193 = vunpack.c.l.b16 %v65
  %v194 = vunpack.c.l.b16 %v66
  %v195 = vunpack.c.l.b16 %v67
  %v196 = vunpack.c.l.b16 %v68
  %v197 = vunpack.c.l.b16 %v69
  %v198 = vunpack.c.l.b16 %v70
  %v199 = vunpack.c.l.b16 %v71
  %v200 = vpack.c.b16 %v185, %v184
  %v201 = vpack.c.b16 %v187, %v186
  %v202 = vpack.c.b16 %v189, %v188
  %v203 = vpack.c.b16 %v191, %v190
  %v204 = vpack.c.b16 %v193, %v192
  %v205 = vpack.c.b16 %v195, %v194
  %v206 = vpack.c.b16 %v197, %v196
  %v207 = vpack.c.b16 %v199, %v198
  %216 = vmatprep.subr.bf16.mxu0 0
  %217 = vmatpush1.bf16.msra.mxu0 %v207
  %218 = vmatprep.subr.bf16.mxu0 0
  %219 = vmatpush1.bf16.msra.mxu0 %v206
  %220 = vmatprep.subr.bf16.mxu0 0
  %221 = vmatpush1.bf16.msra.mxu0 %v205
  %222 = vmatprep.subr.bf16.mxu0 0
  %223 = vmatpush1.bf16.msra.mxu0 %v204
  %224 = vmatprep.subr.bf16.mxu0 0
  %225 = vmatpush1.bf16.msra.mxu0 %v203
  %226 = vmatprep.subr.bf16.mxu0 0
  %227 = vmatpush1.bf16.msra.mxu0 %v202
  %228 = vmatprep.subr.bf16.mxu0 0
  %229 = vmatpush1.bf16.msra.mxu0 %v201
  %230 = vmatprep.subr.bf16.mxu0 0
  %231 = vmatpush1.bf16.msra.mxu0 %v200
  %232 = vmatprep.subr.bf16.mxu0 0
  %233 = vmatpush2.bf16.msra.mxu0 0
  %234 = vmatprep.subr.bf16.mxu0 0
  %235 = vmatpush2.bf16.msra.mxu0 0
  %236 = vmatprep.subr.bf16.mxu0 0
  %237 = vmatpush2.bf16.msra.mxu0 0
  %238 = vmatprep.subr.bf16.mxu0 0
  %239 = vmatpush2.bf16.msra.mxu0 0
  %240 = vmatprep.subr.bf16.mxu0 0
  %241 = vmatpush2.bf16.msra.mxu0 0
  %242 = vmatprep.subr.bf16.mxu0 0
  %243 = vmatpush2.bf16.msra.mxu0 0
  %244 = vmatprep.subr.bf16.mxu0 0
  %245 = vmatpush2.bf16.msra.mxu0 0
  %246 = vmatprep.subr.bf16.mxu0 0
  %247 = vmatpush2.bf16.msra.mxu0 0
  %248 = vmatprep.mubr.bf16.mxu0 0
  %249 = vmatmul.mubr.bf16.gmra.mxu0 %v136
  %v250 = vpop.f32.mrf.mxu0
  %v251 = vadd.f32 0.0, %v250
  %v252 = vpop.f32.mrf.mxu0
  %v253 = vpop.f32.mrf.mxu0
  %v254 = vadd.f32 0.0, %v253
  %v255 = vpop.f32.mrf.mxu0
  %256 = vmatprep.mubr.bf16.mxu0 0
  %257 = vmatmul.mubr.bf16.gmra.mxu0 %v137
  %v258 = vpop.f32.mrf.mxu0
  %v259 = vadd.f32 0.0, %v258
  %v260 = vpop.f32.mrf.mxu0
  %v261 = vpop.f32.mrf.mxu0
  %v262 = vadd.f32 0.0, %v261
  %v263 = vpop.f32.mrf.mxu0
  %264 = vmatprep.mubr.bf16.mxu0 0
  %265 = vmatmul.mubr.bf16.gmra.mxu0 %v138
  %v266 = vpop.f32.mrf.mxu0
  %v267 = vadd.f32 0.0, %v266
  %v268 = vpop.f32.mrf.mxu0
  %v269 = vpop.f32.mrf.mxu0
  %v270 = vadd.f32 0.0, %v269
  %v271 = vpop.f32.mrf.mxu0
  %272 = vmatprep.mubr.bf16.mxu0 0
  %273 = vmatmul.mubr.bf16.gmra.mxu0 %v139
  %v274 = vpop.f32.mrf.mxu0
  %v275 = vadd.f32 0.0, %v274
  %v276 = vpop.f32.mrf.mxu0
  %v277 = vpop.f32.mrf.mxu0
  %v278 = vadd.f32 0.0, %v277
  %v279 = vpop.f32.mrf.mxu0
  %280 = vmatprep.mubr.bf16.mxu0 0
  %281 = vmatmul.mubr.bf16.gmra.mxu0 %v140
  %v282 = vpop.f32.mrf.mxu0
  %v283 = vadd.f32 0.0, %v282
  %v284 = vpop.f32.mrf.mxu0
  %v285 = vpop.f32.mrf.mxu0
  %v286 = vadd.f32 0.0, %v285
  %v287 = vpop.f32.mrf.mxu0
  %288 = vmatprep.mubr.bf16.mxu0 0
  %289 = vmatmul.mubr.bf16.gmra.mxu0 %v141
  %v290 = vpop.f32.mrf.mxu0
  %v291 = vadd.f32 0.0, %v290
  %v292 = vpop.f32.mrf.mxu0
  %v293 = vpop.f32.mrf.mxu0
  %v294 = vadd.f32 0.0, %v293
  %v295 = vpop.f32.mrf.mxu0
  %296 = vmatprep.mubr.bf16.mxu0 0
  %297 = vmatmul.mubr.bf16.gmra.mxu0 %v142
  %v298 = vpop.f32.mrf.mxu0
  %v299 = vadd.f32 0.0, %v298
  %v300 = vpop.f32.mrf.mxu0
  %v301 = vpop.f32.mrf.mxu0
  %v302 = vadd.f32 0.0, %v301
  %v303 = vpop.f32.mrf.mxu0
  %304 = vmatprep.mubr.bf16.mxu0 0
  %305 = vmatmul.mubr.bf16.gmra.mxu0 %v143
  %v306 = vpop.f32.mrf.mxu0
  %v307 = vadd.f32 0.0, %v306
  %v308 = vpop.f32.mrf.mxu0
  %v309 = vpop.f32.mrf.mxu0
  %v310 = vadd.f32 0.0, %v309
  %v311 = vpop.f32.mrf.mxu0
  %312 = vmatprep.mubr.bf16.mxu0 0
  %313 = vmatmul.mubr.bf16.gmra.mxu0 %v144
  %v314 = vpop.f32.mrf.mxu0
  %v315 = vadd.f32 0.0, %v314
  %v316 = vpop.f32.mrf.mxu0
  %v317 = vpop.f32.mrf.mxu0
  %v318 = vadd.f32 0.0, %v317
  %v319 = vpop.f32.mrf.mxu0
  %320 = vmatprep.mubr.bf16.mxu0 0
  %321 = vmatmul.mubr.bf16.gmra.mxu0 %v145
  %v322 = vpop.f32.mrf.mxu0
  %v323 = vadd.f32 0.0, %v322
  %v324 = vpop.f32.mrf.mxu0
  %v325 = vpop.f32.mrf.mxu0
  %v326 = vadd.f32 0.0, %v325
  %v327 = vpop.f32.mrf.mxu0
  %328 = vmatprep.mubr.bf16.mxu0 0
  %329 = vmatmul.mubr.bf16.gmra.mxu0 %v146
  %v330 = vpop.f32.mrf.mxu0
  %v331 = vadd.f32 0.0, %v330
  %v332 = vpop.f32.mrf.mxu0
  %v333 = vpop.f32.mrf.mxu0
  %v334 = vadd.f32 0.0, %v333
  %v335 = vpop.f32.mrf.mxu0
  %336 = vmatprep.mubr.bf16.mxu0 0
  %337 = vmatmul.mubr.bf16.gmra.mxu0 %v147
  %v338 = vpop.f32.mrf.mxu0
  %v339 = vadd.f32 0.0, %v338
  %v340 = vpop.f32.mrf.mxu0
  %v341 = vpop.f32.mrf.mxu0
  %v342 = vadd.f32 0.0, %v341
  %v343 = vpop.f32.mrf.mxu0
  %344 = vmatprep.mubr.bf16.mxu0 0
  %345 = vmatmul.mubr.bf16.gmra.mxu0 %v148
  %v346 = vpop.f32.mrf.mxu0
  %v347 = vadd.f32 0.0, %v346
  %v348 = vpop.f32.mrf.mxu0
  %v349 = vpop.f32.mrf.mxu0
  %v350 = vadd.f32 0.0, %v349
  %v351 = vpop.f32.mrf.mxu0
  %352 = vmatprep.mubr.bf16.mxu0 0
  %353 = vmatmul.mubr.bf16.gmra.mxu0 %v149
  %v354 = vpop.f32.mrf.mxu0
  %v355 = vadd.f32 0.0, %v354
  %v356 = vpop.f32.mrf.mxu0
  %v357 = vpop.f32.mrf.mxu0
  %v358 = vadd.f32 0.0, %v357
  %v359 = vpop.f32.mrf.mxu0
  %360 = vmatprep.mubr.bf16.mxu0 0
  %361 = vmatmul.mubr.bf16.gmra.mxu0 %v150
  %v362 = vpop.f32.mrf.mxu0
  %v363 = vadd.f32 0.0, %v362
  %v364 = vpop.f32.mrf.mxu0
  %v365 = vpop.f32.mrf.mxu0
  %v366 = vadd.f32 0.0, %v365
  %v367 = vpop.f32.mrf.mxu0
  %368 = vmatprep.mubr.bf16.mxu0 0
  %369 = vmatmul.mubr.bf16.gmra.mxu0 %v151
  %v370 = vpop.f32.mrf.mxu0
  %v371 = vadd.f32 0.0, %v370
  %v372 = vpop.f32.mrf.mxu0
  %v373 = vpop.f32.mrf.mxu0
  %v374 = vadd.f32 0.0, %v373
  %v375 = vpop.f32.mrf.mxu0
  %376 = vdwg.mxu0
  %v377 = vld [vmem:[%s2] sm:$0xff]
  %v378 = vld [vmem:[%s2 + $0x8] sm:$0xff]
  %v379 = vld [vmem:[%s2 + $0x10] sm:$0xff]
  %v380 = vld [vmem:[%s2 + $0x18] sm:$0xff]
  %v381 = vld [vmem:[%s2 + $0x20] sm:$0xff]
  %v382 = vld [vmem:[%s2 + $0x28] sm:$0xff]
  %v383 = vld [vmem:[%s2 + $0x30] sm:$0xff]
  %v384 = vld [vmem:[%s2 + $0x38] sm:$0xff]
  %v385 = vld [vmem:[%s2 + $0x40] sm:$0xff]
  %v386 = vld [vmem:[%s2 + $0x48] sm:$0xff]
  %v387 = vld [vmem:[%s2 + $0x50] sm:$0xff]
  %v388 = vld [vmem:[%s2 + $0x58] sm:$0xff]
  %v389 = vld [vmem:[%s2 + $0x60] sm:$0xff]
  %v390 = vld [vmem:[%s2 + $0x68] sm:$0xff]
  %v391 = vld [vmem:[%s2 + $0x70] sm:$0xff]
  %v392 = vld [vmem:[%s2 + $0x78] sm:$0xff]
  %v393 = vld [vmem:[%s3] sm:$0x3]
  %v395 = vlaneseq
  %v396 = vshrl.u32 %v395, 7
  %v397 = vsub.s32 0, %v396
  %v398 = vrot.slane %v393, %v397
  %v399 = vlaneseq
  %v400 = vshrl.u32 %v399, 7
  %v401 = vsub.s32 1, %v400
  %v402 = vrot.slane %v393, %v401
  %v421 = vunpack.c.l.b16 %v377
  %v422 = vunpack.c.h.b16 %v377
  %v423 = vunpack.c.l.b16 %v378
  %v424 = vunpack.c.h.b16 %v378
  %v425 = vunpack.c.l.b16 %v379
  %v426 = vunpack.c.h.b16 %v379
  %v427 = vunpack.c.l.b16 %v380
  %v428 = vunpack.c.h.b16 %v380
  %v429 = vunpack.c.l.b16 %v381
  %v430 = vunpack.c.h.b16 %v381
  %v431 = vunpack.c.l.b16 %v382
  %v432 = vunpack.c.h.b16 %v382
  %v433 = vunpack.c.l.b16 %v383
  %v434 = vunpack.c.h.b16 %v383
  %v435 = vunpack.c.l.b16 %v384
  %v436 = vunpack.c.h.b16 %v384
  %v437 = vunpack.c.l.b16 %v385
  %v438 = vunpack.c.h.b16 %v385
  %v439 = vunpack.c.l.b16 %v386
  %v440 = vunpack.c.h.b16 %v386
  %v441 = vunpack.c.l.b16 %v387
  %v442 = vunpack.c.h.b16 %v387
  %v443 = vunpack.c.l.b16 %v388
  %v444 = vunpack.c.h.b16 %v388
  %v445 = vunpack.c.l.b16 %v389
  %v446 = vunpack.c.h.b16 %v389
  %v447 = vunpack.c.l.b16 %v390
  %v448 = vunpack.c.h.b16 %v390
  %v449 = vunpack.c.l.b16 %v391
  %v450 = vunpack.c.h.b16 %v391
  %v451 = vunpack.c.l.b16 %v392
  %v452 = vunpack.c.h.b16 %v392
  %v453 = vpack.c.b16 %v423, %v421
  %v454 = vpack.c.b16 %v424, %v422
  %v455 = vpack.c.b16 %v427, %v425
  %v456 = vpack.c.b16 %v428, %v426
  %v457 = vpack.c.b16 %v431, %v429
  %v458 = vpack.c.b16 %v432, %v430
  %v459 = vpack.c.b16 %v435, %v433
  %v460 = vpack.c.b16 %v436, %v434
  %v461 = vpack.c.b16 %v439, %v437
  %v462 = vpack.c.b16 %v440, %v438
  %v463 = vpack.c.b16 %v443, %v441
  %v464 = vpack.c.b16 %v444, %v442
  %v465 = vpack.c.b16 %v447, %v445
  %v466 = vpack.c.b16 %v448, %v446
  %v467 = vpack.c.b16 %v451, %v449
  %v468 = vpack.c.b16 %v452, %v450
  %485 = vmatprep.subr.bf16.mxu0 %v468
  %486 = vmatpush1.bf16.msra.mxu0 %v467
  %487 = vmatprep.subr.bf16.mxu0 %v466
  %488 = vmatpush1.bf16.msra.mxu0 %v465
  %489 = vmatprep.subr.bf16.mxu0 %v464
  %490 = vmatpush1.bf16.msra.mxu0 %v463
  %491 = vmatprep.subr.bf16.mxu0 %v462
  %492 = vmatpush1.bf16.msra.mxu0 %v461
  %493 = vmatprep.subr.bf16.mxu0 %v460
  %494 = vmatpush1.bf16.msra.mxu0 %v459
  %495 = vmatprep.subr.bf16.mxu0 %v458
  %496 = vmatpush1.bf16.msra.mxu0 %v457
  %497 = vmatprep.subr.bf16.mxu0 %v456
  %498 = vmatpush1.bf16.msra.mxu0 %v455
  %499 = vmatprep.subr.bf16.mxu0 %v454
  %500 = vmatpush1.bf16.msra.mxu0 %v453
  %501 = vmatprep.subr.bf16.mxu0 0
  %502 = vmatpush2.bf16.msra.mxu0 0
  %503 = vmatprep.subr.bf16.mxu0 0
  %504 = vmatpush2.bf16.msra.mxu0 0
  %505 = vmatprep.subr.bf16.mxu0 0
  %506 = vmatpush2.bf16.msra.mxu0 0
  %507 = vmatprep.subr.bf16.mxu0 0
  %508 = vmatpush2.bf16.msra.mxu0 0
  %509 = vmatprep.subr.bf16.mxu0 0
  %510 = vmatpush2.bf16.msra.mxu0 0
  %511 = vmatprep.subr.bf16.mxu0 0
  %512 = vmatpush2.bf16.msra.mxu0 0
  %513 = vmatprep.subr.bf16.mxu0 0
  %514 = vmatpush2.bf16.msra.mxu0 0
  %515 = vmatprep.subr.bf16.mxu0 0
  %516 = vmatpush2.bf16.msra.mxu0 0
  %517 = vmatprep.mubr.bf16.mxu0 0
  %518 = vmatmul.mubr.bf16.gmra.mxu0 %v136
  %v519 = vpop.f32.mrf.mxu0
  %v520 = vadd.f32 %v398, %v519
  %v521 = vpop.f32.mrf.mxu0
  %v522 = vadd.f32 %v402, %v521
  %v523 = vpop.f32.mrf.mxu0
  %v524 = vadd.f32 %v398, %v523
  %v525 = vpop.f32.mrf.mxu0
  %v526 = vadd.f32 %v402, %v525
  %527 = vmatprep.mubr.bf16.mxu0 0
  %528 = vmatmul.mubr.bf16.gmra.mxu0 %v137
  %v529 = vpop.f32.mrf.mxu0
  %v530 = vadd.f32 %v398, %v529
  %v531 = vpop.f32.mrf.mxu0
  %v532 = vadd.f32 %v402, %v531
  %v533 = vpop.f32.mrf.mxu0
  %v534 = vadd.f32 %v398, %v533
  %v535 = vpop.f32.mrf.mxu0
  %v536 = vadd.f32 %v402, %v535
  %537 = vmatprep.mubr.bf16.mxu0 0
  %538 = vmatmul.mubr.bf16.gmra.mxu0 %v138
  %v539 = vpop.f32.mrf.mxu0
  %v540 = vadd.f32 %v398, %v539
  %v541 = vpop.f32.mrf.mxu0
  %v542 = vadd.f32 %v402, %v541
  %v543 = vpop.f32.mrf.mxu0
  %v544 = vadd.f32 %v398, %v543
  %v545 = vpop.f32.mrf.mxu0
  %v546 = vadd.f32 %v402, %v545
  %547 = vmatprep.mubr.bf16.mxu0 0
  %548 = vmatmul.mubr.bf16.gmra.mxu0 %v139
  %v549 = vpop.f32.mrf.mxu0
  %v550 = vadd.f32 %v398, %v549
  %v551 = vpop.f32.mrf.mxu0
  %v552 = vadd.f32 %v402, %v551
  %v553 = vpop.f32.mrf.mxu0
  %v554 = vadd.f32 %v398, %v553
  %v555 = vpop.f32.mrf.mxu0
  %v556 = vadd.f32 %v402, %v555
  %557 = vmatprep.mubr.bf16.mxu0 0
  %558 = vmatmul.mubr.bf16.gmra.mxu0 %v140
  %v559 = vpop.f32.mrf.mxu0
  %v560 = vadd.f32 %v398, %v559
  %v561 = vpop.f32.mrf.mxu0
  %v562 = vadd.f32 %v402, %v561
  %v563 = vpop.f32.mrf.mxu0
  %v564 = vadd.f32 %v398, %v563
  %v565 = vpop.f32.mrf.mxu0
  %v566 = vadd.f32 %v402, %v565
  %567 = vmatprep.mubr.bf16.mxu0 0
  %568 = vmatmul.mubr.bf16.gmra.mxu0 %v141
  %v569 = vpop.f32.mrf.mxu0
  %v570 = vadd.f32 %v398, %v569
  %v571 = vpop.f32.mrf.mxu0
  %v572 = vadd.f32 %v402, %v571
  %v573 = vpop.f32.mrf.mxu0
  %v574 = vadd.f32 %v398, %v573
  %v575 = vpop.f32.mrf.mxu0
  %v576 = vadd.f32 %v402, %v575
  %577 = vmatprep.mubr.bf16.mxu0 0
  %578 = vmatmul.mubr.bf16.gmra.mxu0 %v142
  %v579 = vpop.f32.mrf.mxu0
  %v580 = vadd.f32 %v398, %v579
  %v581 = vpop.f32.mrf.mxu0
  %v582 = vadd.f32 %v402, %v581
  %v583 = vpop.f32.mrf.mxu0
  %v584 = vadd.f32 %v398, %v583
  %v585 = vpop.f32.mrf.mxu0
  %v586 = vadd.f32 %v402, %v585
  %587 = vmatprep.mubr.bf16.mxu0 0
  %588 = vmatmul.mubr.bf16.gmra.mxu0 %v143
  %v589 = vpop.f32.mrf.mxu0
  %v590 = vadd.f32 %v398, %v589
  %v591 = vpop.f32.mrf.mxu0
  %v592 = vadd.f32 %v402, %v591
  %v593 = vpop.f32.mrf.mxu0
  %v594 = vadd.f32 %v398, %v593
  %v595 = vpop.f32.mrf.mxu0
  %v596 = vadd.f32 %v402, %v595
  %597 = vmatprep.mubr.bf16.mxu0 0
  %598 = vmatmul.mubr.bf16.gmra.mxu0 %v144
  %v599 = vpop.f32.mrf.mxu0
  %v600 = vadd.f32 %v398, %v599
  %v601 = vpop.f32.mrf.mxu0
  %v602 = vadd.f32 %v402, %v601
  %v603 = vpop.f32.mrf.mxu0
  %v604 = vadd.f32 %v398, %v603
  %v605 = vpop.f32.mrf.mxu0
  %v606 = vadd.f32 %v402, %v605
  %607 = vmatprep.mubr.bf16.mxu0 0
  %608 = vmatmul.mubr.bf16.gmra.mxu0 %v145
  %v609 = vpop.f32.mrf.mxu0
  %v610 = vadd.f32 %v398, %v609
  %v611 = vpop.f32.mrf.mxu0
  %v612 = vadd.f32 %v402, %v611
  %v613 = vpop.f32.mrf.mxu0
  %v614 = vadd.f32 %v398, %v613
  %v615 = vpop.f32.mrf.mxu0
  %v616 = vadd.f32 %v402, %v615
  %617 = vmatprep.mubr.bf16.mxu0 0
  %618 = vmatmul.mubr.bf16.gmra.mxu0 %v146
  %v619 = vpop.f32.mrf.mxu0
  %v620 = vadd.f32 %v398, %v619
  %v621 = vpop.f32.mrf.mxu0
  %v622 = vadd.f32 %v402, %v621
  %v623 = vpop.f32.mrf.mxu0
  %v624 = vadd.f32 %v398, %v623
  %v625 = vpop.f32.mrf.mxu0
  %v626 = vadd.f32 %v402, %v625
  %627 = vmatprep.mubr.bf16.mxu0 0
  %628 = vmatmul.mubr.bf16.gmra.mxu0 %v147
  %v629 = vpop.f32.mrf.mxu0
  %v630 = vadd.f32 %v398, %v629
  %v631 = vpop.f32.mrf.mxu0
  %v632 = vadd.f32 %v402, %v631
  %v633 = vpop.f32.mrf.mxu0
  %v634 = vadd.f32 %v398, %v633
  %v635 = vpop.f32.mrf.mxu0
  %v636 = vadd.f32 %v402, %v635
  %637 = vmatprep.mubr.bf16.mxu0 0
  %638 = vmatmul.mubr.bf16.gmra.mxu0 %v148
  %v639 = vpop.f32.mrf.mxu0
  %v640 = vadd.f32 %v398, %v639
  %v641 = vpop.f32.mrf.mxu0
  %v642 = vadd.f32 %v402, %v641
  %v643 = vpop.f32.mrf.mxu0
  %v644 = vadd.f32 %v398, %v643
  %v645 = vpop.f32.mrf.mxu0
  %v646 = vadd.f32 %v402, %v645
  %647 = vmatprep.mubr.bf16.mxu0 0
  %648 = vmatmul.mubr.bf16.gmra.mxu0 %v149
  %v649 = vpop.f32.mrf.mxu0
  %v650 = vadd.f32 %v398, %v649
  %v651 = vpop.f32.mrf.mxu0
  %v652 = vadd.f32 %v402, %v651
  %v653 = vpop.f32.mrf.mxu0
  %v654 = vadd.f32 %v398, %v653
  %v655 = vpop.f32.mrf.mxu0
  %v656 = vadd.f32 %v402, %v655
  %657 = vmatprep.mubr.bf16.mxu0 0
  %658 = vmatmul.mubr.bf16.gmra.mxu0 %v150
  %v659 = vpop.f32.mrf.mxu0
  %v660 = vadd.f32 %v398, %v659
  %v661 = vpop.f32.mrf.mxu0
  %v662 = vadd.f32 %v402, %v661
  %v663 = vpop.f32.mrf.mxu0
  %v664 = vadd.f32 %v398, %v663
  %v665 = vpop.f32.mrf.mxu0
  %v666 = vadd.f32 %v402, %v665
  %667 = vmatprep.mubr.bf16.mxu0 0
  %668 = vmatmul.mubr.bf16.gmra.mxu0 %v151
  %v669 = vpop.f32.mrf.mxu0
  %v670 = vadd.f32 %v398, %v669
  %v671 = vpop.f32.mrf.mxu0
  %v672 = vadd.f32 %v402, %v671
  %v673 = vpop.f32.mrf.mxu0
  %v674 = vadd.f32 %v398, %v673
  %v675 = vpop.f32.mrf.mxu0
  %v676 = vadd.f32 %v402, %v675
  %677 = vdwg.mxu0
  %vm678 = vcmp.gt.f32.partialorder %v520, 0.0
  %vm679 = vcmp.gt.f32.partialorder %v522, 0.0
  %vm680 = vcmp.gt.f32.partialorder %v524, 0.0
  %vm681 = vcmp.gt.f32.partialorder %v526, 0.0
  %vm682 = vcmp.gt.f32.partialorder %v530, 0.0
  %vm683 = vcmp.gt.f32.partialorder %v532, 0.0
  %vm684 = vcmp.gt.f32.partialorder %v534, 0.0
  %vm685 = vcmp.gt.f32.partialorder %v536, 0.0
  %vm686 = vcmp.gt.f32.partialorder %v540, 0.0
  %vm687 = vcmp.gt.f32.partialorder %v542, 0.0
  %vm688 = vcmp.gt.f32.partialorder %v544, 0.0
  %vm689 = vcmp.gt.f32.partialorder %v546, 0.0
  %vm690 = vcmp.gt.f32.partialorder %v550, 0.0
  %vm691 = vcmp.gt.f32.partialorder %v552, 0.0
  %vm692 = vcmp.gt.f32.partialorder %v554, 0.0
  %vm693 = vcmp.gt.f32.partialorder %v556, 0.0
  %vm694 = vcmp.gt.f32.partialorder %v560, 0.0
  %vm695 = vcmp.gt.f32.partialorder %v562, 0.0
  %vm696 = vcmp.gt.f32.partialorder %v564, 0.0
  %vm697 = vcmp.gt.f32.partialorder %v566, 0.0
  %vm698 = vcmp.gt.f32.partialorder %v570, 0.0
  %vm699 = vcmp.gt.f32.partialorder %v572, 0.0
  %vm700 = vcmp.gt.f32.partialorder %v574, 0.0
  %vm701 = vcmp.gt.f32.partialorder %v576, 0.0
  %vm702 = vcmp.gt.f32.partialorder %v580, 0.0
  %vm703 = vcmp.gt.f32.partialorder %v582, 0.0
  %vm704 = vcmp.gt.f32.partialorder %v584, 0.0
  %vm705 = vcmp.gt.f32.partialorder %v586, 0.0
  %vm706 = vcmp.gt.f32.partialorder %v590, 0.0
  %vm707 = vcmp.gt.f32.partialorder %v592, 0.0
  %vm708 = vcmp.gt.f32.partialorder %v594, 0.0
  %vm709 = vcmp.gt.f32.partialorder %v596, 0.0
  %vm710 = vcmp.gt.f32.partialorder %v600, 0.0
  %vm711 = vcmp.gt.f32.partialorder %v602, 0.0
  %vm712 = vcmp.gt.f32.partialorder %v604, 0.0
  %vm713 = vcmp.gt.f32.partialorder %v606, 0.0
  %vm714 = vcmp.gt.f32.partialorder %v610, 0.0
  %vm715 = vcmp.gt.f32.partialorder %v612, 0.0
  %vm716 = vcmp.gt.f32.partialorder %v614, 0.0
  %vm717 = vcmp.gt.f32.partialorder %v616, 0.0
  %vm718 = vcmp.gt.f32.partialorder %v620, 0.0
  %vm719 = vcmp.gt.f32.partialorder %v622, 0.0
  %vm720 = vcmp.gt.f32.partialorder %v624, 0.0
  %vm721 = vcmp.gt.f32.partialorder %v626, 0.0
  %vm722 = vcmp.gt.f32.partialorder %v630, 0.0
  %vm723 = vcmp.gt.f32.partialorder %v632, 0.0
  %vm724 = vcmp.gt.f32.partialorder %v634, 0.0
  %vm725 = vcmp.gt.f32.partialorder %v636, 0.0
  %vm726 = vcmp.gt.f32.partialorder %v640, 0.0
  %vm727 = vcmp.gt.f32.partialorder %v642, 0.0
  %vm728 = vcmp.gt.f32.partialorder %v644, 0.0
  %vm729 = vcmp.gt.f32.partialorder %v646, 0.0
  %vm730 = vcmp.gt.f32.partialorder %v650, 0.0
  %vm731 = vcmp.gt.f32.partialorder %v652, 0.0
  %vm732 = vcmp.gt.f32.partialorder %v654, 0.0
  %vm733 = vcmp.gt.f32.partialorder %v656, 0.0
  %vm734 = vcmp.gt.f32.partialorder %v660, 0.0
  %vm735 = vcmp.gt.f32.partialorder %v662, 0.0
  %vm736 = vcmp.gt.f32.partialorder %v664, 0.0
  %vm737 = vcmp.gt.f32.partialorder %v666, 0.0
  %vm738 = vcmp.gt.f32.partialorder %v670, 0.0
  %vm739 = vcmp.gt.f32.partialorder %v672, 0.0
  %vm740 = vcmp.gt.f32.partialorder %v674, 0.0
  %vm741 = vcmp.gt.f32.partialorder %v676, 0.0
  %v742 = vmul.f32 %v520, 0.01
  %v743 = vmul.f32 %v522, 0.01
  %v744 = vmul.f32 %v524, 0.01
  %v745 = vmul.f32 %v526, 0.01
  %v746 = vmul.f32 %v530, 0.01
  %v747 = vmul.f32 %v532, 0.01
  %v748 = vmul.f32 %v534, 0.01
  %v749 = vmul.f32 %v536, 0.01
  %v750 = vmul.f32 %v540, 0.01
  %v751 = vmul.f32 %v542, 0.01
  %v752 = vmul.f32 %v544, 0.01
  %v753 = vmul.f32 %v546, 0.01
  %v754 = vmul.f32 %v550, 0.01
  %v755 = vmul.f32 %v552, 0.01
  %v756 = vmul.f32 %v554, 0.01
  %v757 = vmul.f32 %v556, 0.01
  %v758 = vmul.f32 %v560, 0.01
  %v759 = vmul.f32 %v562, 0.01
  %v760 = vmul.f32 %v564, 0.01
  %v761 = vmul.f32 %v566, 0.01
  %v762 = vmul.f32 %v570, 0.01
  %v763 = vmul.f32 %v572, 0.01
  %v764 = vmul.f32 %v574, 0.01
  %v765 = vmul.f32 %v576, 0.01
  %v766 = vmul.f32 %v580, 0.01
  %v767 = vmul.f32 %v582, 0.01
  %v768 = vmul.f32 %v584, 0.01
  %v769 = vmul.f32 %v586, 0.01
  %v770 = vmul.f32 %v590, 0.01
  %v771 = vmul.f32 %v592, 0.01
  %v772 = vmul.f32 %v594, 0.01
  %v773 = vmul.f32 %v596, 0.01
  %v774 = vmul.f32 %v600, 0.01
  %v775 = vmul.f32 %v602, 0.01
  %v776 = vmul.f32 %v604, 0.01
  %v777 = vmul.f32 %v606, 0.01
  %v778 = vmul.f32 %v610, 0.01
  %v779 = vmul.f32 %v612, 0.01
  %v780 = vmul.f32 %v614, 0.01
  %v781 = vmul.f32 %v616, 0.01
  %v782 = vmul.f32 %v620, 0.01
  %v783 = vmul.f32 %v622, 0.01
  %v784 = vmul.f32 %v624, 0.01
  %v785 = vmul.f32 %v626, 0.01
  %v786 = vmul.f32 %v630, 0.01
  %v787 = vmul.f32 %v632, 0.01
  %v788 = vmul.f32 %v634, 0.01
  %v789 = vmul.f32 %v636, 0.01
  %v790 = vmul.f32 %v640, 0.01
  %v791 = vmul.f32 %v642, 0.01
  %v792 = vmul.f32 %v644, 0.01
  %v793 = vmul.f32 %v646, 0.01
  %v794 = vmul.f32 %v650, 0.01
  %v795 = vmul.f32 %v652, 0.01
  %v796 = vmul.f32 %v654, 0.01
  %v797 = vmul.f32 %v656, 0.01
  %v798 = vmul.f32 %v660, 0.01
  %v799 = vmul.f32 %v662, 0.01
  %v800 = vmul.f32 %v664, 0.01
  %v801 = vmul.f32 %v666, 0.01
  %v802 = vmul.f32 %v670, 0.01
  %v803 = vmul.f32 %v672, 0.01
  %v804 = vmul.f32 %v674, 0.01
  %v805 = vmul.f32 %v676, 0.01
  %v806 = vsel %vm678, %v520, %v742
  %v807 = vsel %vm679, %v522, %v743
  %v808 = vsel %vm680, %v524, %v744
  %v809 = vsel %vm681, %v526, %v745
  %v810 = vsel %vm682, %v530, %v746
  %v811 = vsel %vm683, %v532, %v747
  %v812 = vsel %vm684, %v534, %v748
  %v813 = vsel %vm685, %v536, %v749
  %v814 = vsel %vm686, %v540, %v750
  %v815 = vsel %vm687, %v542, %v751
  %v816 = vsel %vm688, %v544, %v752
  %v817 = vsel %vm689, %v546, %v753
  %v818 = vsel %vm690, %v550, %v754
  %v819 = vsel %vm691, %v552, %v755
  %v820 = vsel %vm692, %v554, %v756
  %v821 = vsel %vm693, %v556, %v757
  %v822 = vsel %vm694, %v560, %v758
  %v823 = vsel %vm695, %v562, %v759
  %v824 = vsel %vm696, %v564, %v760
  %v825 = vsel %vm697, %v566, %v761
  %v826 = vsel %vm698, %v570, %v762
  %v827 = vsel %vm699, %v572, %v763
  %v828 = vsel %vm700, %v574, %v764
  %v829 = vsel %vm701, %v576, %v765
  %v830 = vsel %vm702, %v580, %v766
  %v831 = vsel %vm703, %v582, %v767
  %v832 = vsel %vm704, %v584, %v768
  %v833 = vsel %vm705, %v586, %v769
  %v834 = vsel %vm706, %v590, %v770
  %v835 = vsel %vm707, %v592, %v771
  %v836 = vsel %vm708, %v594, %v772
  %v837 = vsel %vm709, %v596, %v773
  %v838 = vsel %vm710, %v600, %v774
  %v839 = vsel %vm711, %v602, %v775
  %v840 = vsel %vm712, %v604, %v776
  %v841 = vsel %vm713, %v606, %v777
  %v842 = vsel %vm714, %v610, %v778
  %v843 = vsel %vm715, %v612, %v779
  %v844 = vsel %vm716, %v614, %v780
  %v845 = vsel %vm717, %v616, %v781
  %v846 = vsel %vm718, %v620, %v782
  %v847 = vsel %vm719, %v622, %v783
  %v848 = vsel %vm720, %v624, %v784
  %v849 = vsel %vm721, %v626, %v785
  %v850 = vsel %vm722, %v630, %v786
  %v851 = vsel %vm723, %v632, %v787
  %v852 = vsel %vm724, %v634, %v788
  %v853 = vsel %vm725, %v636, %v789
  %v854 = vsel %vm726, %v640, %v790
  %v855 = vsel %vm727, %v642, %v791
  %v856 = vsel %vm728, %v644, %v792
  %v857 = vsel %vm729, %v646, %v793
  %v858 = vsel %vm730, %v650, %v794
  %v859 = vsel %vm731, %v652, %v795
  %v860 = vsel %vm732, %v654, %v796
  %v861 = vsel %vm733, %v656, %v797
  %v862 = vsel %vm734, %v660, %v798
  %v863 = vsel %vm735, %v662, %v799
  %v864 = vsel %vm736, %v664, %v800
  %v865 = vsel %vm737, %v666, %v801
  %v866 = vsel %vm738, %v670, %v802
  %v867 = vsel %vm739, %v672, %v803
  %v868 = vsel %vm740, %v674, %v804
  %v869 = vsel %vm741, %v676, %v805
  %v870 = vpack.c.bf16 %v808, %v806
  %v871 = vpack.c.bf16 %v809, %v807
  %v872 = vpack.c.bf16 %v812, %v810
  %v873 = vpack.c.bf16 %v813, %v811
  %v874 = vpack.c.bf16 %v816, %v814
  %v875 = vpack.c.bf16 %v817, %v815
  %v876 = vpack.c.bf16 %v820, %v818
  %v877 = vpack.c.bf16 %v821, %v819
  %v878 = vpack.c.bf16 %v824, %v822
  %v879 = vpack.c.bf16 %v825, %v823
  %v880 = vpack.c.bf16 %v828, %v826
  %v881 = vpack.c.bf16 %v829, %v827
  %v882 = vpack.c.bf16 %v832, %v830
  %v883 = vpack.c.bf16 %v833, %v831
  %v884 = vpack.c.bf16 %v836, %v834
  %v885 = vpack.c.bf16 %v837, %v835
  %v886 = vpack.c.bf16 %v840, %v838
  %v887 = vpack.c.bf16 %v841, %v839
  %v888 = vpack.c.bf16 %v844, %v842
  %v889 = vpack.c.bf16 %v845, %v843
  %v890 = vpack.c.bf16 %v848, %v846
  %v891 = vpack.c.bf16 %v849, %v847
  %v892 = vpack.c.bf16 %v852, %v850
  %v893 = vpack.c.bf16 %v853, %v851
  %v894 = vpack.c.bf16 %v856, %v854
  %v895 = vpack.c.bf16 %v857, %v855
  %v896 = vpack.c.bf16 %v860, %v858
  %v897 = vpack.c.bf16 %v861, %v859
  %v898 = vpack.c.bf16 %v864, %v862
  %v899 = vpack.c.bf16 %v865, %v863
  %v900 = vpack.c.bf16 %v868, %v866
  %v901 = vpack.c.bf16 %v869, %v867
  %v902 = vld [vmem:[%s4] sm:$0xff]
  %v903 = vld [vmem:[%s4 + $0x8] sm:$0xff]
  %v904 = vld [vmem:[%s4 + $0x10] sm:$0xff]
  %v905 = vld [vmem:[%s4 + $0x18] sm:$0xff]
  %v906 = vld [vmem:[%s4 + $0x20] sm:$0xff]
  %v907 = vld [vmem:[%s4 + $0x28] sm:$0xff]
  %v908 = vld [vmem:[%s4 + $0x30] sm:$0xff]
  %v909 = vld [vmem:[%s4 + $0x38] sm:$0xff]
  %v910 = vld [vmem:[%s4 + $0x40] sm:$0xff]
  %v911 = vld [vmem:[%s4 + $0x48] sm:$0xff]
  %v912 = vld [vmem:[%s4 + $0x50] sm:$0xff]
  %v913 = vld [vmem:[%s4 + $0x58] sm:$0xff]
  %v914 = vld [vmem:[%s4 + $0x60] sm:$0xff]
  %v915 = vld [vmem:[%s4 + $0x68] sm:$0xff]
  %v916 = vld [vmem:[%s4 + $0x70] sm:$0xff]
  %v917 = vld [vmem:[%s4 + $0x78] sm:$0xff]
  %v918 = vld [vmem:[%s4 + $0x80] sm:$0xff]
  %v919 = vld [vmem:[%s4 + $0x88] sm:$0xff]
  %v920 = vld [vmem:[%s4 + $0x90] sm:$0xff]
  %v921 = vld [vmem:[%s4 + $0x98] sm:$0xff]
  %v922 = vld [vmem:[%s4 + $0xa0] sm:$0xff]
  %v923 = vld [vmem:[%s4 + $0xa8] sm:$0xff]
  %v924 = vld [vmem:[%s4 + $0xb0] sm:$0xff]
  %v925 = vld [vmem:[%s4 + $0xb8] sm:$0xff]
  %v926 = vld [vmem:[%s4 + $0xc0] sm:$0xff]
  %v927 = vld [vmem:[%s4 + $0xc8] sm:$0xff]
  %v928 = vld [vmem:[%s4 + $0xd0] sm:$0xff]
  %v929 = vld [vmem:[%s4 + $0xd8] sm:$0xff]
  %v930 = vld [vmem:[%s4 + $0xe0] sm:$0xff]
  %v931 = vld [vmem:[%s4 + $0xe8] sm:$0xff]
  %v932 = vld [vmem:[%s4 + $0xf0] sm:$0xff]
  %v933 = vld [vmem:[%s4 + $0xf8] sm:$0xff]
  %v934 = vld [vmem:[%s5] sm:$0x3]
  %v936 = vlaneseq
  %v937 = vshrl.u32 %v936, 7
  %v938 = vsub.s32 0, %v937
  %v939 = vrot.slane %v934, %v938
  %v940 = vlaneseq
  %v941 = vshrl.u32 %v940, 7
  %v942 = vsub.s32 1, %v941
  %v943 = vrot.slane %v934, %v942
  %v978 = vunpack.c.l.b16 %v902
  %v979 = vunpack.c.h.b16 %v902
  %v980 = vunpack.c.l.b16 %v903
  %v981 = vunpack.c.h.b16 %v903
  %v982 = vunpack.c.l.b16 %v904
  %v983 = vunpack.c.h.b16 %v904
  %v984 = vunpack.c.l.b16 %v905
  %v985 = vunpack.c.h.b16 %v905
  %v986 = vunpack.c.l.b16 %v906
  %v987 = vunpack.c.h.b16 %v906
  %v988 = vunpack.c.l.b16 %v907
  %v989 = vunpack.c.h.b16 %v907
  %v990 = vunpack.c.l.b16 %v908
  %v991 = vunpack.c.h.b16 %v908
  %v992 = vunpack.c.l.b16 %v909
  %v993 = vunpack.c.h.b16 %v909
  %v994 = vunpack.c.l.b16 %v910
  %v995 = vunpack.c.h.b16 %v910
  %v996 = vunpack.c.l.b16 %v911
  %v997 = vunpack.c.h.b16 %v911
  %v998 = vunpack.c.l.b16 %v912
  %v999 = vunpack.c.h.b16 %v912
  %v1000 = vunpack.c.l.b16 %v913
  %v1001 = vunpack.c.h.b16 %v913
  %v1002 = vunpack.c.l.b16 %v914
  %v1003 = vunpack.c.h.b16 %v914
  %v1004 = vunpack.c.l.b16 %v915
  %v1005 = vunpack.c.h.b16 %v915
  %v1006 = vunpack.c.l.b16 %v916
  %v1007 = vunpack.c.h.b16 %v916
  %v1008 = vunpack.c.l.b16 %v917
  %v1009 = vunpack.c.h.b16 %v917
  %v1010 = vunpack.c.l.b16 %v918
  %v1011 = vunpack.c.h.b16 %v918
  %v1012 = vunpack.c.l.b16 %v919
  %v1013 = vunpack.c.h.b16 %v919
  %v1014 = vunpack.c.l.b16 %v920
  %v1015 = vunpack.c.h.b16 %v920
  %v1016 = vunpack.c.l.b16 %v921
  %v1017 = vunpack.c.h.b16 %v921
  %v1018 = vunpack.c.l.b16 %v922
  %v1019 = vunpack.c.h.b16 %v922
  %v1020 = vunpack.c.l.b16 %v923
  %v1021 = vunpack.c.h.b16 %v923
  %v1022 = vunpack.c.l.b16 %v924
  %v1023 = vunpack.c.h.b16 %v924
  %v1024 = vunpack.c.l.b16 %v925
  %v1025 = vunpack.c.h.b16 %v925
  %v1026 = vunpack.c.l.b16 %v926
  %v1027 = vunpack.c.h.b16 %v926
  %v1028 = vunpack.c.l.b16 %v927
  %v1029 = vunpack.c.h.b16 %v927
  %v1030 = vunpack.c.l.b16 %v928
  %v1031 = vunpack.c.h.b16 %v928
  %v1032 = vunpack.c.l.b16 %v929
  %v1033 = vunpack.c.h.b16 %v929
  %v1034 = vunpack.c.l.b16 %v930
  %v1035 = vunpack.c.h.b16 %v930
  %v1036 = vunpack.c.l.b16 %v931
  %v1037 = vunpack.c.h.b16 %v931
  %v1038 = vunpack.c.l.b16 %v932
  %v1039 = vunpack.c.h.b16 %v932
  %v1040 = vunpack.c.l.b16 %v933
  %v1041 = vunpack.c.h.b16 %v933
  %v1042 = vpack.c.b16 %v980, %v978
  %v1043 = vpack.c.b16 %v981, %v979
  %v1044 = vpack.c.b16 %v984, %v982
  %v1045 = vpack.c.b16 %v985, %v983
  %v1046 = vpack.c.b16 %v988, %v986
  %v1047 = vpack.c.b16 %v989, %v987
  %v1048 = vpack.c.b16 %v992, %v990
  %v1049 = vpack.c.b16 %v993, %v991
  %v1050 = vpack.c.b16 %v996, %v994
  %v1051 = vpack.c.b16 %v997, %v995
  %v1052 = vpack.c.b16 %v1000, %v998
  %v1053 = vpack.c.b16 %v1001, %v999
  %v1054 = vpack.c.b16 %v1004, %v1002
  %v1055 = vpack.c.b16 %v1005, %v1003
  %v1056 = vpack.c.b16 %v1008, %v1006
  %v1057 = vpack.c.b16 %v1009, %v1007
  %v1058 = vpack.c.b16 %v1012, %v1010
  %v1059 = vpack.c.b16 %v1013, %v1011
  %v1060 = vpack.c.b16 %v1016, %v1014
  %v1061 = vpack.c.b16 %v1017, %v1015
  %v1062 = vpack.c.b16 %v1020, %v1018
  %v1063 = vpack.c.b16 %v1021, %v1019
  %v1064 = vpack.c.b16 %v1024, %v1022
  %v1065 = vpack.c.b16 %v1025, %v1023
  %v1066 = vpack.c.b16 %v1028, %v1026
  %v1067 = vpack.c.b16 %v1029, %v1027
  %v1068 = vpack.c.b16 %v1032, %v1030
  %v1069 = vpack.c.b16 %v1033, %v1031
  %v1070 = vpack.c.b16 %v1036, %v1034
  %v1071 = vpack.c.b16 %v1037, %v1035
  %v1072 = vpack.c.b16 %v1040, %v1038
  %v1073 = vpack.c.b16 %v1041, %v1039
  %1106 = vmatprep.subr.bf16.mxu0 %v1057
  %1107 = vmatpush1.bf16.msra.mxu0 %v1056
  %1108 = vmatprep.subr.bf16.mxu0 %v1055
  %1109 = vmatpush1.bf16.msra.mxu0 %v1054
  %1110 = vmatprep.subr.bf16.mxu0 %v1053
  %1111 = vmatpush1.bf16.msra.mxu0 %v1052
  %1112 = vmatprep.subr.bf16.mxu0 %v1051
  %1113 = vmatpush1.bf16.msra.mxu0 %v1050
  %1114 = vmatprep.subr.bf16.mxu0 %v1049
  %1115 = vmatpush1.bf16.msra.mxu0 %v1048
  %1116 = vmatprep.subr.bf16.mxu0 %v1047
  %1117 = vmatpush1.bf16.msra.mxu0 %v1046
  %1118 = vmatprep.subr.bf16.mxu0 %v1045
  %1119 = vmatpush1.bf16.msra.mxu0 %v1044
  %1120 = vmatprep.subr.bf16.mxu0 %v1043
  %1121 = vmatpush1.bf16.msra.mxu0 %v1042
  %1122 = vmatprep.subr.bf16.mxu0 %v1073
  %1123 = vmatpush2.bf16.msra.mxu0 %v1072
  %1124 = vmatprep.subr.bf16.mxu0 %v1071
  %1125 = vmatpush2.bf16.msra.mxu0 %v1070
  %1126 = vmatprep.subr.bf16.mxu0 %v1069
  %1127 = vmatpush2.bf16.msra.mxu0 %v1068
  %1128 = vmatprep.subr.bf16.mxu0 %v1067
  %1129 = vmatpush2.bf16.msra.mxu0 %v1066
  %1130 = vmatprep.subr.bf16.mxu0 %v1065
  %1131 = vmatpush2.bf16.msra.mxu0 %v1064
  %1132 = vmatprep.subr.bf16.mxu0 %v1063
  %1133 = vmatpush2.bf16.msra.mxu0 %v1062
  %1134 = vmatprep.subr.bf16.mxu0 %v1061
  %1135 = vmatpush2.bf16.msra.mxu0 %v1060
  %1136 = vmatprep.subr.bf16.mxu0 %v1059
  %1137 = vmatpush2.bf16.msra.mxu0 %v1058
  %1138 = vmatprep.mubr.bf16.mxu0 %v871
  %1139 = vmatmul.mubr.bf16.gmra.mxu0 %v870
  %v1140 = vpop.f32.mrf.mxu0
  %v1141 = vadd.f32 %v939, %v1140
  %v1142 = vpop.f32.mrf.mxu0
  %v1143 = vadd.f32 %v943, %v1142
  %v1144 = vpop.f32.mrf.mxu0
  %v1145 = vadd.f32 %v939, %v1144
  %v1146 = vpop.f32.mrf.mxu0
  %v1147 = vadd.f32 %v943, %v1146
  %1148 = vmatprep.mubr.bf16.mxu0 %v873
  %1149 = vmatmul.mubr.bf16.gmra.mxu0 %v872
  %v1150 = vpop.f32.mrf.mxu0
  %v1151 = vadd.f32 %v939, %v1150
  %v1152 = vpop.f32.mrf.mxu0
  %v1153 = vadd.f32 %v943, %v1152
  %v1154 = vpop.f32.mrf.mxu0
  %v1155 = vadd.f32 %v939, %v1154
  %v1156 = vpop.f32.mrf.mxu0
  %v1157 = vadd.f32 %v943, %v1156
  %1158 = vmatprep.mubr.bf16.mxu0 %v875
  %1159 = vmatmul.mubr.bf16.gmra.mxu0 %v874
  %v1160 = vpop.f32.mrf.mxu0
  %v1161 = vadd.f32 %v939, %v1160
  %v1162 = vpop.f32.mrf.mxu0
  %v1163 = vadd.f32 %v943, %v1162
  %v1164 = vpop.f32.mrf.mxu0
  %v1165 = vadd.f32 %v939, %v1164
  %v1166 = vpop.f32.mrf.mxu0
  %v1167 = vadd.f32 %v943, %v1166
  %1168 = vmatprep.mubr.bf16.mxu0 %v877
  %1169 = vmatmul.mubr.bf16.gmra.mxu0 %v876
  %v1170 = vpop.f32.mrf.mxu0
  %v1171 = vadd.f32 %v939, %v1170
  %v1172 = vpop.f32.mrf.mxu0
  %v1173 = vadd.f32 %v943, %v1172
  %v1174 = vpop.f32.mrf.mxu0
  %v1175 = vadd.f32 %v939, %v1174
  %v1176 = vpop.f32.mrf.mxu0
  %v1177 = vadd.f32 %v943, %v1176
  %1178 = vmatprep.mubr.bf16.mxu0 %v879
  %1179 = vmatmul.mubr.bf16.gmra.mxu0 %v878
  %v1180 = vpop.f32.mrf.mxu0
  %v1181 = vadd.f32 %v939, %v1180
  %v1182 = vpop.f32.mrf.mxu0
  %v1183 = vadd.f32 %v943, %v1182
  %v1184 = vpop.f32.mrf.mxu0
  %v1185 = vadd.f32 %v939, %v1184
  %v1186 = vpop.f32.mrf.mxu0
  %v1187 = vadd.f32 %v943, %v1186
  %1188 = vmatprep.mubr.bf16.mxu0 %v881
  %1189 = vmatmul.mubr.bf16.gmra.mxu0 %v880
  %v1190 = vpop.f32.mrf.mxu0
  %v1191 = vadd.f32 %v939, %v1190
  %v1192 = vpop.f32.mrf.mxu0
  %v1193 = vadd.f32 %v943, %v1192
  %v1194 = vpop.f32.mrf.mxu0
  %v1195 = vadd.f32 %v939, %v1194
  %v1196 = vpop.f32.mrf.mxu0
  %v1197 = vadd.f32 %v943, %v1196
  %1198 = vmatprep.mubr.bf16.mxu0 %v883
  %1199 = vmatmul.mubr.bf16.gmra.mxu0 %v882
  %v1200 = vpop.f32.mrf.mxu0
  %v1201 = vadd.f32 %v939, %v1200
  %v1202 = vpop.f32.mrf.mxu0
  %v1203 = vadd.f32 %v943, %v1202
  %v1204 = vpop.f32.mrf.mxu0
  %v1205 = vadd.f32 %v939, %v1204
  %v1206 = vpop.f32.mrf.mxu0
  %v1207 = vadd.f32 %v943, %v1206
  %1208 = vmatprep.mubr.bf16.mxu0 %v885
  %1209 = vmatmul.mubr.bf16.gmra.mxu0 %v884
  %v1210 = vpop.f32.mrf.mxu0
  %v1211 = vadd.f32 %v939, %v1210
  %v1212 = vpop.f32.mrf.mxu0
  %v1213 = vadd.f32 %v943, %v1212
  %v1214 = vpop.f32.mrf.mxu0
  %v1215 = vadd.f32 %v939, %v1214
  %v1216 = vpop.f32.mrf.mxu0
  %v1217 = vadd.f32 %v943, %v1216
  %1218 = vmatprep.mubr.bf16.mxu0 %v887
  %1219 = vmatmul.mubr.bf16.gmra.mxu0 %v886
  %v1220 = vpop.f32.mrf.mxu0
  %v1221 = vadd.f32 %v939, %v1220
  %v1222 = vpop.f32.mrf.mxu0
  %v1223 = vadd.f32 %v943, %v1222
  %v1224 = vpop.f32.mrf.mxu0
  %v1225 = vadd.f32 %v939, %v1224
  %v1226 = vpop.f32.mrf.mxu0
  %v1227 = vadd.f32 %v943, %v1226
  %1228 = vmatprep.mubr.bf16.mxu0 %v889
  %1229 = vmatmul.mubr.bf16.gmra.mxu0 %v888
  %v1230 = vpop.f32.mrf.mxu0
  %v1231 = vadd.f32 %v939, %v1230
  %v1232 = vpop.f32.mrf.mxu0
  %v1233 = vadd.f32 %v943, %v1232
  %v1234 = vpop.f32.mrf.mxu0
  %v1235 = vadd.f32 %v939, %v1234
  %v1236 = vpop.f32.mrf.mxu0
  %v1237 = vadd.f32 %v943, %v1236
  %1238 = vmatprep.mubr.bf16.mxu0 %v891
  %1239 = vmatmul.mubr.bf16.gmra.mxu0 %v890
  %v1240 = vpop.f32.mrf.mxu0
  %v1241 = vadd.f32 %v939, %v1240
  %v1242 = vpop.f32.mrf.mxu0
  %v1243 = vadd.f32 %v943, %v1242
  %v1244 = vpop.f32.mrf.mxu0
  %v1245 = vadd.f32 %v939, %v1244
  %v1246 = vpop.f32.mrf.mxu0
  %v1247 = vadd.f32 %v943, %v1246
  %1248 = vmatprep.mubr.bf16.mxu0 %v893
  %1249 = vmatmul.mubr.bf16.gmra.mxu0 %v892
  %v1250 = vpop.f32.mrf.mxu0
  %v1251 = vadd.f32 %v939, %v1250
  %v1252 = vpop.f32.mrf.mxu0
  %v1253 = vadd.f32 %v943, %v1252
  %v1254 = vpop.f32.mrf.mxu0
  %v1255 = vadd.f32 %v939, %v1254
  %v1256 = vpop.f32.mrf.mxu0
  %v1257 = vadd.f32 %v943, %v1256
  %1258 = vmatprep.mubr.bf16.mxu0 %v895
  %1259 = vmatmul.mubr.bf16.gmra.mxu0 %v894
  %v1260 = vpop.f32.mrf.mxu0
  %v1261 = vadd.f32 %v939, %v1260
  %v1262 = vpop.f32.mrf.mxu0
  %v1263 = vadd.f32 %v943, %v1262
  %v1264 = vpop.f32.mrf.mxu0
  %v1265 = vadd.f32 %v939, %v1264
  %v1266 = vpop.f32.mrf.mxu0
  %v1267 = vadd.f32 %v943, %v1266
  %1268 = vmatprep.mubr.bf16.mxu0 %v897
  %1269 = vmatmul.mubr.bf16.gmra.mxu0 %v896
  %v1270 = vpop.f32.mrf.mxu0
  %v1271 = vadd.f32 %v939, %v1270
  %v1272 = vpop.f32.mrf.mxu0
  %v1273 = vadd.f32 %v943, %v1272
  %v1274 = vpop.f32.mrf.mxu0
  %v1275 = vadd.f32 %v939, %v1274
  %v1276 = vpop.f32.mrf.mxu0
  %v1277 = vadd.f32 %v943, %v1276
  %1278 = vmatprep.mubr.bf16.mxu0 %v899
  %1279 = vmatmul.mubr.bf16.gmra.mxu0 %v898
  %v1280 = vpop.f32.mrf.mxu0
  %v1281 = vadd.f32 %v939, %v1280
  %v1282 = vpop.f32.mrf.mxu0
  %v1283 = vadd.f32 %v943, %v1282
  %v1284 = vpop.f32.mrf.mxu0
  %v1285 = vadd.f32 %v939, %v1284
  %v1286 = vpop.f32.mrf.mxu0
  %v1287 = vadd.f32 %v943, %v1286
  %1288 = vmatprep.mubr.bf16.mxu0 %v901
  %1289 = vmatmul.mubr.bf16.gmra.mxu0 %v900
  %v1290 = vpop.f32.mrf.mxu0
  %v1291 = vadd.f32 %v939, %v1290
  %v1292 = vpop.f32.mrf.mxu0
  %v1293 = vadd.f32 %v943, %v1292
  %v1294 = vpop.f32.mrf.mxu0
  %v1295 = vadd.f32 %v939, %v1294
  %v1296 = vpop.f32.mrf.mxu0
  %v1297 = vadd.f32 %v943, %v1296
  %1298 = vdwg.mxu0
  %1331 = vrot.lane.b32.xlu0 %v251, 127
  %v1332 = vpop.permute.xlu0 %1331
  %1333 = vrot.lane.b32.xlu0 %v254, 127
  %v1334 = vpop.permute.xlu0 %1333
  %1335 = vrot.lane.b32.xlu0 %v259, 127
  %v1336 = vpop.permute.xlu0 %1335
  %1337 = vrot.lane.b32.xlu0 %v262, 127
  %v1338 = vpop.permute.xlu0 %1337
  %1339 = vrot.lane.b32.xlu0 %v267, 127
  %v1340 = vpop.permute.xlu0 %1339
  %1341 = vrot.lane.b32.xlu0 %v270, 127
  %v1342 = vpop.permute.xlu0 %1341
  %1343 = vrot.lane.b32.xlu0 %v275, 127
  %v1344 = vpop.permute.xlu0 %1343
  %1345 = vrot.lane.b32.xlu0 %v278, 127
  %v1346 = vpop.permute.xlu0 %1345
  %1347 = vrot.lane.b32.xlu0 %v283, 127
  %v1348 = vpop.permute.xlu0 %1347
  %1349 = vrot.lane.b32.xlu0 %v286, 127
  %v1350 = vpop.permute.xlu0 %1349
  %1351 = vrot.lane.b32.xlu0 %v291, 127
  %v1352 = vpop.permute.xlu0 %1351
  %1353 = vrot.lane.b32.xlu0 %v294, 127
  %v1354 = vpop.permute.xlu0 %1353
  %1355 = vrot.lane.b32.xlu0 %v299, 127
  %v1356 = vpop.permute.xlu0 %1355
  %1357 = vrot.lane.b32.xlu0 %v302, 127
  %v1358 = vpop.permute.xlu0 %1357
  %1359 = vrot.lane.b32.xlu0 %v307, 127
  %v1360 = vpop.permute.xlu0 %1359
  %1361 = vrot.lane.b32.xlu0 %v310, 127
  %v1362 = vpop.permute.xlu0 %1361
  %1363 = vrot.lane.b32.xlu0 %v315, 127
  %v1364 = vpop.permute.xlu0 %1363
  %1365 = vrot.lane.b32.xlu0 %v318, 127
  %v1366 = vpop.permute.xlu0 %1365
  %1367 = vrot.lane.b32.xlu0 %v323, 127
  %v1368 = vpop.permute.xlu0 %1367
  %1369 = vrot.lane.b32.xlu0 %v326, 127
  %v1370 = vpop.permute.xlu0 %1369
  %1371 = vrot.lane.b32.xlu0 %v331, 127
  %v1372 = vpop.permute.xlu0 %1371
  %1373 = vrot.lane.b32.xlu0 %v334, 127
  %v1374 = vpop.permute.xlu0 %1373
  %1375 = vrot.lane.b32.xlu0 %v339, 127
  %v1376 = vpop.permute.xlu0 %1375
  %1377 = vrot.lane.b32.xlu0 %v342, 127
  %v1378 = vpop.permute.xlu0 %1377
  %1379 = vrot.lane.b32.xlu0 %v347, 127
  %v1380 = vpop.permute.xlu0 %1379
  %1381 = vrot.lane.b32.xlu0 %v350, 127
  %v1382 = vpop.permute.xlu0 %1381
  %1383 = vrot.lane.b32.xlu0 %v355, 127
  %v1384 = vpop.permute.xlu0 %1383
  %1385 = vrot.lane.b32.xlu0 %v358, 127
  %v1386 = vpop.permute.xlu0 %1385
  %1387 = vrot.lane.b32.xlu0 %v363, 127
  %v1388 = vpop.permute.xlu0 %1387
  %1389 = vrot.lane.b32.xlu0 %v366, 127
  %v1390 = vpop.permute.xlu0 %1389
  %1391 = vrot.lane.b32.xlu0 %v371, 127
  %v1392 = vpop.permute.xlu0 %1391
  %1393 = vrot.lane.b32.xlu0 %v374, 127
  %v1394 = vpop.permute.xlu0 %1393
  %vm1427 = vcmp.ge.f32.partialorder %v251, %v1332
  %vm1428 = vcmp.ge.f32.partialorder %v254, %v1334
  %vm1429 = vcmp.ge.f32.partialorder %v259, %v1336
  %vm1430 = vcmp.ge.f32.partialorder %v262, %v1338
  %vm1431 = vcmp.ge.f32.partialorder %v267, %v1340
  %vm1432 = vcmp.ge.f32.partialorder %v270, %v1342
  %vm1433 = vcmp.ge.f32.partialorder %v275, %v1344
  %vm1434 = vcmp.ge.f32.partialorder %v278, %v1346
  %vm1435 = vcmp.ge.f32.partialorder %v283, %v1348
  %vm1436 = vcmp.ge.f32.partialorder %v286, %v1350
  %vm1437 = vcmp.ge.f32.partialorder %v291, %v1352
  %vm1438 = vcmp.ge.f32.partialorder %v294, %v1354
  %vm1439 = vcmp.ge.f32.partialorder %v299, %v1356
  %vm1440 = vcmp.ge.f32.partialorder %v302, %v1358
  %vm1441 = vcmp.ge.f32.partialorder %v307, %v1360
  %vm1442 = vcmp.ge.f32.partialorder %v310, %v1362
  %vm1443 = vcmp.ge.f32.partialorder %v315, %v1364
  %vm1444 = vcmp.ge.f32.partialorder %v318, %v1366
  %vm1445 = vcmp.ge.f32.partialorder %v323, %v1368
  %vm1446 = vcmp.ge.f32.partialorder %v326, %v1370
  %vm1447 = vcmp.ge.f32.partialorder %v331, %v1372
  %vm1448 = vcmp.ge.f32.partialorder %v334, %v1374
  %vm1449 = vcmp.ge.f32.partialorder %v339, %v1376
  %vm1450 = vcmp.ge.f32.partialorder %v342, %v1378
  %vm1451 = vcmp.ge.f32.partialorder %v347, %v1380
  %vm1452 = vcmp.ge.f32.partialorder %v350, %v1382
  %vm1453 = vcmp.ge.f32.partialorder %v355, %v1384
  %vm1454 = vcmp.ge.f32.partialorder %v358, %v1386
  %vm1455 = vcmp.ge.f32.partialorder %v363, %v1388
  %vm1456 = vcmp.ge.f32.partialorder %v366, %v1390
  %vm1457 = vcmp.ge.f32.partialorder %v371, %v1392
  %vm1458 = vcmp.ge.f32.partialorder %v374, %v1394
  %v1459 = vsel %vm1427, 1, 0
  %v1460 = vsel %vm1428, 1, 0
  %v1461 = vsel %vm1429, 1, 0
  %v1462 = vsel %vm1430, 1, 0
  %v1463 = vsel %vm1431, 1, 0
  %v1464 = vsel %vm1432, 1, 0
  %v1465 = vsel %vm1433, 1, 0
  %v1466 = vsel %vm1434, 1, 0
  %v1467 = vsel %vm1435, 1, 0
  %v1468 = vsel %vm1436, 1, 0
  %v1469 = vsel %vm1437, 1, 0
  %v1470 = vsel %vm1438, 1, 0
  %v1471 = vsel %vm1439, 1, 0
  %v1472 = vsel %vm1440, 1, 0
  %v1473 = vsel %vm1441, 1, 0
  %v1474 = vsel %vm1442, 1, 0
  %v1475 = vsel %vm1443, 1, 0
  %v1476 = vsel %vm1444, 1, 0
  %v1477 = vsel %vm1445, 1, 0
  %v1478 = vsel %vm1446, 1, 0
  %v1479 = vsel %vm1447, 1, 0
  %v1480 = vsel %vm1448, 1, 0
  %v1481 = vsel %vm1449, 1, 0
  %v1482 = vsel %vm1450, 1, 0
  %v1483 = vsel %vm1451, 1, 0
  %v1484 = vsel %vm1452, 1, 0
  %v1485 = vsel %vm1453, 1, 0
  %v1486 = vsel %vm1454, 1, 0
  %v1487 = vsel %vm1455, 1, 0
  %v1488 = vsel %vm1456, 1, 0
  %v1489 = vsel %vm1457, 1, 0
  %v1490 = vsel %vm1458, 1, 0
  %1491 = vset.pattern.permute.xlu0 0
  %1492 = vperm.xlu0 %1491, %v1459
  %v1493 = vpop.permute.xlu0 %1492
  %1494 = vset.pattern.permute.xlu0 0
  %1495 = vperm.xlu0 %1494, %v1460
  %v1496 = vpop.permute.xlu0 %1495
  %1497 = vset.pattern.permute.xlu0 0
  %1498 = vperm.xlu0 %1497, %v1461
  %v1499 = vpop.permute.xlu0 %1498
  %1500 = vset.pattern.permute.xlu0 0
  %1501 = vperm.xlu0 %1500, %v1462
  %v1502 = vpop.permute.xlu0 %1501
  %1503 = vset.pattern.permute.xlu0 0
  %1504 = vperm.xlu0 %1503, %v1463
  %v1505 = vpop.permute.xlu0 %1504
  %1506 = vset.pattern.permute.xlu0 0
  %1507 = vperm.xlu0 %1506, %v1464
  %v1508 = vpop.permute.xlu0 %1507
  %1509 = vset.pattern.permute.xlu0 0
  %1510 = vperm.xlu0 %1509, %v1465
  %v1511 = vpop.permute.xlu0 %1510
  %1512 = vset.pattern.permute.xlu0 0
  %1513 = vperm.xlu0 %1512, %v1466
  %v1514 = vpop.permute.xlu0 %1513
  %1515 = vset.pattern.permute.xlu0 0
  %1516 = vperm.xlu0 %1515, %v1467
  %v1517 = vpop.permute.xlu0 %1516
  %1518 = vset.pattern.permute.xlu0 0
  %1519 = vperm.xlu0 %1518, %v1468
  %v1520 = vpop.permute.xlu0 %1519
  %1521 = vset.pattern.permute.xlu0 0
  %1522 = vperm.xlu0 %1521, %v1469
  %v1523 = vpop.permute.xlu0 %1522
  %1524 = vset.pattern.permute.xlu0 0
  %1525 = vperm.xlu0 %1524, %v1470
  %v1526 = vpop.permute.xlu0 %1525
  %1527 = vset.pattern.permute.xlu0 0
  %1528 = vperm.xlu0 %1527, %v1471
  %v1529 = vpop.permute.xlu0 %1528
  %1530 = vset.pattern.permute.xlu0 0
  %1531 = vperm.xlu0 %1530, %v1472
  %v1532 = vpop.permute.xlu0 %1531
  %1533 = vset.pattern.permute.xlu0 0
  %1534 = vperm.xlu0 %1533, %v1473
  %v1535 = vpop.permute.xlu0 %1534
  %1536 = vset.pattern.permute.xlu0 0
  %1537 = vperm.xlu0 %1536, %v1474
  %v1538 = vpop.permute.xlu0 %1537
  %1539 = vset.pattern.permute.xlu0 0
  %1540 = vperm.xlu0 %1539, %v1475
  %v1541 = vpop.permute.xlu0 %1540
  %1542 = vset.pattern.permute.xlu0 0
  %1543 = vperm.xlu0 %1542, %v1476
  %v1544 = vpop.permute.xlu0 %1543
  %1545 = vset.pattern.permute.xlu0 0
  %1546 = vperm.xlu0 %1545, %v1477
  %v1547 = vpop.permute.xlu0 %1546
  %1548 = vset.pattern.permute.xlu0 0
  %1549 = vperm.xlu0 %1548, %v1478
  %v1550 = vpop.permute.xlu0 %1549
  %1551 = vset.pattern.permute.xlu0 0
  %1552 = vperm.xlu0 %1551, %v1479
  %v1553 = vpop.permute.xlu0 %1552
  %1554 = vset.pattern.permute.xlu0 0
  %1555 = vperm.xlu0 %1554, %v1480
  %v1556 = vpop.permute.xlu0 %1555
  %1557 = vset.pattern.permute.xlu0 0
  %1558 = vperm.xlu0 %1557, %v1481
  %v1559 = vpop.permute.xlu0 %1558
  %1560 = vset.pattern.permute.xlu0 0
  %1561 = vperm.xlu0 %1560, %v1482
  %v1562 = vpop.permute.xlu0 %1561
  %1563 = vset.pattern.permute.xlu0 0
  %1564 = vperm.xlu0 %1563, %v1483
  %v1565 = vpop.permute.xlu0 %1564
  %1566 = vset.pattern.permute.xlu0 0
  %1567 = vperm.xlu0 %1566, %v1484
  %v1568 = vpop.permute.xlu0 %1567
  %1569 = vset.pattern.permute.xlu0 0
  %1570 = vperm.xlu0 %1569, %v1485
  %v1571 = vpop.permute.xlu0 %1570
  %1572 = vset.pattern.permute.xlu0 0
  %1573 = vperm.xlu0 %1572, %v1486
  %v1574 = vpop.permute.xlu0 %1573
  %1575 = vset.pattern.permute.xlu0 0
  %1576 = vperm.xlu0 %1575, %v1487
  %v1577 = vpop.permute.xlu0 %1576
  %1578 = vset.pattern.permute.xlu0 0
  %1579 = vperm.xlu0 %1578, %v1488
  %v1580 = vpop.permute.xlu0 %1579
  %1581 = vset.pattern.permute.xlu0 0
  %1582 = vperm.xlu0 %1581, %v1489
  %v1583 = vpop.permute.xlu0 %1582
  %1584 = vset.pattern.permute.xlu0 0
  %1585 = vperm.xlu0 %1584, %v1490
  %v1586 = vpop.permute.xlu0 %1585
  %vm1587 = vcmp.eq.s32.totalorder %v1493, 1
  %vm1588 = vcmp.eq.s32.totalorder %v1496, 1
  %vm1589 = vcmp.eq.s32.totalorder %v1499, 1
  %vm1590 = vcmp.eq.s32.totalorder %v1502, 1
  %vm1591 = vcmp.eq.s32.totalorder %v1505, 1
  %vm1592 = vcmp.eq.s32.totalorder %v1508, 1
  %vm1593 = vcmp.eq.s32.totalorder %v1511, 1
  %vm1594 = vcmp.eq.s32.totalorder %v1514, 1
  %vm1595 = vcmp.eq.s32.totalorder %v1517, 1
  %vm1596 = vcmp.eq.s32.totalorder %v1520, 1
  %vm1597 = vcmp.eq.s32.totalorder %v1523, 1
  %vm1598 = vcmp.eq.s32.totalorder %v1526, 1
  %vm1599 = vcmp.eq.s32.totalorder %v1529, 1
  %vm1600 = vcmp.eq.s32.totalorder %v1532, 1
  %vm1601 = vcmp.eq.s32.totalorder %v1535, 1
  %vm1602 = vcmp.eq.s32.totalorder %v1538, 1
  %vm1603 = vcmp.eq.s32.totalorder %v1541, 1
  %vm1604 = vcmp.eq.s32.totalorder %v1544, 1
  %vm1605 = vcmp.eq.s32.totalorder %v1547, 1
  %vm1606 = vcmp.eq.s32.totalorder %v1550, 1
  %vm1607 = vcmp.eq.s32.totalorder %v1553, 1
  %vm1608 = vcmp.eq.s32.totalorder %v1556, 1
  %vm1609 = vcmp.eq.s32.totalorder %v1559, 1
  %vm1610 = vcmp.eq.s32.totalorder %v1562, 1
  %vm1611 = vcmp.eq.s32.totalorder %v1565, 1
  %vm1612 = vcmp.eq.s32.totalorder %v1568, 1
  %vm1613 = vcmp.eq.s32.totalorder %v1571, 1
  %vm1614 = vcmp.eq.s32.totalorder %v1574, 1
  %vm1615 = vcmp.eq.s32.totalorder %v1577, 1
  %vm1616 = vcmp.eq.s32.totalorder %v1580, 1
  %vm1617 = vcmp.eq.s32.totalorder %v1583, 1
  %vm1618 = vcmp.eq.s32.totalorder %v1586, 1
  %v1619 = vsel %vm1587, %v1141, %v1143
  %v1620 = vsel %vm1588, %v1145, %v1147
  %v1621 = vsel %vm1589, %v1151, %v1153
  %v1622 = vsel %vm1590, %v1155, %v1157
  %v1623 = vsel %vm1591, %v1161, %v1163
  %v1624 = vsel %vm1592, %v1165, %v1167
  %v1625 = vsel %vm1593, %v1171, %v1173
  %v1626 = vsel %vm1594, %v1175, %v1177
  %v1627 = vsel %vm1595, %v1181, %v1183
  %v1628 = vsel %vm1596, %v1185, %v1187
  %v1629 = vsel %vm1597, %v1191, %v1193
  %v1630 = vsel %vm1598, %v1195, %v1197
  %v1631 = vsel %vm1599, %v1201, %v1203
  %v1632 = vsel %vm1600, %v1205, %v1207
  %v1633 = vsel %vm1601, %v1211, %v1213
  %v1634 = vsel %vm1602, %v1215, %v1217
  %v1635 = vsel %vm1603, %v1221, %v1223
  %v1636 = vsel %vm1604, %v1225, %v1227
  %v1637 = vsel %vm1605, %v1231, %v1233
  %v1638 = vsel %vm1606, %v1235, %v1237
  %v1639 = vsel %vm1607, %v1241, %v1243
  %v1640 = vsel %vm1608, %v1245, %v1247
  %v1641 = vsel %vm1609, %v1251, %v1253
  %v1642 = vsel %vm1610, %v1255, %v1257
  %v1643 = vsel %vm1611, %v1261, %v1263
  %v1644 = vsel %vm1612, %v1265, %v1267
  %v1645 = vsel %vm1613, %v1271, %v1273
  %v1646 = vsel %vm1614, %v1275, %v1277
  %v1647 = vsel %vm1615, %v1281, %v1283
  %v1648 = vsel %vm1616, %v1285, %v1287
  %v1649 = vsel %vm1617, %v1291, %v1293
  %v1650 = vsel %vm1618, %v1295, %v1297
  %1651 = vst [vmem:[%s6] sm:$0xff] %v1619
  %1652 = vst [vmem:[%s6 + $0x8] sm:$0xff] %v1620
  %1653 = vst [vmem:[%s6 + $0x10] sm:$0xff] %v1621
  %1654 = vst [vmem:[%s6 + $0x18] sm:$0xff] %v1622
  %1655 = vst [vmem:[%s6 + $0x20] sm:$0xff] %v1623
  %1656 = vst [vmem:[%s6 + $0x28] sm:$0xff] %v1624
  %1657 = vst [vmem:[%s6 + $0x30] sm:$0xff] %v1625
  %1658 = vst [vmem:[%s6 + $0x38] sm:$0xff] %v1626
  %1659 = vst [vmem:[%s6 + $0x40] sm:$0xff] %v1627
  %1660 = vst [vmem:[%s6 + $0x48] sm:$0xff] %v1628
  %1661 = vst [vmem:[%s6 + $0x50] sm:$0xff] %v1629
  %1662 = vst [vmem:[%s6 + $0x58] sm:$0xff] %v1630
  %1663 = vst [vmem:[%s6 + $0x60] sm:$0xff] %v1631
  %1664 = vst [vmem:[%s6 + $0x68] sm:$0xff] %v1632
  %1665 = vst [vmem:[%s6 + $0x70] sm:$0xff] %v1633
  %1666 = vst [vmem:[%s6 + $0x78] sm:$0xff] %v1634
  %1667 = vst [vmem:[%s6 + $0x80] sm:$0xff] %v1635
  %1668 = vst [vmem:[%s6 + $0x88] sm:$0xff] %v1636
  %1669 = vst [vmem:[%s6 + $0x90] sm:$0xff] %v1637
  %1670 = vst [vmem:[%s6 + $0x98] sm:$0xff] %v1638
  %1671 = vst [vmem:[%s6 + $0xa0] sm:$0xff] %v1639
  %1672 = vst [vmem:[%s6 + $0xa8] sm:$0xff] %v1640
  %1673 = vst [vmem:[%s6 + $0xb0] sm:$0xff] %v1641
  %1674 = vst [vmem:[%s6 + $0xb8] sm:$0xff] %v1642
  %1675 = vst [vmem:[%s6 + $0xc0] sm:$0xff] %v1643
  %1676 = vst [vmem:[%s6 + $0xc8] sm:$0xff] %v1644
  %1677 = vst [vmem:[%s6 + $0xd0] sm:$0xff] %v1645
  %1678 = vst [vmem:[%s6 + $0xd8] sm:$0xff] %v1646
  %1679 = vst [vmem:[%s6 + $0xe0] sm:$0xff] %v1647
  %1680 = vst [vmem:[%s6 + $0xe8] sm:$0xff] %v1648
  %1681 = vst [vmem:[%s6 + $0xf0] sm:$0xff] %v1649
  %1682 = vst [vmem:[%s6 + $0xf8] sm:$0xff] %v1650
  // Predicated region
  $region26: #{botrgcn_fmoe_double_forward.11} parent=0 // pred_check
    _
  $region27: #{botrgcn_fmoe_double_forward.11} parent=0 // pred_check_branch
    %1684 = sbr.rel (0) target = $region29
  $region28: #{botrgcn_fmoe_double_forward.11} parent=0 // pred_region
    _
  $region29: #{botrgcn_fmoe_double_forward.11} parent=0 // pred_fallthru
    _
  // Predicated region
  $region30: #{botrgcn_fmoe_double_forward.11} parent=0 // pred_check
    _
  $region31: #{botrgcn_fmoe_double_forward.11} parent=0 // pred_check_branch
    %1686 = sbr.rel (0) target = $region33
  $region32: #{botrgcn_fmoe_double_forward.11} parent=0 // pred_region
    _
  $region33: #{botrgcn_fmoe_double_forward.11} parent=0 // pred_fallthru
    _

// kernel: botrgcn_fmoe_double_forward.6
$region0: #{botrgcn_fmoe_double_forward.6}
  #allocation0 [shape = 'u32[]', space=smem, size = 0x4, offset = 0x4, fixed_abs, tag = 'smem constant byte address 0x4 - core index']
  #allocation1 [shape = 'u32[144,128]{1,0:T(1,128)}', space=vmem, size = 0x12000, scoped, tag = 'internal scratch']
  %s0 = inlined_call_operand.vmem [shape: f32[256,256], index: 0, kind: input, shape index: {}]
  %s1 = inlined_call_operand.vmem [shape: f32[256,256], index: 1, kind: input, shape index: {}]
  %s2 = inlined_call_operand.vmem [shape: f32[256,16], index: 2, kind: input, shape index: {}]
  %s3 = inlined_call_operand.vmem [shape: bf16[256,128], index: 3, kind: input, shape index: {}]
  %s4 = inlined_call_operand.vmem [shape: bf16[256,128], index: 4, kind: input, shape index: {}]
  %s5 = inlined_call_operand.vmem [shape: bf16[16,128], index: 5, kind: input, shape index: {}]
  %s6 = inlined_call_operand.vmem [shape: f32[1,128], index: 6, kind: input, shape index: {}]
  %s7 = inlined_call_operand.vmem [shape: bf16[128,128], index: 7, kind: input, shape index: {}]
  %s8 = inlined_call_operand.vmem [shape: f32[1,128], index: 8, kind: input, shape index: {}]
  %s9 = inlined_call_operand.vmem [shape: bf16[256,128], index: 9, kind: output, shape index: {}]
  %s10 = sld [smem:[#allocation0]]
  $region46: #{botrgcn_fmoe_double_forward.6} parent=0
    _
  %s12 = ssub.s32 1, %s10
  %s13 = scalar_select 0, %s12, %s10
  // Predicated region
  $region2: #{botrgcn_fmoe_double_forward.6} parent=0 // pred_check
    _
  $region3: #{botrgcn_fmoe_double_forward.6} parent=0 // pred_check_branch
    %15 = sbr.rel (0) target = $region5
  $region4: #{botrgcn_fmoe_double_forward.6} parent=0 // pred_region
    _
  $region5: #{botrgcn_fmoe_double_forward.6} parent=0 // pred_fallthru
    _
  // Predicated region
  $region6: #{botrgcn_fmoe_double_forward.6} parent=0 // pred_check
    _
  $region7: #{botrgcn_fmoe_double_forward.6} parent=0 // pred_check_branch
    %17 = sbr.rel (0) target = $region9
  $region8: #{botrgcn_fmoe_double_forward.6} parent=0 // pred_region
    _
  $region9: #{botrgcn_fmoe_double_forward.6} parent=0 // pred_fallthru
    _
  // Predicated region
  $region10: #{botrgcn_fmoe_double_forward.6} parent=0 // pred_check
    _
  $region11: #{botrgcn_fmoe_double_forward.6} parent=0 // pred_check_branch
    %19 = sbr.rel (0) target = $region13
  $region12: #{botrgcn_fmoe_double_forward.6} parent=0 // pred_region
    _
  $region13: #{botrgcn_fmoe_double_forward.6} parent=0 // pred_fallthru
    _
  // Predicated region
  $region14: #{botrgcn_fmoe_double_forward.6} parent=0 // pred_check
    _
  $region15: #{botrgcn_fmoe_double_forward.6} parent=0 // pred_check_branch
    %21 = sbr.rel (0) target = $region17
  $region16: #{botrgcn_fmoe_double_forward.6} parent=0 // pred_region
    _
  $region17: #{botrgcn_fmoe_double_forward.6} parent=0 // pred_fallthru
    _
  // Predicated region
  $region18: #{botrgcn_fmoe_double_forward.6} parent=0 // pred_check
    _
  $region19: #{botrgcn_fmoe_double_forward.6} parent=0 // pred_check_branch
    %23 = sbr.rel (0) target = $region21
  $region20: #{botrgcn_fmoe_double_forward.6} parent=0 // pred_region
    _
  $region21: #{botrgcn_fmoe_double_forward.6} parent=0 // pred_fallthru
    _
  // Predicated region
  $region22: #{botrgcn_fmoe_double_forward.6} parent=0 // pred_check
    _
  $region23: #{botrgcn_fmoe_double_forward.6} parent=0 // pred_check_branch
    %25 = sbr.rel (0) target = $region25
  $region24: #{botrgcn_fmoe_double_forward.6} parent=0 // pred_region
    _
  $region25: #{botrgcn_fmoe_double_forward.6} parent=0 // pred_fallthru
    _
  // Predicated region
  $region26: #{botrgcn_fmoe_double_forward.6} parent=0 // pred_check
    _
  $region27: #{botrgcn_fmoe_double_forward.6} parent=0 // pred_check_branch
    %27 = sbr.rel (0) target = $region29
  $region28: #{botrgcn_fmoe_double_forward.6} parent=0 // pred_region
    _
  $region29: #{botrgcn_fmoe_double_forward.6} parent=0 // pred_fallthru
    _
  // Predicated region
  $region30: #{botrgcn_fmoe_double_forward.6} parent=0 // pred_check
    _
  $region31: #{botrgcn_fmoe_double_forward.6} parent=0 // pred_check_branch
    %29 = sbr.rel (0) target = $region33
  $region32: #{botrgcn_fmoe_double_forward.6} parent=0 // pred_region
    _
  $region33: #{botrgcn_fmoe_double_forward.6} parent=0 // pred_fallthru
    _
  // Predicated region
  $region34: #{botrgcn_fmoe_double_forward.6} parent=0 // pred_check
    _
  $region35: #{botrgcn_fmoe_double_forward.6} parent=0 // pred_check_branch
    %31 = sbr.rel (0) target = $region37
  $region36: #{botrgcn_fmoe_double_forward.6} parent=0 // pred_region
    _
  $region37: #{botrgcn_fmoe_double_forward.6} parent=0 // pred_fallthru
    _
  %v33 = vld [vmem:[%s0] sm:$0xff]
  %v34 = vld [vmem:[%s0 + $0x8] sm:$0xff]
  %v35 = vld [vmem:[%s0 + $0x10] sm:$0xff]
  %v36 = vld [vmem:[%s0 + $0x18] sm:$0xff]
  %v37 = vld [vmem:[%s0 + $0x20] sm:$0xff]
  %v38 = vld [vmem:[%s0 + $0x28] sm:$0xff]
  %v39 = vld [vmem:[%s0 + $0x30] sm:$0xff]
  %v40 = vld [vmem:[%s0 + $0x38] sm:$0xff]
  %v41 = vld [vmem:[%s0 + $0x40] sm:$0xff]
  %v42 = vld [vmem:[%s0 + $0x48] sm:$0xff]
  %v43 = vld [vmem:[%s0 + $0x50] sm:$0xff]
  %v44 = vld [vmem:[%s0 + $0x58] sm:$0xff]
  %v45 = vld [vmem:[%s0 + $0x60] sm:$0xff]
  %v46 = vld [vmem:[%s0 + $0x68] sm:$0xff]
  %v47 = vld [vmem:[%s0 + $0x70] sm:$0xff]
  %v48 = vld [vmem:[%s0 + $0x78] sm:$0xff]
  %v49 = vld [vmem:[%s0 + $0x80] sm:$0xff]
  %v50 = vld [vmem:[%s0 + $0x88] sm:$0xff]
  %v51 = vld [vmem:[%s0 + $0x90] sm:$0xff]
  %v52 = vld [vmem:[%s0 + $0x98] sm:$0xff]
  %v53 = vld [vmem:[%s0 + $0xa0] sm:$0xff]
  %v54 = vld [vmem:[%s0 + $0xa8] sm:$0xff]
  %v55 = vld [vmem:[%s0 + $0xb0] sm:$0xff]
  %v56 = vld [vmem:[%s0 + $0xb8] sm:$0xff]
  %v57 = vld [vmem:[%s0 + $0xc0] sm:$0xff]
  %v58 = vld [vmem:[%s0 + $0xc8] sm:$0xff]
  %v59 = vld [vmem:[%s0 + $0xd0] sm:$0xff]
  %v60 = vld [vmem:[%s0 + $0xd8] sm:$0xff]
  %v61 = vld [vmem:[%s0 + $0xe0] sm:$0xff]
  %v62 = vld [vmem:[%s0 + $0xe8] sm:$0xff]
  %v63 = vld [vmem:[%s0 + $0xf0] sm:$0xff]
  %v64 = vld [vmem:[%s0 + $0xf8] sm:$0xff]
  %v65 = vld [vmem:[%s0 + $0x100] sm:$0xff]
  %v66 = vld [vmem:[%s0 + $0x108] sm:$0xff]
  %v67 = vld [vmem:[%s0 + $0x110] sm:$0xff]
  %v68 = vld [vmem:[%s0 + $0x118] sm:$0xff]
  %v69 = vld [vmem:[%s0 + $0x120] sm:$0xff]
  %v70 = vld [vmem:[%s0 + $0x128] sm:$0xff]
  %v71 = vld [vmem:[%s0 + $0x130] sm:$0xff]
  %v72 = vld [vmem:[%s0 + $0x138] sm:$0xff]
  %v73 = vld [vmem:[%s0 + $0x140] sm:$0xff]
  %v74 = vld [vmem:[%s0 + $0x148] sm:$0xff]
  %v75 = vld [vmem:[%s0 + $0x150] sm:$0xff]
  %v76 = vld [vmem:[%s0 + $0x158] sm:$0xff]
  %v77 = vld [vmem:[%s0 + $0x160] sm:$0xff]
  %v78 = vld [vmem:[%s0 + $0x168] sm:$0xff]
  %v79 = vld [vmem:[%s0 + $0x170] sm:$0xff]
  %v80 = vld [vmem:[%s0 + $0x178] sm:$0xff]
  %v81 = vld [vmem:[%s0 + $0x180] sm:$0xff]
  %v82 = vld [vmem:[%s0 + $0x188] sm:$0xff]
  %v83 = vld [vmem:[%s0 + $0x190] sm:$0xff]
  %v84 = vld [vmem:[%s0 + $0x198] sm:$0xff]
  %v85 = vld [vmem:[%s0 + $0x1a0] sm:$0xff]
  %v86 = vld [vmem:[%s0 + $0x1a8] sm:$0xff]
  %v87 = vld [vmem:[%s0 + $0x1b0] sm:$0xff]
  %v88 = vld [vmem:[%s0 + $0x1b8] sm:$0xff]
  %v89 = vld [vmem:[%s0 + $0x1c0] sm:$0xff]
  %v90 = vld [vmem:[%s0 + $0x1c8] sm:$0xff]
  %v91 = vld [vmem:[%s0 + $0x1d0] sm:$0xff]
  %v92 = vld [vmem:[%s0 + $0x1d8] sm:$0xff]
  %v93 = vld [vmem:[%s0 + $0x1e0] sm:$0xff]
  %v94 = vld [vmem:[%s0 + $0x1e8] sm:$0xff]
  %v95 = vld [vmem:[%s0 + $0x1f0] sm:$0xff]
  %v96 = vld [vmem:[%s0 + $0x1f8] sm:$0xff]
  %v97 = vpack.c.bf16 %v35, %v33
  %v98 = vpack.c.bf16 %v36, %v34
  %v99 = vpack.c.bf16 %v39, %v37
  %v100 = vpack.c.bf16 %v40, %v38
  %v101 = vpack.c.bf16 %v43, %v41
  %v102 = vpack.c.bf16 %v44, %v42
  %v103 = vpack.c.bf16 %v47, %v45
  %v104 = vpack.c.bf16 %v48, %v46
  %v105 = vpack.c.bf16 %v51, %v49
  %v106 = vpack.c.bf16 %v52, %v50
  %v107 = vpack.c.bf16 %v55, %v53
  %v108 = vpack.c.bf16 %v56, %v54
  %v109 = vpack.c.bf16 %v59, %v57
  %v110 = vpack.c.bf16 %v60, %v58
  %v111 = vpack.c.bf16 %v63, %v61
  %v112 = vpack.c.bf16 %v64, %v62
  %v113 = vpack.c.bf16 %v67, %v65
  %v114 = vpack.c.bf16 %v68, %v66
  %v115 = vpack.c.bf16 %v71, %v69
  %v116 = vpack.c.bf16 %v72, %v70
  %v117 = vpack.c.bf16 %v75, %v73
  %v118 = vpack.c.bf16 %v76, %v74
  %v119 = vpack.c.bf16 %v79, %v77
  %v120 = vpack.c.bf16 %v80, %v78
  %v121 = vpack.c.bf16 %v83, %v81
  %v122 = vpack.c.bf16 %v84, %v82
  %v123 = vpack.c.bf16 %v87, %v85
  %v124 = vpack.c.bf16 %v88, %v86
  %v125 = vpack.c.bf16 %v91, %v89
  %v126 = vpack.c.bf16 %v92, %v90
  %v127 = vpack.c.bf16 %v95, %v93
  %v128 = vpack.c.bf16 %v96, %v94
  %v129 = vld [vmem:[%s3] sm:$0xf]
  %v130 = vld [vmem:[%s3 + $0x4] sm:$0xf]
  %v131 = vld [vmem:[%s3 + $0x8] sm:$0xf]
  %v132 = vld [vmem:[%s3 + $0xc] sm:$0xf]
  %v133 = vld [vmem:[%s3 + $0x10] sm:$0xf]
  %v134 = vld [vmem:[%s3 + $0x14] sm:$0xf]
  %v135 = vld [vmem:[%s3 + $0x18] sm:$0xf]
  %v136 = vld [vmem:[%s3 + $0x1c] sm:$0xf]
  %v137 = vld [vmem:[%s3 + $0x20] sm:$0xf]
  %v138 = vld [vmem:[%s3 + $0x24] sm:$0xf]
  %v139 = vld [vmem:[%s3 + $0x28] sm:$0xf]
  %v140 = vld [vmem:[%s3 + $0x2c] sm:$0xf]
  %v141 = vld [vmem:[%s3 + $0x30] sm:$0xf]
  %v142 = vld [vmem:[%s3 + $0x34] sm:$0xf]
  %v143 = vld [vmem:[%s3 + $0x38] sm:$0xf]
  %v144 = vld [vmem:[%s3 + $0x3c] sm:$0xf]
  %v145 = vld [vmem:[%s3 + $0x40] sm:$0xf]
  %v146 = vld [vmem:[%s3 + $0x44] sm:$0xf]
  %v147 = vld [vmem:[%s3 + $0x48] sm:$0xf]
  %v148 = vld [vmem:[%s3 + $0x4c] sm:$0xf]
  %v149 = vld [vmem:[%s3 + $0x50] sm:$0xf]
  %v150 = vld [vmem:[%s3 + $0x54] sm:$0xf]
  %v151 = vld [vmem:[%s3 + $0x58] sm:$0xf]
  %v152 = vld [vmem:[%s3 + $0x5c] sm:$0xf]
  %v153 = vld [vmem:[%s3 + $0x60] sm:$0xf]
  %v154 = vld [vmem:[%s3 + $0x64] sm:$0xf]
  %v155 = vld [vmem:[%s3 + $0x68] sm:$0xf]
  %v156 = vld [vmem:[%s3 + $0x6c] sm:$0xf]
  %v157 = vld [vmem:[%s3 + $0x70] sm:$0xf]
  %v158 = vld [vmem:[%s3 + $0x74] sm:$0xf]
  %v159 = vld [vmem:[%s3 + $0x78] sm:$0xf]
  %v160 = vld [vmem:[%s3 + $0x7c] sm:$0xf]
  %v161 = vld [vmem:[%s1] sm:$0xff]
  %v162 = vld [vmem:[%s1 + $0x8] sm:$0xff]
  %v163 = vld [vmem:[%s1 + $0x10] sm:$0xff]
  %v164 = vld [vmem:[%s1 + $0x18] sm:$0xff]
  %v165 = vld [vmem:[%s1 + $0x20] sm:$0xff]
  %v166 = vld [vmem:[%s1 + $0x28] sm:$0xff]
  %v167 = vld [vmem:[%s1 + $0x30] sm:$0xff]
  %v168 = vld [vmem:[%s1 + $0x38] sm:$0xff]
  %v169 = vld [vmem:[%s1 + $0x40] sm:$0xff]
  %v170 = vld [vmem:[%s1 + $0x48] sm:$0xff]
  %v171 = vld [vmem:[%s1 + $0x50] sm:$0xff]
  %v172 = vld [vmem:[%s1 + $0x58] sm:$0xff]
  %v173 = vld [vmem:[%s1 + $0x60] sm:$0xff]
  %v174 = vld [vmem:[%s1 + $0x68] sm:$0xff]
  %v175 = vld [vmem:[%s1 + $0x70] sm:$0xff]
  %v176 = vld [vmem:[%s1 + $0x78] sm:$0xff]
  %v177 = vld [vmem:[%s1 + $0x80] sm:$0xff]
  %v178 = vld [vmem:[%s1 + $0x88] sm:$0xff]
  %v179 = vld [vmem:[%s1 + $0x90] sm:$0xff]
  %v180 = vld [vmem:[%s1 + $0x98] sm:$0xff]
  %v181 = vld [vmem:[%s1 + $0xa0] sm:$0xff]
  %v182 = vld [vmem:[%s1 + $0xa8] sm:$0xff]
  %v183 = vld [vmem:[%s1 + $0xb0] sm:$0xff]
  %v184 = vld [vmem:[%s1 + $0xb8] sm:$0xff]
  %v185 = vld [vmem:[%s1 + $0xc0] sm:$0xff]
  %v186 = vld [vmem:[%s1 + $0xc8] sm:$0xff]
  %v187 = vld [vmem:[%s1 + $0xd0] sm:$0xff]
  %v188 = vld [vmem:[%s1 + $0xd8] sm:$0xff]
  %v189 = vld [vmem:[%s1 + $0xe0] sm:$0xff]
  %v190 = vld [vmem:[%s1 + $0xe8] sm:$0xff]
  %v191 = vld [vmem:[%s1 + $0xf0] sm:$0xff]
  %v192 = vld [vmem:[%s1 + $0xf8] sm:$0xff]
  %v193 = vld [vmem:[%s1 + $0x100] sm:$0xff]
  %v194 = vld [vmem:[%s1 + $0x108] sm:$0xff]
  %v195 = vld [vmem:[%s1 + $0x110] sm:$0xff]
  %v196 = vld [vmem:[%s1 + $0x118] sm:$0xff]
  %v197 = vld [vmem:[%s1 + $0x120] sm:$0xff]
  %v198 = vld [vmem:[%s1 + $0x128] sm:$0xff]
  %v199 = vld [vmem:[%s1 + $0x130] sm:$0xff]
  %v200 = vld [vmem:[%s1 + $0x138] sm:$0xff]
  %v201 = vld [vmem:[%s1 + $0x140] sm:$0xff]
  %v202 = vld [vmem:[%s1 + $0x148] sm:$0xff]
  %v203 = vld [vmem:[%s1 + $0x150] sm:$0xff]
  %v204 = vld [vmem:[%s1 + $0x158] sm:$0xff]
  %v205 = vld [vmem:[%s1 + $0x160] sm:$0xff]
  %v206 = vld [vmem:[%s1 + $0x168] sm:$0xff]
  %v207 = vld [vmem:[%s1 + $0x170] sm:$0xff]
  %v208 = vld [vmem:[%s1 + $0x178] sm:$0xff]
  %v209 = vld [vmem:[%s1 + $0x180] sm:$0xff]
  %v210 = vld [vmem:[%s1 + $0x188] sm:$0xff]
  %v211 = vld [vmem:[%s1 + $0x190] sm:$0xff]
  %v212 = vld [vmem:[%s1 + $0x198] sm:$0xff]
  %v213 = vld [vmem:[%s1 + $0x1a0] sm:$0xff]
  %v214 = vld [vmem:[%s1 + $0x1a8] sm:$0xff]
  %v215 = vld [vmem:[%s1 + $0x1b0] sm:$0xff]
  %v216 = vld [vmem:[%s1 + $0x1b8] sm:$0xff]
  %v217 = vld [vmem:[%s1 + $0x1c0] sm:$0xff]
  %v218 = vld [vmem:[%s1 + $0x1c8] sm:$0xff]
  %v219 = vld [vmem:[%s1 + $0x1d0] sm:$0xff]
  %v220 = vld [vmem:[%s1 + $0x1d8] sm:$0xff]
  %v221 = vld [vmem:[%s1 + $0x1e0] sm:$0xff]
  %v222 = vld [vmem:[%s1 + $0x1e8] sm:$0xff]
  %v223 = vld [vmem:[%s1 + $0x1f0] sm:$0xff]
  %v224 = vld [vmem:[%s1 + $0x1f8] sm:$0xff]
  %v225 = vpack.c.bf16 %v163, %v161
  %v226 = vpack.c.bf16 %v164, %v162
  %v227 = vpack.c.bf16 %v167, %v165
  %v228 = vpack.c.bf16 %v168, %v166
  %v229 = vpack.c.bf16 %v171, %v169
  %v230 = vpack.c.bf16 %v172, %v170
  %v231 = vpack.c.bf16 %v175, %v173
  %v232 = vpack.c.bf16 %v176, %v174
  %v233 = vpack.c.bf16 %v179, %v177
  %v234 = vpack.c.bf16 %v180, %v178
  %v235 = vpack.c.bf16 %v183, %v181
  %v236 = vpack.c.bf16 %v184, %v182
  %v237 = vpack.c.bf16 %v187, %v185
  %v238 = vpack.c.bf16 %v188, %v186
  %v239 = vpack.c.bf16 %v191, %v189
  %v240 = vpack.c.bf16 %v192, %v190
  %v241 = vpack.c.bf16 %v195, %v193
  %v242 = vpack.c.bf16 %v196, %v194
  %v243 = vpack.c.bf16 %v199, %v197
  %v244 = vpack.c.bf16 %v200, %v198
  %v245 = vpack.c.bf16 %v203, %v201
  %v246 = vpack.c.bf16 %v204, %v202
  %v247 = vpack.c.bf16 %v207, %v205
  %v248 = vpack.c.bf16 %v208, %v206
  %v249 = vpack.c.bf16 %v211, %v209
  %v250 = vpack.c.bf16 %v212, %v210
  %v251 = vpack.c.bf16 %v215, %v213
  %v252 = vpack.c.bf16 %v216, %v214
  %v253 = vpack.c.bf16 %v219, %v217
  %v254 = vpack.c.bf16 %v220, %v218
  %v255 = vpack.c.bf16 %v223, %v221
  %v256 = vpack.c.bf16 %v224, %v222
  %v257 = vld [vmem:[%s4] sm:$0xf]
  %v258 = vld [vmem:[%s4 + $0x4] sm:$0xf]
  %v259 = vld [vmem:[%s4 + $0x8] sm:$0xf]
  %v260 = vld [vmem:[%s4 + $0xc] sm:$0xf]
  %v261 = vld [vmem:[%s4 + $0x10] sm:$0xf]
  %v262 = vld [vmem:[%s4 + $0x14] sm:$0xf]
  %v263 = vld [vmem:[%s4 + $0x18] sm:$0xf]
  %v264 = vld [vmem:[%s4 + $0x1c] sm:$0xf]
  %v265 = vld [vmem:[%s4 + $0x20] sm:$0xf]
  %v266 = vld [vmem:[%s4 + $0x24] sm:$0xf]
  %v267 = vld [vmem:[%s4 + $0x28] sm:$0xf]
  %v268 = vld [vmem:[%s4 + $0x2c] sm:$0xf]
  %v269 = vld [vmem:[%s4 + $0x30] sm:$0xf]
  %v270 = vld [vmem:[%s4 + $0x34] sm:$0xf]
  %v271 = vld [vmem:[%s4 + $0x38] sm:$0xf]
  %v272 = vld [vmem:[%s4 + $0x3c] sm:$0xf]
  %v273 = vld [vmem:[%s4 + $0x40] sm:$0xf]
  %v274 = vld [vmem:[%s4 + $0x44] sm:$0xf]
  %v275 = vld [vmem:[%s4 + $0x48] sm:$0xf]
  %v276 = vld [vmem:[%s4 + $0x4c] sm:$0xf]
  %v277 = vld [vmem:[%s4 + $0x50] sm:$0xf]
  %v278 = vld [vmem:[%s4 + $0x54] sm:$0xf]
  %v279 = vld [vmem:[%s4 + $0x58] sm:$0xf]
  %v280 = vld [vmem:[%s4 + $0x5c] sm:$0xf]
  %v281 = vld [vmem:[%s4 + $0x60] sm:$0xf]
  %v282 = vld [vmem:[%s4 + $0x64] sm:$0xf]
  %v283 = vld [vmem:[%s4 + $0x68] sm:$0xf]
  %v284 = vld [vmem:[%s4 + $0x6c] sm:$0xf]
  %v285 = vld [vmem:[%s4 + $0x70] sm:$0xf]
  %v286 = vld [vmem:[%s4 + $0x74] sm:$0xf]
  %v287 = vld [vmem:[%s4 + $0x78] sm:$0xf]
  %v288 = vld [vmem:[%s4 + $0x7c] sm:$0xf]
  %v321 = vunpack.c.l.b16 %v257
  %v322 = vunpack.c.l.b16 %v258
  %v323 = vunpack.c.l.b16 %v259
  %v324 = vunpack.c.l.b16 %v260
  %v325 = vunpack.c.l.b16 %v261
  %v326 = vunpack.c.l.b16 %v262
  %v327 = vunpack.c.l.b16 %v263
  %v328 = vunpack.c.l.b16 %v264
  %v329 = vunpack.c.l.b16 %v265
  %v330 = vunpack.c.l.b16 %v266
  %v331 = vunpack.c.l.b16 %v267
  %v332 = vunpack.c.l.b16 %v268
  %v333 = vunpack.c.l.b16 %v269
  %v334 = vunpack.c.l.b16 %v270
  %v335 = vunpack.c.l.b16 %v271
  %v336 = vunpack.c.l.b16 %v272
  %v337 = vunpack.c.l.b16 %v273
  %v338 = vunpack.c.l.b16 %v274
  %v339 = vunpack.c.l.b16 %v275
  %v340 = vunpack.c.l.b16 %v276
  %v341 = vunpack.c.l.b16 %v277
  %v342 = vunpack.c.l.b16 %v278
  %v343 = vunpack.c.l.b16 %v279
  %v344 = vunpack.c.l.b16 %v280
  %v345 = vunpack.c.l.b16 %v281
  %v346 = vunpack.c.l.b16 %v282
  %v347 = vunpack.c.l.b16 %v283
  %v348 = vunpack.c.l.b16 %v284
  %v349 = vunpack.c.l.b16 %v285
  %v350 = vunpack.c.l.b16 %v286
  %v351 = vunpack.c.l.b16 %v287
  %v352 = vunpack.c.l.b16 %v288
  %v353 = vpack.c.b16 %v322, %v321
  %v354 = vpack.c.b16 %v324, %v323
  %v355 = vpack.c.b16 %v326, %v325
  %v356 = vpack.c.b16 %v328, %v327
  %v357 = vpack.c.b16 %v330, %v329
  %v358 = vpack.c.b16 %v332, %v331
  %v359 = vpack.c.b16 %v334, %v333
  %v360 = vpack.c.b16 %v336, %v335
  %v361 = vpack.c.b16 %v338, %v337
  %v362 = vpack.c.b16 %v340, %v339
  %v363 = vpack.c.b16 %v342, %v341
  %v364 = vpack.c.b16 %v344, %v343
  %v365 = vpack.c.b16 %v346, %v345
  %v366 = vpack.c.b16 %v348, %v347
  %v367 = vpack.c.b16 %v350, %v349
  %v368 = vpack.c.b16 %v352, %v351
  %385 = vmatprep.subr.bf16.mxu0 0
  %386 = vmatpush1.bf16.msra.mxu0 %v360
  %387 = vmatprep.subr.bf16.mxu0 0
  %388 = vmatpush1.bf16.msra.mxu0 %v359
  %389 = vmatprep.subr.bf16.mxu0 0
  %390 = vmatpush1.bf16.msra.mxu0 %v358
  %391 = vmatprep.subr.bf16.mxu0 0
  %392 = vmatpush1.bf16.msra.mxu0 %v357
  %393 = vmatprep.subr.bf16.mxu0 0
  %394 = vmatpush1.bf16.msra.mxu0 %v356
  %395 = vmatprep.subr.bf16.mxu0 0
  %396 = vmatpush1.bf16.msra.mxu0 %v355
  %397 = vmatprep.subr.bf16.mxu0 0
  %398 = vmatpush1.bf16.msra.mxu0 %v354
  %399 = vmatprep.subr.bf16.mxu0 0
  %400 = vmatpush1.bf16.msra.mxu0 %v353
  %401 = vmatprep.subr.bf16.mxu0 0
  %402 = vmatpush2.bf16.msra.mxu0 %v368
  %403 = vmatprep.subr.bf16.mxu0 0
  %404 = vmatpush2.bf16.msra.mxu0 %v367
  %405 = vmatprep.subr.bf16.mxu0 0
  %406 = vmatpush2.bf16.msra.mxu0 %v366
  %407 = vmatprep.subr.bf16.mxu0 0
  %408 = vmatpush2.bf16.msra.mxu0 %v365
  %409 = vmatprep.subr.bf16.mxu0 0
  %410 = vmatpush2.bf16.msra.mxu0 %v364
  %411 = vmatprep.subr.bf16.mxu0 0
  %412 = vmatpush2.bf16.msra.mxu0 %v363
  %413 = vmatprep.subr.bf16.mxu0 0
  %414 = vmatpush2.bf16.msra.mxu0 %v362
  %415 = vmatprep.subr.bf16.mxu0 0
  %416 = vmatpush2.bf16.msra.mxu0 %v361
  %417 = vmatprep.mubr.bf16.mxu0 %v226
  %418 = vmatmul.mubr.bf16.gmra.mxu0 %v225
  %v419 = vpop.f32.mrf.mxu0
  %v420 = vadd.f32 0.0, %v419
  %v421 = vpop.f32.mrf.mxu0
  %v422 = vpop.f32.mrf.mxu0
  %v423 = vadd.f32 0.0, %v422
  %v424 = vpop.f32.mrf.mxu0
  %425 = vmatprep.mubr.bf16.mxu0 %v228
  %426 = vmatmul.mubr.bf16.gmra.mxu0 %v227
  %v427 = vpop.f32.mrf.mxu0
  %v428 = vadd.f32 0.0, %v427
  %v429 = vpop.f32.mrf.mxu0
  %v430 = vpop.f32.mrf.mxu0
  %v431 = vadd.f32 0.0, %v430
  %v432 = vpop.f32.mrf.mxu0
  %433 = vmatprep.mubr.bf16.mxu0 %v230
  %434 = vmatmul.mubr.bf16.gmra.mxu0 %v229
  %v435 = vpop.f32.mrf.mxu0
  %v436 = vadd.f32 0.0, %v435
  %v437 = vpop.f32.mrf.mxu0
  %v438 = vpop.f32.mrf.mxu0
  %v439 = vadd.f32 0.0, %v438
  %v440 = vpop.f32.mrf.mxu0
  %441 = vmatprep.mubr.bf16.mxu0 %v232
  %442 = vmatmul.mubr.bf16.gmra.mxu0 %v231
  %v443 = vpop.f32.mrf.mxu0
  %v444 = vadd.f32 0.0, %v443
  %v445 = vpop.f32.mrf.mxu0
  %v446 = vpop.f32.mrf.mxu0
  %v447 = vadd.f32 0.0, %v446
  %v448 = vpop.f32.mrf.mxu0
  %449 = vmatprep.mubr.bf16.mxu0 %v234
  %450 = vmatmul.mubr.bf16.gmra.mxu0 %v233
  %v451 = vpop.f32.mrf.mxu0
  %v452 = vadd.f32 0.0, %v451
  %v453 = vpop.f32.mrf.mxu0
  %v454 = vpop.f32.mrf.mxu0
  %v455 = vadd.f32 0.0, %v454
  %v456 = vpop.f32.mrf.mxu0
  %457 = vmatprep.mubr.bf16.mxu0 %v236
  %458 = vmatmul.mubr.bf16.gmra.mxu0 %v235
  %v459 = vpop.f32.mrf.mxu0
  %v460 = vadd.f32 0.0, %v459
  %v461 = vpop.f32.mrf.mxu0
  %v462 = vpop.f32.mrf.mxu0
  %v463 = vadd.f32 0.0, %v462
  %v464 = vpop.f32.mrf.mxu0
  %465 = vmatprep.mubr.bf16.mxu0 %v238
  %466 = vmatmul.mubr.bf16.gmra.mxu0 %v237
  %v467 = vpop.f32.mrf.mxu0
  %v468 = vadd.f32 0.0, %v467
  %v469 = vpop.f32.mrf.mxu0
  %v470 = vpop.f32.mrf.mxu0
  %v471 = vadd.f32 0.0, %v470
  %v472 = vpop.f32.mrf.mxu0
  %473 = vmatprep.mubr.bf16.mxu0 %v240
  %474 = vmatmul.mubr.bf16.gmra.mxu0 %v239
  %v475 = vpop.f32.mrf.mxu0
  %v476 = vadd.f32 0.0, %v475
  %v477 = vpop.f32.mrf.mxu0
  %v478 = vpop.f32.mrf.mxu0
  %v479 = vadd.f32 0.0, %v478
  %v480 = vpop.f32.mrf.mxu0
  %481 = vmatprep.mubr.bf16.mxu0 %v242
  %482 = vmatmul.mubr.bf16.gmra.mxu0 %v241
  %v483 = vpop.f32.mrf.mxu0
  %v484 = vadd.f32 0.0, %v483
  %v485 = vpop.f32.mrf.mxu0
  %v486 = vpop.f32.mrf.mxu0
  %v487 = vadd.f32 0.0, %v486
  %v488 = vpop.f32.mrf.mxu0
  %489 = vmatprep.mubr.bf16.mxu0 %v244
  %490 = vmatmul.mubr.bf16.gmra.mxu0 %v243
  %v491 = vpop.f32.mrf.mxu0
  %v492 = vadd.f32 0.0, %v491
  %v493 = vpop.f32.mrf.mxu0
  %v494 = vpop.f32.mrf.mxu0
  %v495 = vadd.f32 0.0, %v494
  %v496 = vpop.f32.mrf.mxu0
  %497 = vmatprep.mubr.bf16.mxu0 %v246
  %498 = vmatmul.mubr.bf16.gmra.mxu0 %v245
  %v499 = vpop.f32.mrf.mxu0
  %v500 = vadd.f32 0.0, %v499
  %v501 = vpop.f32.mrf.mxu0
  %v502 = vpop.f32.mrf.mxu0
  %v503 = vadd.f32 0.0, %v502
  %v504 = vpop.f32.mrf.mxu0
  %505 = vmatprep.mubr.bf16.mxu0 %v248
  %506 = vmatmul.mubr.bf16.gmra.mxu0 %v247
  %v507 = vpop.f32.mrf.mxu0
  %v508 = vadd.f32 0.0, %v507
  %v509 = vpop.f32.mrf.mxu0
  %v510 = vpop.f32.mrf.mxu0
  %v511 = vadd.f32 0.0, %v510
  %v512 = vpop.f32.mrf.mxu0
  %513 = vmatprep.mubr.bf16.mxu0 %v250
  %514 = vmatmul.mubr.bf16.gmra.mxu0 %v249
  %v515 = vpop.f32.mrf.mxu0
  %v516 = vadd.f32 0.0, %v515
  %v517 = vpop.f32.mrf.mxu0
  %v518 = vpop.f32.mrf.mxu0
  %v519 = vadd.f32 0.0, %v518
  %v520 = vpop.f32.mrf.mxu0
  %521 = vmatprep.mubr.bf16.mxu0 %v252
  %522 = vmatmul.mubr.bf16.gmra.mxu0 %v251
  %v523 = vpop.f32.mrf.mxu0
  %v524 = vadd.f32 0.0, %v523
  %v525 = vpop.f32.mrf.mxu0
  %v526 = vpop.f32.mrf.mxu0
  %v527 = vadd.f32 0.0, %v526
  %v528 = vpop.f32.mrf.mxu0
  %529 = vmatprep.mubr.bf16.mxu0 %v254
  %530 = vmatmul.mubr.bf16.gmra.mxu0 %v253
  %v531 = vpop.f32.mrf.mxu0
  %v532 = vadd.f32 0.0, %v531
  %v533 = vpop.f32.mrf.mxu0
  %v534 = vpop.f32.mrf.mxu0
  %v535 = vadd.f32 0.0, %v534
  %v536 = vpop.f32.mrf.mxu0
  %537 = vmatprep.mubr.bf16.mxu0 %v256
  %538 = vmatmul.mubr.bf16.gmra.mxu0 %v255
  %v539 = vpop.f32.mrf.mxu0
  %v540 = vadd.f32 0.0, %v539
  %v541 = vpop.f32.mrf.mxu0
  %v542 = vpop.f32.mrf.mxu0
  %v543 = vadd.f32 0.0, %v542
  %v544 = vpop.f32.mrf.mxu0
  %545 = vdwg.mxu0
  %v578 = vunpack.c.l.b16 %v129
  %v579 = vunpack.c.l.b16 %v130
  %v580 = vunpack.c.l.b16 %v131
  %v581 = vunpack.c.l.b16 %v132
  %v582 = vunpack.c.l.b16 %v133
  %v583 = vunpack.c.l.b16 %v134
  %v584 = vunpack.c.l.b16 %v135
  %v585 = vunpack.c.l.b16 %v136
  %v586 = vunpack.c.l.b16 %v137
  %v587 = vunpack.c.l.b16 %v138
  %v588 = vunpack.c.l.b16 %v139
  %v589 = vunpack.c.l.b16 %v140
  %v590 = vunpack.c.l.b16 %v141
  %v591 = vunpack.c.l.b16 %v142
  %v592 = vunpack.c.l.b16 %v143
  %v593 = vunpack.c.l.b16 %v144
  %v594 = vunpack.c.l.b16 %v145
  %v595 = vunpack.c.l.b16 %v146
  %v596 = vunpack.c.l.b16 %v147
  %v597 = vunpack.c.l.b16 %v148
  %v598 = vunpack.c.l.b16 %v149
  %v599 = vunpack.c.l.b16 %v150
  %v600 = vunpack.c.l.b16 %v151
  %v601 = vunpack.c.l.b16 %v152
  %v602 = vunpack.c.l.b16 %v153
  %v603 = vunpack.c.l.b16 %v154
  %v604 = vunpack.c.l.b16 %v155
  %v605 = vunpack.c.l.b16 %v156
  %v606 = vunpack.c.l.b16 %v157
  %v607 = vunpack.c.l.b16 %v158
  %v608 = vunpack.c.l.b16 %v159
  %v609 = vunpack.c.l.b16 %v160
  %v610 = vpack.c.b16 %v579, %v578
  %v611 = vpack.c.b16 %v581, %v580
  %v612 = vpack.c.b16 %v583, %v582
  %v613 = vpack.c.b16 %v585, %v584
  %v614 = vpack.c.b16 %v587, %v586
  %v615 = vpack.c.b16 %v589, %v588
  %v616 = vpack.c.b16 %v591, %v590
  %v617 = vpack.c.b16 %v593, %v592
  %v618 = vpack.c.b16 %v595, %v594
  %v619 = vpack.c.b16 %v597, %v596
  %v620 = vpack.c.b16 %v599, %v598
  %v621 = vpack.c.b16 %v601, %v600
  %v622 = vpack.c.b16 %v603, %v602
  %v623 = vpack.c.b16 %v605, %v604
  %v624 = vpack.c.b16 %v607, %v606
  %v625 = vpack.c.b16 %v609, %v608
  %642 = vmatprep.subr.bf16.mxu0 0
  %643 = vmatpush1.bf16.msra.mxu0 %v617
  %644 = vmatprep.subr.bf16.mxu0 0
  %645 = vmatpush1.bf16.msra.mxu0 %v616
  %646 = vmatprep.subr.bf16.mxu0 0
  %647 = vmatpush1.bf16.msra.mxu0 %v615
  %648 = vmatprep.subr.bf16.mxu0 0
  %649 = vmatpush1.bf16.msra.mxu0 %v614
  %650 = vmatprep.subr.bf16.mxu0 0
  %651 = vmatpush1.bf16.msra.mxu0 %v613
  %652 = vmatprep.subr.bf16.mxu0 0
  %653 = vmatpush1.bf16.msra.mxu0 %v612
  %654 = vmatprep.subr.bf16.mxu0 0
  %655 = vmatpush1.bf16.msra.mxu0 %v611
  %656 = vmatprep.subr.bf16.mxu0 0
  %657 = vmatpush1.bf16.msra.mxu0 %v610
  %658 = vmatprep.subr.bf16.mxu0 0
  %659 = vmatpush2.bf16.msra.mxu0 %v625
  %660 = vmatprep.subr.bf16.mxu0 0
  %661 = vmatpush2.bf16.msra.mxu0 %v624
  %662 = vmatprep.subr.bf16.mxu0 0
  %663 = vmatpush2.bf16.msra.mxu0 %v623
  %664 = vmatprep.subr.bf16.mxu0 0
  %665 = vmatpush2.bf16.msra.mxu0 %v622
  %666 = vmatprep.subr.bf16.mxu0 0
  %667 = vmatpush2.bf16.msra.mxu0 %v621
  %668 = vmatprep.subr.bf16.mxu0 0
  %669 = vmatpush2.bf16.msra.mxu0 %v620
  %670 = vmatprep.subr.bf16.mxu0 0
  %671 = vmatpush2.bf16.msra.mxu0 %v619
  %672 = vmatprep.subr.bf16.mxu0 0
  %673 = vmatpush2.bf16.msra.mxu0 %v618
  %674 = vmatprep.mubr.bf16.mxu0 %v98
  %675 = vmatmul.mubr.bf16.gmra.mxu0 %v97
  %v676 = vpop.f32.mrf.mxu0
  %v677 = vadd.f32 %v420, %v676
  %v678 = vpop.f32.mrf.mxu0
  %v679 = vpop.f32.mrf.mxu0
  %v680 = vadd.f32 %v423, %v679
  %v681 = vpop.f32.mrf.mxu0
  %682 = vmatprep.mubr.bf16.mxu0 %v100
  %683 = vmatmul.mubr.bf16.gmra.mxu0 %v99
  %v684 = vpop.f32.mrf.mxu0
  %v685 = vadd.f32 %v428, %v684
  %v686 = vpop.f32.mrf.mxu0
  %v687 = vpop.f32.mrf.mxu0
  %v688 = vadd.f32 %v431, %v687
  %v689 = vpop.f32.mrf.mxu0
  %690 = vmatprep.mubr.bf16.mxu0 %v102
  %691 = vmatmul.mubr.bf16.gmra.mxu0 %v101
  %v692 = vpop.f32.mrf.mxu0
  %v693 = vadd.f32 %v436, %v692
  %v694 = vpop.f32.mrf.mxu0
  %v695 = vpop.f32.mrf.mxu0
  %v696 = vadd.f32 %v439, %v695
  %v697 = vpop.f32.mrf.mxu0
  %698 = vmatprep.mubr.bf16.mxu0 %v104
  %699 = vmatmul.mubr.bf16.gmra.mxu0 %v103
  %v700 = vpop.f32.mrf.mxu0
  %v701 = vadd.f32 %v444, %v700
  %v702 = vpop.f32.mrf.mxu0
  %v703 = vpop.f32.mrf.mxu0
  %v704 = vadd.f32 %v447, %v703
  %v705 = vpop.f32.mrf.mxu0
  %706 = vmatprep.mubr.bf16.mxu0 %v106
  %707 = vmatmul.mubr.bf16.gmra.mxu0 %v105
  %v708 = vpop.f32.mrf.mxu0
  %v709 = vadd.f32 %v452, %v708
  %v710 = vpop.f32.mrf.mxu0
  %v711 = vpop.f32.mrf.mxu0
  %v712 = vadd.f32 %v455, %v711
  %v713 = vpop.f32.mrf.mxu0
  %714 = vmatprep.mubr.bf16.mxu0 %v108
  %715 = vmatmul.mubr.bf16.gmra.mxu0 %v107
  %v716 = vpop.f32.mrf.mxu0
  %v717 = vadd.f32 %v460, %v716
  %v718 = vpop.f32.mrf.mxu0
  %v719 = vpop.f32.mrf.mxu0
  %v720 = vadd.f32 %v463, %v719
  %v721 = vpop.f32.mrf.mxu0
  %722 = vmatprep.mubr.bf16.mxu0 %v110
  %723 = vmatmul.mubr.bf16.gmra.mxu0 %v109
  %v724 = vpop.f32.mrf.mxu0
  %v725 = vadd.f32 %v468, %v724
  %v726 = vpop.f32.mrf.mxu0
  %v727 = vpop.f32.mrf.mxu0
  %v728 = vadd.f32 %v471, %v727
  %v729 = vpop.f32.mrf.mxu0
  %730 = vmatprep.mubr.bf16.mxu0 %v112
  %731 = vmatmul.mubr.bf16.gmra.mxu0 %v111
  %v732 = vpop.f32.mrf.mxu0
  %v733 = vadd.f32 %v476, %v732
  %v734 = vpop.f32.mrf.mxu0
  %v735 = vpop.f32.mrf.mxu0
  %v736 = vadd.f32 %v479, %v735
  %v737 = vpop.f32.mrf.mxu0
  %738 = vmatprep.mubr.bf16.mxu0 %v114
  %739 = vmatmul.mubr.bf16.gmra.mxu0 %v113
  %v740 = vpop.f32.mrf.mxu0
  %v741 = vadd.f32 %v484, %v740
  %v742 = vpop.f32.mrf.mxu0
  %v743 = vpop.f32.mrf.mxu0
  %v744 = vadd.f32 %v487, %v743
  %v745 = vpop.f32.mrf.mxu0
  %746 = vmatprep.mubr.bf16.mxu0 %v116
  %747 = vmatmul.mubr.bf16.gmra.mxu0 %v115
  %v748 = vpop.f32.mrf.mxu0
  %v749 = vadd.f32 %v492, %v748
  %v750 = vpop.f32.mrf.mxu0
  %v751 = vpop.f32.mrf.mxu0
  %v752 = vadd.f32 %v495, %v751
  %v753 = vpop.f32.mrf.mxu0
  %754 = vmatprep.mubr.bf16.mxu0 %v118
  %755 = vmatmul.mubr.bf16.gmra.mxu0 %v117
  %v756 = vpop.f32.mrf.mxu0
  %v757 = vadd.f32 %v500, %v756
  %v758 = vpop.f32.mrf.mxu0
  %v759 = vpop.f32.mrf.mxu0
  %v760 = vadd.f32 %v503, %v759
  %v761 = vpop.f32.mrf.mxu0
  %762 = vmatprep.mubr.bf16.mxu0 %v120
  %763 = vmatmul.mubr.bf16.gmra.mxu0 %v119
  %v764 = vpop.f32.mrf.mxu0
  %v765 = vadd.f32 %v508, %v764
  %v766 = vpop.f32.mrf.mxu0
  %v767 = vpop.f32.mrf.mxu0
  %v768 = vadd.f32 %v511, %v767
  %v769 = vpop.f32.mrf.mxu0
  %770 = vmatprep.mubr.bf16.mxu0 %v122
  %771 = vmatmul.mubr.bf16.gmra.mxu0 %v121
  %v772 = vpop.f32.mrf.mxu0
  %v773 = vadd.f32 %v516, %v772
  %v774 = vpop.f32.mrf.mxu0
  %v775 = vpop.f32.mrf.mxu0
  %v776 = vadd.f32 %v519, %v775
  %v777 = vpop.f32.mrf.mxu0
  %778 = vmatprep.mubr.bf16.mxu0 %v124
  %779 = vmatmul.mubr.bf16.gmra.mxu0 %v123
  %v780 = vpop.f32.mrf.mxu0
  %v781 = vadd.f32 %v524, %v780
  %v782 = vpop.f32.mrf.mxu0
  %v783 = vpop.f32.mrf.mxu0
  %v784 = vadd.f32 %v527, %v783
  %v785 = vpop.f32.mrf.mxu0
  %786 = vmatprep.mubr.bf16.mxu0 %v126
  %787 = vmatmul.mubr.bf16.gmra.mxu0 %v125
  %v788 = vpop.f32.mrf.mxu0
  %v789 = vadd.f32 %v532, %v788
  %v790 = vpop.f32.mrf.mxu0
  %v791 = vpop.f32.mrf.mxu0
  %v792 = vadd.f32 %v535, %v791
  %v793 = vpop.f32.mrf.mxu0
  %794 = vmatprep.mubr.bf16.mxu0 %v128
  %795 = vmatmul.mubr.bf16.gmra.mxu0 %v127
  %v796 = vpop.f32.mrf.mxu0
  %v797 = vadd.f32 %v540, %v796
  %v798 = vpop.f32.mrf.mxu0
  %v799 = vpop.f32.mrf.mxu0
  %v800 = vadd.f32 %v543, %v799
  %v801 = vpop.f32.mrf.mxu0
  %802 = vdwg.mxu0
  %v803 = vld [vmem:[%s2] sm:$0xff]
  %v804 = vld [vmem:[%s2 + $0x8] sm:$0xff]
  %v805 = vld [vmem:[%s2 + $0x10] sm:$0xff]
  %v806 = vld [vmem:[%s2 + $0x18] sm:$0xff]
  %v807 = vld [vmem:[%s2 + $0x20] sm:$0xff]
  %v808 = vld [vmem:[%s2 + $0x28] sm:$0xff]
  %v809 = vld [vmem:[%s2 + $0x30] sm:$0xff]
  %v810 = vld [vmem:[%s2 + $0x38] sm:$0xff]
  %v811 = vld [vmem:[%s2 + $0x40] sm:$0xff]
  %v812 = vld [vmem:[%s2 + $0x48] sm:$0xff]
  %v813 = vld [vmem:[%s2 + $0x50] sm:$0xff]
  %v814 = vld [vmem:[%s2 + $0x58] sm:$0xff]
  %v815 = vld [vmem:[%s2 + $0x60] sm:$0xff]
  %v816 = vld [vmem:[%s2 + $0x68] sm:$0xff]
  %v817 = vld [vmem:[%s2 + $0x70] sm:$0xff]
  %v818 = vld [vmem:[%s2 + $0x78] sm:$0xff]
  %v819 = vld [vmem:[%s2 + $0x80] sm:$0xff]
  %v820 = vld [vmem:[%s2 + $0x88] sm:$0xff]
  %v821 = vld [vmem:[%s2 + $0x90] sm:$0xff]
  %v822 = vld [vmem:[%s2 + $0x98] sm:$0xff]
  %v823 = vld [vmem:[%s2 + $0xa0] sm:$0xff]
  %v824 = vld [vmem:[%s2 + $0xa8] sm:$0xff]
  %v825 = vld [vmem:[%s2 + $0xb0] sm:$0xff]
  %v826 = vld [vmem:[%s2 + $0xb8] sm:$0xff]
  %v827 = vld [vmem:[%s2 + $0xc0] sm:$0xff]
  %v828 = vld [vmem:[%s2 + $0xc8] sm:$0xff]
  %v829 = vld [vmem:[%s2 + $0xd0] sm:$0xff]
  %v830 = vld [vmem:[%s2 + $0xd8] sm:$0xff]
  %v831 = vld [vmem:[%s2 + $0xe0] sm:$0xff]
  %v832 = vld [vmem:[%s2 + $0xe8] sm:$0xff]
  %v833 = vld [vmem:[%s2 + $0xf0] sm:$0xff]
  %v834 = vld [vmem:[%s2 + $0xf8] sm:$0xff]
  %v835 = vpack.c.bf16 %v804, %v803
  %v836 = vpack.c.bf16 %v806, %v805
  %v837 = vpack.c.bf16 %v808, %v807
  %v838 = vpack.c.bf16 %v810, %v809
  %v839 = vpack.c.bf16 %v812, %v811
  %v840 = vpack.c.bf16 %v814, %v813
  %v841 = vpack.c.bf16 %v816, %v815
  %v842 = vpack.c.bf16 %v818, %v817
  %v843 = vpack.c.bf16 %v820, %v819
  %v844 = vpack.c.bf16 %v822, %v821
  %v845 = vpack.c.bf16 %v824, %v823
  %v846 = vpack.c.bf16 %v826, %v825
  %v847 = vpack.c.bf16 %v828, %v827
  %v848 = vpack.c.bf16 %v830, %v829
  %v849 = vpack.c.bf16 %v832, %v831
  %v850 = vpack.c.bf16 %v834, %v833
  %v851 = vld [vmem:[%s5] sm:$0xf]
  %v852 = vld [vmem:[%s5 + $0x4] sm:$0xf]
  %v855 = vunpack.c.l.b16 %v851
  %v856 = vunpack.c.l.b16 %v852
  %v857 = vpack.c.b16 %v856, %v855
  %vm859 = vcmask 130048
  %v861 = vsel %vm859, %v835, 0
  %v864 = vsel %vm859, %v836, 0
  %v867 = vsel %vm859, %v837, 0
  %v870 = vsel %vm859, %v838, 0
  %v873 = vsel %vm859, %v839, 0
  %v876 = vsel %vm859, %v840, 0
  %v879 = vsel %vm859, %v841, 0
  %v882 = vsel %vm859, %v842, 0
  %v885 = vsel %vm859, %v843, 0
  %v888 = vsel %vm859, %v844, 0
  %v891 = vsel %vm859, %v845, 0
  %v894 = vsel %vm859, %v846, 0
  %v897 = vsel %vm859, %v847, 0
  %v900 = vsel %vm859, %v848, 0
  %v903 = vsel %vm859, %v849, 0
  %v906 = vsel %vm859, %v850, 0
  %908 = vmatprep.subr.bf16.mxu0 0
  %909 = vmatpush1.bf16.msra.mxu0 0
  %910 = vmatprep.subr.bf16.mxu0 0
  %911 = vmatpush1.bf16.msra.mxu0 0
  %912 = vmatprep.subr.bf16.mxu0 0
  %913 = vmatpush1.bf16.msra.mxu0 0
  %914 = vmatprep.subr.bf16.mxu0 0
  %915 = vmatpush1.bf16.msra.mxu0 0
  %916 = vmatprep.subr.bf16.mxu0 0
  %917 = vmatpush1.bf16.msra.mxu0 0
  %918 = vmatprep.subr.bf16.mxu0 0
  %919 = vmatpush1.bf16.msra.mxu0 0
  %920 = vmatprep.subr.bf16.mxu0 0
  %921 = vmatpush1.bf16.msra.mxu0 0
  %922 = vmatprep.subr.bf16.mxu0 0
  %923 = vmatpush1.bf16.msra.mxu0 %v857
  %924 = vmatprep.subr.bf16.mxu0 0
  %925 = vmatpush2.bf16.msra.mxu0 0
  %926 = vmatprep.subr.bf16.mxu0 0
  %927 = vmatpush2.bf16.msra.mxu0 0
  %928 = vmatprep.subr.bf16.mxu0 0
  %929 = vmatpush2.bf16.msra.mxu0 0
  %930 = vmatprep.subr.bf16.mxu0 0
  %931 = vmatpush2.bf16.msra.mxu0 0
  %932 = vmatprep.subr.bf16.mxu0 0
  %933 = vmatpush2.bf16.msra.mxu0 0
  %934 = vmatprep.subr.bf16.mxu0 0
  %935 = vmatpush2.bf16.msra.mxu0 0
  %936 = vmatprep.subr.bf16.mxu0 0
  %937 = vmatpush2.bf16.msra.mxu0 0
  %938 = vmatprep.subr.bf16.mxu0 0
  %939 = vmatpush2.bf16.msra.mxu0 0
  %940 = vmatprep.mubr.bf16.mxu0 0
  %941 = vmatmul.mubr.bf16.gmra.mxu0 %v861
  %v942 = vpop.f32.mrf.mxu0
  %v943 = vadd.f32 0.0, %v942
  %v944 = vpop.f32.mrf.mxu0
  %v945 = vpop.f32.mrf.mxu0
  %v946 = vadd.f32 0.0, %v945
  %v947 = vpop.f32.mrf.mxu0
  %948 = vmatprep.mubr.bf16.mxu0 0
  %949 = vmatmul.mubr.bf16.gmra.mxu0 %v864
  %v950 = vpop.f32.mrf.mxu0
  %v951 = vadd.f32 0.0, %v950
  %v952 = vpop.f32.mrf.mxu0
  %v953 = vpop.f32.mrf.mxu0
  %v954 = vadd.f32 0.0, %v953
  %v955 = vpop.f32.mrf.mxu0
  %956 = vmatprep.mubr.bf16.mxu0 0
  %957 = vmatmul.mubr.bf16.gmra.mxu0 %v867
  %v958 = vpop.f32.mrf.mxu0
  %v959 = vadd.f32 0.0, %v958
  %v960 = vpop.f32.mrf.mxu0
  %v961 = vpop.f32.mrf.mxu0
  %v962 = vadd.f32 0.0, %v961
  %v963 = vpop.f32.mrf.mxu0
  %964 = vmatprep.mubr.bf16.mxu0 0
  %965 = vmatmul.mubr.bf16.gmra.mxu0 %v870
  %v966 = vpop.f32.mrf.mxu0
  %v967 = vadd.f32 0.0, %v966
  %v968 = vpop.f32.mrf.mxu0
  %v969 = vpop.f32.mrf.mxu0
  %v970 = vadd.f32 0.0, %v969
  %v971 = vpop.f32.mrf.mxu0
  %972 = vmatprep.mubr.bf16.mxu0 0
  %973 = vmatmul.mubr.bf16.gmra.mxu0 %v873
  %v974 = vpop.f32.mrf.mxu0
  %v975 = vadd.f32 0.0, %v974
  %v976 = vpop.f32.mrf.mxu0
  %v977 = vpop.f32.mrf.mxu0
  %v978 = vadd.f32 0.0, %v977
  %v979 = vpop.f32.mrf.mxu0
  %980 = vmatprep.mubr.bf16.mxu0 0
  %981 = vmatmul.mubr.bf16.gmra.mxu0 %v876
  %v982 = vpop.f32.mrf.mxu0
  %v983 = vadd.f32 0.0, %v982
  %v984 = vpop.f32.mrf.mxu0
  %v985 = vpop.f32.mrf.mxu0
  %v986 = vadd.f32 0.0, %v985
  %v987 = vpop.f32.mrf.mxu0
  %988 = vmatprep.mubr.bf16.mxu0 0
  %989 = vmatmul.mubr.bf16.gmra.mxu0 %v879
  %v990 = vpop.f32.mrf.mxu0
  %v991 = vadd.f32 0.0, %v990
  %v992 = vpop.f32.mrf.mxu0
  %v993 = vpop.f32.mrf.mxu0
  %v994 = vadd.f32 0.0, %v993
  %v995 = vpop.f32.mrf.mxu0
  %996 = vmatprep.mubr.bf16.mxu0 0
  %997 = vmatmul.mubr.bf16.gmra.mxu0 %v882
  %v998 = vpop.f32.mrf.mxu0
  %v999 = vadd.f32 0.0, %v998
  %v1000 = vpop.f32.mrf.mxu0
  %v1001 = vpop.f32.mrf.mxu0
  %v1002 = vadd.f32 0.0, %v1001
  %v1003 = vpop.f32.mrf.mxu0
  %1004 = vmatprep.mubr.bf16.mxu0 0
  %1005 = vmatmul.mubr.bf16.gmra.mxu0 %v885
  %v1006 = vpop.f32.mrf.mxu0
  %v1007 = vadd.f32 0.0, %v1006
  %v1008 = vpop.f32.mrf.mxu0
  %v1009 = vpop.f32.mrf.mxu0
  %v1010 = vadd.f32 0.0, %v1009
  %v1011 = vpop.f32.mrf.mxu0
  %1012 = vmatprep.mubr.bf16.mxu0 0
  %1013 = vmatmul.mubr.bf16.gmra.mxu0 %v888
  %v1014 = vpop.f32.mrf.mxu0
  %v1015 = vadd.f32 0.0, %v1014
  %v1016 = vpop.f32.mrf.mxu0
  %v1017 = vpop.f32.mrf.mxu0
  %v1018 = vadd.f32 0.0, %v1017
  %v1019 = vpop.f32.mrf.mxu0
  %1020 = vmatprep.mubr.bf16.mxu0 0
  %1021 = vmatmul.mubr.bf16.gmra.mxu0 %v891
  %v1022 = vpop.f32.mrf.mxu0
  %v1023 = vadd.f32 0.0, %v1022
  %v1024 = vpop.f32.mrf.mxu0
  %v1025 = vpop.f32.mrf.mxu0
  %v1026 = vadd.f32 0.0, %v1025
  %v1027 = vpop.f32.mrf.mxu0
  %1028 = vmatprep.mubr.bf16.mxu0 0
  %1029 = vmatmul.mubr.bf16.gmra.mxu0 %v894
  %v1030 = vpop.f32.mrf.mxu0
  %v1031 = vadd.f32 0.0, %v1030
  %v1032 = vpop.f32.mrf.mxu0
  %v1033 = vpop.f32.mrf.mxu0
  %v1034 = vadd.f32 0.0, %v1033
  %v1035 = vpop.f32.mrf.mxu0
  %1036 = vmatprep.mubr.bf16.mxu0 0
  %1037 = vmatmul.mubr.bf16.gmra.mxu0 %v897
  %v1038 = vpop.f32.mrf.mxu0
  %v1039 = vadd.f32 0.0, %v1038
  %v1040 = vpop.f32.mrf.mxu0
  %v1041 = vpop.f32.mrf.mxu0
  %v1042 = vadd.f32 0.0, %v1041
  %v1043 = vpop.f32.mrf.mxu0
  %1044 = vmatprep.mubr.bf16.mxu0 0
  %1045 = vmatmul.mubr.bf16.gmra.mxu0 %v900
  %v1046 = vpop.f32.mrf.mxu0
  %v1047 = vadd.f32 0.0, %v1046
  %v1048 = vpop.f32.mrf.mxu0
  %v1049 = vpop.f32.mrf.mxu0
  %v1050 = vadd.f32 0.0, %v1049
  %v1051 = vpop.f32.mrf.mxu0
  %1052 = vmatprep.mubr.bf16.mxu0 0
  %1053 = vmatmul.mubr.bf16.gmra.mxu0 %v903
  %v1054 = vpop.f32.mrf.mxu0
  %v1055 = vadd.f32 0.0, %v1054
  %v1056 = vpop.f32.mrf.mxu0
  %v1057 = vpop.f32.mrf.mxu0
  %v1058 = vadd.f32 0.0, %v1057
  %v1059 = vpop.f32.mrf.mxu0
  %1060 = vmatprep.mubr.bf16.mxu0 0
  %1061 = vmatmul.mubr.bf16.gmra.mxu0 %v906
  %v1062 = vpop.f32.mrf.mxu0
  %v1063 = vadd.f32 0.0, %v1062
  %v1064 = vpop.f32.mrf.mxu0
  %v1065 = vpop.f32.mrf.mxu0
  %v1066 = vadd.f32 0.0, %v1065
  %v1067 = vpop.f32.mrf.mxu0
  %1068 = vdwg.mxu0
  %v1069 = vadd.f32 %v677, %v943
  %v1070 = vadd.f32 %v680, %v946
  %v1071 = vadd.f32 %v685, %v951
  %v1072 = vadd.f32 %v688, %v954
  %v1073 = vadd.f32 %v693, %v959
  %v1074 = vadd.f32 %v696, %v962
  %v1075 = vadd.f32 %v701, %v967
  %v1076 = vadd.f32 %v704, %v970
  %v1077 = vadd.f32 %v709, %v975
  %v1078 = vadd.f32 %v712, %v978
  %v1079 = vadd.f32 %v717, %v983
  %v1080 = vadd.f32 %v720, %v986
  %v1081 = vadd.f32 %v725, %v991
  %v1082 = vadd.f32 %v728, %v994
  %v1083 = vadd.f32 %v733, %v999
  %v1084 = vadd.f32 %v736, %v1002
  %v1085 = vadd.f32 %v741, %v1007
  %v1086 = vadd.f32 %v744, %v1010
  %v1087 = vadd.f32 %v749, %v1015
  %v1088 = vadd.f32 %v752, %v1018
  %v1089 = vadd.f32 %v757, %v1023
  %v1090 = vadd.f32 %v760, %v1026
  %v1091 = vadd.f32 %v765, %v1031
  %v1092 = vadd.f32 %v768, %v1034
  %v1093 = vadd.f32 %v773, %v1039
  %v1094 = vadd.f32 %v776, %v1042
  %v1095 = vadd.f32 %v781, %v1047
  %v1096 = vadd.f32 %v784, %v1050
  %v1097 = vadd.f32 %v789, %v1055
  %v1098 = vadd.f32 %v792, %v1058
  %v1099 = vadd.f32 %v797, %v1063
  %v1100 = vadd.f32 %v800, %v1066
  %v1101 = vld [vmem:[%s6] sm:$0x1]
  %v1103 = vlaneseq
  %v1104 = vshrl.u32 %v1103, 7
  %v1105 = vsub.s32 0, %v1104
  %v1106 = vrot.slane %v1101, %v1105
  %v1108 = vadd.f32 %v1069, %v1106
  %v1109 = vadd.f32 %v1070, %v1106
  %v1110 = vadd.f32 %v1071, %v1106
  %v1111 = vadd.f32 %v1072, %v1106
  %v1112 = vadd.f32 %v1073, %v1106
  %v1113 = vadd.f32 %v1074, %v1106
  %v1114 = vadd.f32 %v1075, %v1106
  %v1115 = vadd.f32 %v1076, %v1106
  %v1116 = vadd.f32 %v1077, %v1106
  %v1117 = vadd.f32 %v1078, %v1106
  %v1118 = vadd.f32 %v1079, %v1106
  %v1119 = vadd.f32 %v1080, %v1106
  %v1120 = vadd.f32 %v1081, %v1106
  %v1121 = vadd.f32 %v1082, %v1106
  %v1122 = vadd.f32 %v1083, %v1106
  %v1123 = vadd.f32 %v1084, %v1106
  %v1124 = vadd.f32 %v1085, %v1106
  %v1125 = vadd.f32 %v1086, %v1106
  %v1126 = vadd.f32 %v1087, %v1106
  %v1127 = vadd.f32 %v1088, %v1106
  %v1128 = vadd.f32 %v1089, %v1106
  %v1129 = vadd.f32 %v1090, %v1106
  %v1130 = vadd.f32 %v1091, %v1106
  %v1131 = vadd.f32 %v1092, %v1106
  %v1132 = vadd.f32 %v1093, %v1106
  %v1133 = vadd.f32 %v1094, %v1106
  %v1134 = vadd.f32 %v1095, %v1106
  %v1135 = vadd.f32 %v1096, %v1106
  %v1136 = vadd.f32 %v1097, %v1106
  %v1137 = vadd.f32 %v1098, %v1106
  %v1138 = vadd.f32 %v1099, %v1106
  %v1139 = vadd.f32 %v1100, %v1106
  %vm1140 = vcmp.gt.f32.partialorder %v1108, 0.0
  %vm1141 = vcmp.gt.f32.partialorder %v1109, 0.0
  %vm1142 = vcmp.gt.f32.partialorder %v1110, 0.0
  %vm1143 = vcmp.gt.f32.partialorder %v1111, 0.0
  %vm1144 = vcmp.gt.f32.partialorder %v1112, 0.0
  %vm1145 = vcmp.gt.f32.partialorder %v1113, 0.0
  %vm1146 = vcmp.gt.f32.partialorder %v1114, 0.0
  %vm1147 = vcmp.gt.f32.partialorder %v1115, 0.0
  %vm1148 = vcmp.gt.f32.partialorder %v1116, 0.0
  %vm1149 = vcmp.gt.f32.partialorder %v1117, 0.0
  %vm1150 = vcmp.gt.f32.partialorder %v1118, 0.0
  %vm1151 = vcmp.gt.f32.partialorder %v1119, 0.0
  %vm1152 = vcmp.gt.f32.partialorder %v1120, 0.0
  %vm1153 = vcmp.gt.f32.partialorder %v1121, 0.0
  %vm1154 = vcmp.gt.f32.partialorder %v1122, 0.0
  %vm1155 = vcmp.gt.f32.partialorder %v1123, 0.0
  %vm1156 = vcmp.gt.f32.partialorder %v1124, 0.0
  %vm1157 = vcmp.gt.f32.partialorder %v1125, 0.0
  %vm1158 = vcmp.gt.f32.partialorder %v1126, 0.0
  %vm1159 = vcmp.gt.f32.partialorder %v1127, 0.0
  %vm1160 = vcmp.gt.f32.partialorder %v1128, 0.0
  %vm1161 = vcmp.gt.f32.partialorder %v1129, 0.0
  %vm1162 = vcmp.gt.f32.partialorder %v1130, 0.0
  %vm1163 = vcmp.gt.f32.partialorder %v1131, 0.0
  %vm1164 = vcmp.gt.f32.partialorder %v1132, 0.0
  %vm1165 = vcmp.gt.f32.partialorder %v1133, 0.0
  %vm1166 = vcmp.gt.f32.partialorder %v1134, 0.0
  %vm1167 = vcmp.gt.f32.partialorder %v1135, 0.0
  %vm1168 = vcmp.gt.f32.partialorder %v1136, 0.0
  %vm1169 = vcmp.gt.f32.partialorder %v1137, 0.0
  %vm1170 = vcmp.gt.f32.partialorder %v1138, 0.0
  %vm1171 = vcmp.gt.f32.partialorder %v1139, 0.0
  %v1172 = vmul.f32 %v1108, 1.442695
  %v1173 = vpow.pop %v1172
  %v1174 = vmul.f32 %v1109, 1.442695
  %v1175 = vpow.pop %v1174
  %v1176 = vmul.f32 %v1110, 1.442695
  %v1177 = vpow.pop %v1176
  %v1178 = vmul.f32 %v1111, 1.442695
  %v1179 = vpow.pop %v1178
  %v1180 = vmul.f32 %v1112, 1.442695
  %v1181 = vpow.pop %v1180
  %v1182 = vmul.f32 %v1113, 1.442695
  %v1183 = vpow.pop %v1182
  %v1184 = vmul.f32 %v1114, 1.442695
  %v1185 = vpow.pop %v1184
  %v1186 = vmul.f32 %v1115, 1.442695
  %v1187 = vpow.pop %v1186
  %v1188 = vmul.f32 %v1116, 1.442695
  %v1189 = vpow.pop %v1188
  %v1190 = vmul.f32 %v1117, 1.442695
  %v1191 = vpow.pop %v1190
  %v1192 = vmul.f32 %v1118, 1.442695
  %v1193 = vpow.pop %v1192
  %v1194 = vmul.f32 %v1119, 1.442695
  %v1195 = vpow.pop %v1194
  %v1196 = vmul.f32 %v1120, 1.442695
  %v1197 = vpow.pop %v1196
  %v1198 = vmul.f32 %v1121, 1.442695
  %v1199 = vpow.pop %v1198
  %v1200 = vmul.f32 %v1122, 1.442695
  %v1201 = vpow.pop %v1200
  %v1202 = vmul.f32 %v1123, 1.442695
  %v1203 = vpow.pop %v1202
  %v1204 = vmul.f32 %v1124, 1.442695
  %v1205 = vpow.pop %v1204
  %v1206 = vmul.f32 %v1125, 1.442695
  %v1207 = vpow.pop %v1206
  %v1208 = vmul.f32 %v1126, 1.442695
  %v1209 = vpow.pop %v1208
  %v1210 = vmul.f32 %v1127, 1.442695
  %v1211 = vpow.pop %v1210
  %v1212 = vmul.f32 %v1128, 1.442695
  %v1213 = vpow.pop %v1212
  %v1214 = vmul.f32 %v1129, 1.442695
  %v1215 = vpow.pop %v1214
  %v1216 = vmul.f32 %v1130, 1.442695
  %v1217 = vpow.pop %v1216
  %v1218 = vmul.f32 %v1131, 1.442695
  %v1219 = vpow.pop %v1218
  %v1220 = vmul.f32 %v1132, 1.442695
  %v1221 = vpow.pop %v1220
  %v1222 = vmul.f32 %v1133, 1.442695
  %v1223 = vpow.pop %v1222
  %v1224 = vmul.f32 %v1134, 1.442695
  %v1225 = vpow.pop %v1224
  %v1226 = vmul.f32 %v1135, 1.442695
  %v1227 = vpow.pop %v1226
  %v1228 = vmul.f32 %v1136, 1.442695
  %v1229 = vpow.pop %v1228
  %v1230 = vmul.f32 %v1137, 1.442695
  %v1231 = vpow.pop %v1230
  %v1232 = vmul.f32 %v1138, 1.442695
  %v1233 = vpow.pop %v1232
  %v1234 = vmul.f32 %v1139, 1.442695
  %v1235 = vpow.pop %v1234
  %v1236 = vsub.f32 %v1173, 1.0
  %v1237 = vsub.f32 %v1175, 1.0
  %v1238 = vsub.f32 %v1177, 1.0
  %v1239 = vsub.f32 %v1179, 1.0
  %v1240 = vsub.f32 %v1181, 1.0
  %v1241 = vsub.f32 %v1183, 1.0
  %v1242 = vsub.f32 %v1185, 1.0
  %v1243 = vsub.f32 %v1187, 1.0
  %v1244 = vsub.f32 %v1189, 1.0
  %v1245 = vsub.f32 %v1191, 1.0
  %v1246 = vsub.f32 %v1193, 1.0
  %v1247 = vsub.f32 %v1195, 1.0
  %v1248 = vsub.f32 %v1197, 1.0
  %v1249 = vsub.f32 %v1199, 1.0
  %v1250 = vsub.f32 %v1201, 1.0
  %v1251 = vsub.f32 %v1203, 1.0
  %v1252 = vsub.f32 %v1205, 1.0
  %v1253 = vsub.f32 %v1207, 1.0
  %v1254 = vsub.f32 %v1209, 1.0
  %v1255 = vsub.f32 %v1211, 1.0
  %v1256 = vsub.f32 %v1213, 1.0
  %v1257 = vsub.f32 %v1215, 1.0
  %v1258 = vsub.f32 %v1217, 1.0
  %v1259 = vsub.f32 %v1219, 1.0
  %v1260 = vsub.f32 %v1221, 1.0
  %v1261 = vsub.f32 %v1223, 1.0
  %v1262 = vsub.f32 %v1225, 1.0
  %v1263 = vsub.f32 %v1227, 1.0
  %v1264 = vsub.f32 %v1229, 1.0
  %v1265 = vsub.f32 %v1231, 1.0
  %v1266 = vsub.f32 %v1233, 1.0
  %v1267 = vsub.f32 %v1235, 1.0
  %v1268 = vmul.f32 %v1236, 1.6732632
  %v1269 = vmul.f32 %v1237, 1.6732632
  %v1270 = vmul.f32 %v1238, 1.6732632
  %v1271 = vmul.f32 %v1239, 1.6732632
  %v1272 = vmul.f32 %v1240, 1.6732632
  %v1273 = vmul.f32 %v1241, 1.6732632
  %v1274 = vmul.f32 %v1242, 1.6732632
  %v1275 = vmul.f32 %v1243, 1.6732632
  %v1276 = vmul.f32 %v1244, 1.6732632
  %v1277 = vmul.f32 %v1245, 1.6732632
  %v1278 = vmul.f32 %v1246, 1.6732632
  %v1279 = vmul.f32 %v1247, 1.6732632
  %v1280 = vmul.f32 %v1248, 1.6732632
  %v1281 = vmul.f32 %v1249, 1.6732632
  %v1282 = vmul.f32 %v1250, 1.6732632
  %v1283 = vmul.f32 %v1251, 1.6732632
  %v1284 = vmul.f32 %v1252, 1.6732632
  %v1285 = vmul.f32 %v1253, 1.6732632
  %v1286 = vmul.f32 %v1254, 1.6732632
  %v1287 = vmul.f32 %v1255, 1.6732632
  %v1288 = vmul.f32 %v1256, 1.6732632
  %v1289 = vmul.f32 %v1257, 1.6732632
  %v1290 = vmul.f32 %v1258, 1.6732632
  %v1291 = vmul.f32 %v1259, 1.6732632
  %v1292 = vmul.f32 %v1260, 1.6732632
  %v1293 = vmul.f32 %v1261, 1.6732632
  %v1294 = vmul.f32 %v1262, 1.6732632
  %v1295 = vmul.f32 %v1263, 1.6732632
  %v1296 = vmul.f32 %v1264, 1.6732632
  %v1297 = vmul.f32 %v1265, 1.6732632
  %v1298 = vmul.f32 %v1266, 1.6732632
  %v1299 = vmul.f32 %v1267, 1.6732632
  %v1300 = vsel %vm1140, %v1108, %v1268
  %v1301 = vsel %vm1141, %v1109, %v1269
  %v1302 = vsel %vm1142, %v1110, %v1270
  %v1303 = vsel %vm1143, %v1111, %v1271
  %v1304 = vsel %vm1144, %v1112, %v1272
  %v1305 = vsel %vm1145, %v1113, %v1273
  %v1306 = vsel %vm1146, %v1114, %v1274
  %v1307 = vsel %vm1147, %v1115, %v1275
  %v1308 = vsel %vm1148, %v1116, %v1276
  %v1309 = vsel %vm1149, %v1117, %v1277
  %v1310 = vsel %vm1150, %v1118, %v1278
  %v1311 = vsel %vm1151, %v1119, %v1279
  %v1312 = vsel %vm1152, %v1120, %v1280
  %v1313 = vsel %vm1153, %v1121, %v1281
  %v1314 = vsel %vm1154, %v1122, %v1282
  %v1315 = vsel %vm1155, %v1123, %v1283
  %v1316 = vsel %vm1156, %v1124, %v1284
  %v1317 = vsel %vm1157, %v1125, %v1285
  %v1318 = vsel %vm1158, %v1126, %v1286
  %v1319 = vsel %vm1159, %v1127, %v1287
  %v1320 = vsel %vm1160, %v1128, %v1288
  %v1321 = vsel %vm1161, %v1129, %v1289
  %v1322 = vsel %vm1162, %v1130, %v1290
  %v1323 = vsel %vm1163, %v1131, %v1291
  %v1324 = vsel %vm1164, %v1132, %v1292
  %v1325 = vsel %vm1165, %v1133, %v1293
  %v1326 = vsel %vm1166, %v1134, %v1294
  %v1327 = vsel %vm1167, %v1135, %v1295
  %v1328 = vsel %vm1168, %v1136, %v1296
  %v1329 = vsel %vm1169, %v1137, %v1297
  %v1330 = vsel %vm1170, %v1138, %v1298
  %v1331 = vsel %vm1171, %v1139, %v1299
  %v1332 = vmul.f32 %v1300, 1.050701
  %v1333 = vmul.f32 %v1301, 1.050701
  %v1334 = vmul.f32 %v1302, 1.050701
  %v1335 = vmul.f32 %v1303, 1.050701
  %v1336 = vmul.f32 %v1304, 1.050701
  %v1337 = vmul.f32 %v1305, 1.050701
  %v1338 = vmul.f32 %v1306, 1.050701
  %v1339 = vmul.f32 %v1307, 1.050701
  %v1340 = vmul.f32 %v1308, 1.050701
  %v1341 = vmul.f32 %v1309, 1.050701
  %v1342 = vmul.f32 %v1310, 1.050701
  %v1343 = vmul.f32 %v1311, 1.050701
  %v1344 = vmul.f32 %v1312, 1.050701
  %v1345 = vmul.f32 %v1313, 1.050701
  %v1346 = vmul.f32 %v1314, 1.050701
  %v1347 = vmul.f32 %v1315, 1.050701
  %v1348 = vmul.f32 %v1316, 1.050701
  %v1349 = vmul.f32 %v1317, 1.050701
  %v1350 = vmul.f32 %v1318, 1.050701
  %v1351 = vmul.f32 %v1319, 1.050701
  %v1352 = vmul.f32 %v1320, 1.050701
  %v1353 = vmul.f32 %v1321, 1.050701
  %v1354 = vmul.f32 %v1322, 1.050701
  %v1355 = vmul.f32 %v1323, 1.050701
  %v1356 = vmul.f32 %v1324, 1.050701
  %v1357 = vmul.f32 %v1325, 1.050701
  %v1358 = vmul.f32 %v1326, 1.050701
  %v1359 = vmul.f32 %v1327, 1.050701
  %v1360 = vmul.f32 %v1328, 1.050701
  %v1361 = vmul.f32 %v1329, 1.050701
  %v1362 = vmul.f32 %v1330, 1.050701
  %v1363 = vmul.f32 %v1331, 1.050701
  %v1364 = vpack.c.bf16 %v1333, %v1332
  %v1365 = vpack.c.bf16 %v1335, %v1334
  %v1366 = vpack.c.bf16 %v1337, %v1336
  %v1367 = vpack.c.bf16 %v1339, %v1338
  %v1368 = vpack.c.bf16 %v1341, %v1340
  %v1369 = vpack.c.bf16 %v1343, %v1342
  %v1370 = vpack.c.bf16 %v1345, %v1344
  %v1371 = vpack.c.bf16 %v1347, %v1346
  %v1372 = vpack.c.bf16 %v1349, %v1348
  %v1373 = vpack.c.bf16 %v1351, %v1350
  %v1374 = vpack.c.bf16 %v1353, %v1352
  %v1375 = vpack.c.bf16 %v1355, %v1354
  %v1376 = vpack.c.bf16 %v1357, %v1356
  %v1377 = vpack.c.bf16 %v1359, %v1358
  %v1378 = vpack.c.bf16 %v1361, %v1360
  %v1379 = vpack.c.bf16 %v1363, %v1362
  %v1380 = vld [vmem:[%s7] sm:$0xf]
  %v1381 = vld [vmem:[%s7 + $0x4] sm:$0xf]
  %v1382 = vld [vmem:[%s7 + $0x8] sm:$0xf]
  %v1383 = vld [vmem:[%s7 + $0xc] sm:$0xf]
  %v1384 = vld [vmem:[%s7 + $0x10] sm:$0xf]
  %v1385 = vld [vmem:[%s7 + $0x14] sm:$0xf]
  %v1386 = vld [vmem:[%s7 + $0x18] sm:$0xf]
  %v1387 = vld [vmem:[%s7 + $0x1c] sm:$0xf]
  %v1388 = vld [vmem:[%s7 + $0x20] sm:$0xf]
  %v1389 = vld [vmem:[%s7 + $0x24] sm:$0xf]
  %v1390 = vld [vmem:[%s7 + $0x28] sm:$0xf]
  %v1391 = vld [vmem:[%s7 + $0x2c] sm:$0xf]
  %v1392 = vld [vmem:[%s7 + $0x30] sm:$0xf]
  %v1393 = vld [vmem:[%s7 + $0x34] sm:$0xf]
  %v1394 = vld [vmem:[%s7 + $0x38] sm:$0xf]
  %v1395 = vld [vmem:[%s7 + $0x3c] sm:$0xf]
  %v1396 = vld [vmem:[%s8] sm:$0x1]
  %v1398 = vlaneseq
  %v1399 = vshrl.u32 %v1398, 7
  %v1400 = vsub.s32 0, %v1399
  %v1401 = vrot.slane %v1396, %v1400
  %v1419 = vunpack.c.l.b16 %v1380
  %v1420 = vunpack.c.l.b16 %v1381
  %v1421 = vunpack.c.l.b16 %v1382
  %v1422 = vunpack.c.l.b16 %v1383
  %v1423 = vunpack.c.l.b16 %v1384
  %v1424 = vunpack.c.l.b16 %v1385
  %v1425 = vunpack.c.l.b16 %v1386
  %v1426 = vunpack.c.l.b16 %v1387
  %v1427 = vunpack.c.l.b16 %v1388
  %v1428 = vunpack.c.l.b16 %v1389
  %v1429 = vunpack.c.l.b16 %v1390
  %v1430 = vunpack.c.l.b16 %v1391
  %v1431 = vunpack.c.l.b16 %v1392
  %v1432 = vunpack.c.l.b16 %v1393
  %v1433 = vunpack.c.l.b16 %v1394
  %v1434 = vunpack.c.l.b16 %v1395
  %v1435 = vpack.c.b16 %v1420, %v1419
  %v1436 = vpack.c.b16 %v1422, %v1421
  %v1437 = vpack.c.b16 %v1424, %v1423
  %v1438 = vpack.c.b16 %v1426, %v1425
  %v1439 = vpack.c.b16 %v1428, %v1427
  %v1440 = vpack.c.b16 %v1430, %v1429
  %v1441 = vpack.c.b16 %v1432, %v1431
  %v1442 = vpack.c.b16 %v1434, %v1433
  %1451 = vmatprep.subr.bf16.mxu0 0
  %1452 = vmatpush1.bf16.msra.mxu0 %v1442
  %1453 = vmatprep.subr.bf16.mxu0 0
  %1454 = vmatpush1.bf16.msra.mxu0 %v1441
  %1455 = vmatprep.subr.bf16.mxu0 0
  %1456 = vmatpush1.bf16.msra.mxu0 %v1440
  %1457 = vmatprep.subr.bf16.mxu0 0
  %1458 = vmatpush1.bf16.msra.mxu0 %v1439
  %1459 = vmatprep.subr.bf16.mxu0 0
  %1460 = vmatpush1.bf16.msra.mxu0 %v1438
  %1461 = vmatprep.subr.bf16.mxu0 0
  %1462 = vmatpush1.bf16.msra.mxu0 %v1437
  %1463 = vmatprep.subr.bf16.mxu0 0
  %1464 = vmatpush1.bf16.msra.mxu0 %v1436
  %1465 = vmatprep.subr.bf16.mxu0 0
  %1466 = vmatpush1.bf16.msra.mxu0 %v1435
  %1467 = vmatprep.subr.bf16.mxu0 0
  %1468 = vmatpush2.bf16.msra.mxu0 0
  %1469 = vmatprep.subr.bf16.mxu0 0
  %1470 = vmatpush2.bf16.msra.mxu0 0
  %1471 = vmatprep.subr.bf16.mxu0 0
  %1472 = vmatpush2.bf16.msra.mxu0 0
  %1473 = vmatprep.subr.bf16.mxu0 0
  %1474 = vmatpush2.bf16.msra.mxu0 0
  %1475 = vmatprep.subr.bf16.mxu0 0
  %1476 = vmatpush2.bf16.msra.mxu0 0
  %1477 = vmatprep.subr.bf16.mxu0 0
  %1478 = vmatpush2.bf16.msra.mxu0 0
  %1479 = vmatprep.subr.bf16.mxu0 0
  %1480 = vmatpush2.bf16.msra.mxu0 0
  %1481 = vmatprep.subr.bf16.mxu0 0
  %1482 = vmatpush2.bf16.msra.mxu0 0
  %1483 = vmatprep.mubr.bf16.mxu0 0
  %1484 = vmatmul.mubr.bf16.gmra.mxu0 %v1364
  %v1485 = vpop.f32.mrf.mxu0
  %v1486 = vadd.f32 %v1401, %v1485
  %v1487 = vpop.f32.mrf.mxu0
  %v1488 = vpop.f32.mrf.mxu0
  %v1489 = vadd.f32 %v1401, %v1488
  %v1490 = vpop.f32.mrf.mxu0
  %1491 = vmatprep.mubr.bf16.mxu0 0
  %1492 = vmatmul.mubr.bf16.gmra.mxu0 %v1365
  %v1493 = vpop.f32.mrf.mxu0
  %v1494 = vadd.f32 %v1401, %v1493
  %v1495 = vpop.f32.mrf.mxu0
  %v1496 = vpop.f32.mrf.mxu0
  %v1497 = vadd.f32 %v1401, %v1496
  %v1498 = vpop.f32.mrf.mxu0
  %1499 = vmatprep.mubr.bf16.mxu0 0
  %1500 = vmatmul.mubr.bf16.gmra.mxu0 %v1366
  %v1501 = vpop.f32.mrf.mxu0
  %v1502 = vadd.f32 %v1401, %v1501
  %v1503 = vpop.f32.mrf.mxu0
  %v1504 = vpop.f32.mrf.mxu0
  %v1505 = vadd.f32 %v1401, %v1504
  %v1506 = vpop.f32.mrf.mxu0
  %1507 = vmatprep.mubr.bf16.mxu0 0
  %1508 = vmatmul.mubr.bf16.gmra.mxu0 %v1367
  %v1509 = vpop.f32.mrf.mxu0
  %v1510 = vadd.f32 %v1401, %v1509
  %v1511 = vpop.f32.mrf.mxu0
  %v1512 = vpop.f32.mrf.mxu0
  %v1513 = vadd.f32 %v1401, %v1512
  %v1514 = vpop.f32.mrf.mxu0
  %1515 = vmatprep.mubr.bf16.mxu0 0
  %1516 = vmatmul.mubr.bf16.gmra.mxu0 %v1368
  %v1517 = vpop.f32.mrf.mxu0
  %v1518 = vadd.f32 %v1401, %v1517
  %v1519 = vpop.f32.mrf.mxu0
  %v1520 = vpop.f32.mrf.mxu0
  %v1521 = vadd.f32 %v1401, %v1520
  %v1522 = vpop.f32.mrf.mxu0
  %1523 = vmatprep.mubr.bf16.mxu0 0
  %1524 = vmatmul.mubr.bf16.gmra.mxu0 %v1369
  %v1525 = vpop.f32.mrf.mxu0
  %v1526 = vadd.f32 %v1401, %v1525
  %v1527 = vpop.f32.mrf.mxu0
  %v1528 = vpop.f32.mrf.mxu0
  %v1529 = vadd.f32 %v1401, %v1528
  %v1530 = vpop.f32.mrf.mxu0
  %1531 = vmatprep.mubr.bf16.mxu0 0
  %1532 = vmatmul.mubr.bf16.gmra.mxu0 %v1370
  %v1533 = vpop.f32.mrf.mxu0
  %v1534 = vadd.f32 %v1401, %v1533
  %v1535 = vpop.f32.mrf.mxu0
  %v1536 = vpop.f32.mrf.mxu0
  %v1537 = vadd.f32 %v1401, %v1536
  %v1538 = vpop.f32.mrf.mxu0
  %1539 = vmatprep.mubr.bf16.mxu0 0
  %1540 = vmatmul.mubr.bf16.gmra.mxu0 %v1371
  %v1541 = vpop.f32.mrf.mxu0
  %v1542 = vadd.f32 %v1401, %v1541
  %v1543 = vpop.f32.mrf.mxu0
  %v1544 = vpop.f32.mrf.mxu0
  %v1545 = vadd.f32 %v1401, %v1544
  %v1546 = vpop.f32.mrf.mxu0
  %1547 = vmatprep.mubr.bf16.mxu0 0
  %1548 = vmatmul.mubr.bf16.gmra.mxu0 %v1372
  %v1549 = vpop.f32.mrf.mxu0
  %v1550 = vadd.f32 %v1401, %v1549
  %v1551 = vpop.f32.mrf.mxu0
  %v1552 = vpop.f32.mrf.mxu0
  %v1553 = vadd.f32 %v1401, %v1552
  %v1554 = vpop.f32.mrf.mxu0
  %1555 = vmatprep.mubr.bf16.mxu0 0
  %1556 = vmatmul.mubr.bf16.gmra.mxu0 %v1373
  %v1557 = vpop.f32.mrf.mxu0
  %v1558 = vadd.f32 %v1401, %v1557
  %v1559 = vpop.f32.mrf.mxu0
  %v1560 = vpop.f32.mrf.mxu0
  %v1561 = vadd.f32 %v1401, %v1560
  %v1562 = vpop.f32.mrf.mxu0
  %1563 = vmatprep.mubr.bf16.mxu0 0
  %1564 = vmatmul.mubr.bf16.gmra.mxu0 %v1374
  %v1565 = vpop.f32.mrf.mxu0
  %v1566 = vadd.f32 %v1401, %v1565
  %v1567 = vpop.f32.mrf.mxu0
  %v1568 = vpop.f32.mrf.mxu0
  %v1569 = vadd.f32 %v1401, %v1568
  %v1570 = vpop.f32.mrf.mxu0
  %1571 = vmatprep.mubr.bf16.mxu0 0
  %1572 = vmatmul.mubr.bf16.gmra.mxu0 %v1375
  %v1573 = vpop.f32.mrf.mxu0
  %v1574 = vadd.f32 %v1401, %v1573
  %v1575 = vpop.f32.mrf.mxu0
  %v1576 = vpop.f32.mrf.mxu0
  %v1577 = vadd.f32 %v1401, %v1576
  %v1578 = vpop.f32.mrf.mxu0
  %1579 = vmatprep.mubr.bf16.mxu0 0
  %1580 = vmatmul.mubr.bf16.gmra.mxu0 %v1376
  %v1581 = vpop.f32.mrf.mxu0
  %v1582 = vadd.f32 %v1401, %v1581
  %v1583 = vpop.f32.mrf.mxu0
  %v1584 = vpop.f32.mrf.mxu0
  %v1585 = vadd.f32 %v1401, %v1584
  %v1586 = vpop.f32.mrf.mxu0
  %1587 = vmatprep.mubr.bf16.mxu0 0
  %1588 = vmatmul.mubr.bf16.gmra.mxu0 %v1377
  %v1589 = vpop.f32.mrf.mxu0
  %v1590 = vadd.f32 %v1401, %v1589
  %v1591 = vpop.f32.mrf.mxu0
  %v1592 = vpop.f32.mrf.mxu0
  %v1593 = vadd.f32 %v1401, %v1592
  %v1594 = vpop.f32.mrf.mxu0
  %1595 = vmatprep.mubr.bf16.mxu0 0
  %1596 = vmatmul.mubr.bf16.gmra.mxu0 %v1378
  %v1597 = vpop.f32.mrf.mxu0
  %v1598 = vadd.f32 %v1401, %v1597
  %v1599 = vpop.f32.mrf.mxu0
  %v1600 = vpop.f32.mrf.mxu0
  %v1601 = vadd.f32 %v1401, %v1600
  %v1602 = vpop.f32.mrf.mxu0
  %1603 = vmatprep.mubr.bf16.mxu0 0
  %1604 = vmatmul.mubr.bf16.gmra.mxu0 %v1379
  %v1605 = vpop.f32.mrf.mxu0
  %v1606 = vadd.f32 %v1401, %v1605
  %v1607 = vpop.f32.mrf.mxu0
  %v1608 = vpop.f32.mrf.mxu0
  %v1609 = vadd.f32 %v1401, %v1608
  %v1610 = vpop.f32.mrf.mxu0
  %1611 = vdwg.mxu0
  %vm1612 = vcmp.gt.f32.partialorder %v1486, 0.0
  %vm1613 = vcmp.gt.f32.partialorder %v1489, 0.0
  %vm1614 = vcmp.gt.f32.partialorder %v1494, 0.0
  %vm1615 = vcmp.gt.f32.partialorder %v1497, 0.0
  %vm1616 = vcmp.gt.f32.partialorder %v1502, 0.0
  %vm1617 = vcmp.gt.f32.partialorder %v1505, 0.0
  %vm1618 = vcmp.gt.f32.partialorder %v1510, 0.0
  %vm1619 = vcmp.gt.f32.partialorder %v1513, 0.0
  %vm1620 = vcmp.gt.f32.partialorder %v1518, 0.0
  %vm1621 = vcmp.gt.f32.partialorder %v1521, 0.0
  %vm1622 = vcmp.gt.f32.partialorder %v1526, 0.0
  %vm1623 = vcmp.gt.f32.partialorder %v1529, 0.0
  %vm1624 = vcmp.gt.f32.partialorder %v1534, 0.0
  %vm1625 = vcmp.gt.f32.partialorder %v1537, 0.0
  %vm1626 = vcmp.gt.f32.partialorder %v1542, 0.0
  %vm1627 = vcmp.gt.f32.partialorder %v1545, 0.0
  %vm1628 = vcmp.gt.f32.partialorder %v1550, 0.0
  %vm1629 = vcmp.gt.f32.partialorder %v1553, 0.0
  %vm1630 = vcmp.gt.f32.partialorder %v1558, 0.0
  %vm1631 = vcmp.gt.f32.partialorder %v1561, 0.0
  %vm1632 = vcmp.gt.f32.partialorder %v1566, 0.0
  %vm1633 = vcmp.gt.f32.partialorder %v1569, 0.0
  %vm1634 = vcmp.gt.f32.partialorder %v1574, 0.0
  %vm1635 = vcmp.gt.f32.partialorder %v1577, 0.0
  %vm1636 = vcmp.gt.f32.partialorder %v1582, 0.0
  %vm1637 = vcmp.gt.f32.partialorder %v1585, 0.0
  %vm1638 = vcmp.gt.f32.partialorder %v1590, 0.0
  %vm1639 = vcmp.gt.f32.partialorder %v1593, 0.0
  %vm1640 = vcmp.gt.f32.partialorder %v1598, 0.0
  %vm1641 = vcmp.gt.f32.partialorder %v1601, 0.0
  %vm1642 = vcmp.gt.f32.partialorder %v1606, 0.0
  %vm1643 = vcmp.gt.f32.partialorder %v1609, 0.0
  %v1644 = vmul.f32 %v1486, 1.442695
  %v1645 = vpow.pop %v1644
  %v1646 = vmul.f32 %v1489, 1.442695
  %v1647 = vpow.pop %v1646
  %v1648 = vmul.f32 %v1494, 1.442695
  %v1649 = vpow.pop %v1648
  %v1650 = vmul.f32 %v1497, 1.442695
  %v1651 = vpow.pop %v1650
  %v1652 = vmul.f32 %v1502, 1.442695
  %v1653 = vpow.pop %v1652
  %v1654 = vmul.f32 %v1505, 1.442695
  %v1655 = vpow.pop %v1654
  %v1656 = vmul.f32 %v1510, 1.442695
  %v1657 = vpow.pop %v1656
  %v1658 = vmul.f32 %v1513, 1.442695
  %v1659 = vpow.pop %v1658
  %v1660 = vmul.f32 %v1518, 1.442695
  %v1661 = vpow.pop %v1660
  %v1662 = vmul.f32 %v1521, 1.442695
  %v1663 = vpow.pop %v1662
  %v1664 = vmul.f32 %v1526, 1.442695
  %v1665 = vpow.pop %v1664
  %v1666 = vmul.f32 %v1529, 1.442695
  %v1667 = vpow.pop %v1666
  %v1668 = vmul.f32 %v1534, 1.442695
  %v1669 = vpow.pop %v1668
  %v1670 = vmul.f32 %v1537, 1.442695
  %v1671 = vpow.pop %v1670
  %v1672 = vmul.f32 %v1542, 1.442695
  %v1673 = vpow.pop %v1672
  %v1674 = vmul.f32 %v1545, 1.442695
  %v1675 = vpow.pop %v1674
  %v1676 = vmul.f32 %v1550, 1.442695
  %v1677 = vpow.pop %v1676
  %v1678 = vmul.f32 %v1553, 1.442695
  %v1679 = vpow.pop %v1678
  %v1680 = vmul.f32 %v1558, 1.442695
  %v1681 = vpow.pop %v1680
  %v1682 = vmul.f32 %v1561, 1.442695
  %v1683 = vpow.pop %v1682
  %v1684 = vmul.f32 %v1566, 1.442695
  %v1685 = vpow.pop %v1684
  %v1686 = vmul.f32 %v1569, 1.442695
  %v1687 = vpow.pop %v1686
  %v1688 = vmul.f32 %v1574, 1.442695
  %v1689 = vpow.pop %v1688
  %v1690 = vmul.f32 %v1577, 1.442695
  %v1691 = vpow.pop %v1690
  %v1692 = vmul.f32 %v1582, 1.442695
  %v1693 = vpow.pop %v1692
  %v1694 = vmul.f32 %v1585, 1.442695
  %v1695 = vpow.pop %v1694
  %v1696 = vmul.f32 %v1590, 1.442695
  %v1697 = vpow.pop %v1696
  %v1698 = vmul.f32 %v1593, 1.442695
  %v1699 = vpow.pop %v1698
  %v1700 = vmul.f32 %v1598, 1.442695
  %v1701 = vpow.pop %v1700
  %v1702 = vmul.f32 %v1601, 1.442695
  %v1703 = vpow.pop %v1702
  %v1704 = vmul.f32 %v1606, 1.442695
  %v1705 = vpow.pop %v1704
  %v1706 = vmul.f32 %v1609, 1.442695
  %v1707 = vpow.pop %v1706
  %v1708 = vsub.f32 %v1645, 1.0
  %v1709 = vsub.f32 %v1647, 1.0
  %v1710 = vsub.f32 %v1649, 1.0
  %v1711 = vsub.f32 %v1651, 1.0
  %v1712 = vsub.f32 %v1653, 1.0
  %v1713 = vsub.f32 %v1655, 1.0
  %v1714 = vsub.f32 %v1657, 1.0
  %v1715 = vsub.f32 %v1659, 1.0
  %v1716 = vsub.f32 %v1661, 1.0
  %v1717 = vsub.f32 %v1663, 1.0
  %v1718 = vsub.f32 %v1665, 1.0
  %v1719 = vsub.f32 %v1667, 1.0
  %v1720 = vsub.f32 %v1669, 1.0
  %v1721 = vsub.f32 %v1671, 1.0
  %v1722 = vsub.f32 %v1673, 1.0
  %v1723 = vsub.f32 %v1675, 1.0
  %v1724 = vsub.f32 %v1677, 1.0
  %v1725 = vsub.f32 %v1679, 1.0
  %v1726 = vsub.f32 %v1681, 1.0
  %v1727 = vsub.f32 %v1683, 1.0
  %v1728 = vsub.f32 %v1685, 1.0
  %v1729 = vsub.f32 %v1687, 1.0
  %v1730 = vsub.f32 %v1689, 1.0
  %v1731 = vsub.f32 %v1691, 1.0
  %v1732 = vsub.f32 %v1693, 1.0
  %v1733 = vsub.f32 %v1695, 1.0
  %v1734 = vsub.f32 %v1697, 1.0
  %v1735 = vsub.f32 %v1699, 1.0
  %v1736 = vsub.f32 %v1701, 1.0
  %v1737 = vsub.f32 %v1703, 1.0
  %v1738 = vsub.f32 %v1705, 1.0
  %v1739 = vsub.f32 %v1707, 1.0
  %v1740 = vmul.f32 %v1708, 1.6732632
  %v1741 = vmul.f32 %v1709, 1.6732632
  %v1742 = vmul.f32 %v1710, 1.6732632
  %v1743 = vmul.f32 %v1711, 1.6732632
  %v1744 = vmul.f32 %v1712, 1.6732632
  %v1745 = vmul.f32 %v1713, 1.6732632
  %v1746 = vmul.f32 %v1714, 1.6732632
  %v1747 = vmul.f32 %v1715, 1.6732632
  %v1748 = vmul.f32 %v1716, 1.6732632
  %v1749 = vmul.f32 %v1717, 1.6732632
  %v1750 = vmul.f32 %v1718, 1.6732632
  %v1751 = vmul.f32 %v1719, 1.6732632
  %v1752 = vmul.f32 %v1720, 1.6732632
  %v1753 = vmul.f32 %v1721, 1.6732632
  %v1754 = vmul.f32 %v1722, 1.6732632
  %v1755 = vmul.f32 %v1723, 1.6732632
  %v1756 = vmul.f32 %v1724, 1.6732632
  %v1757 = vmul.f32 %v1725, 1.6732632
  %v1758 = vmul.f32 %v1726, 1.6732632
  %v1759 = vmul.f32 %v1727, 1.6732632
  %v1760 = vmul.f32 %v1728, 1.6732632
  %v1761 = vmul.f32 %v1729, 1.6732632
  %v1762 = vmul.f32 %v1730, 1.6732632
  %v1763 = vmul.f32 %v1731, 1.6732632
  %v1764 = vmul.f32 %v1732, 1.6732632
  %v1765 = vmul.f32 %v1733, 1.6732632
  %v1766 = vmul.f32 %v1734, 1.6732632
  %v1767 = vmul.f32 %v1735, 1.6732632
  %v1768 = vmul.f32 %v1736, 1.6732632
  %v1769 = vmul.f32 %v1737, 1.6732632
  %v1770 = vmul.f32 %v1738, 1.6732632
  %v1771 = vmul.f32 %v1739, 1.6732632
  %v1772 = vsel %vm1612, %v1486, %v1740
  %v1773 = vsel %vm1613, %v1489, %v1741
  %v1774 = vsel %vm1614, %v1494, %v1742
  %v1775 = vsel %vm1615, %v1497, %v1743
  %v1776 = vsel %vm1616, %v1502, %v1744
  %v1777 = vsel %vm1617, %v1505, %v1745
  %v1778 = vsel %vm1618, %v1510, %v1746
  %v1779 = vsel %vm1619, %v1513, %v1747
  %v1780 = vsel %vm1620, %v1518, %v1748
  %v1781 = vsel %vm1621, %v1521, %v1749
  %v1782 = vsel %vm1622, %v1526, %v1750
  %v1783 = vsel %vm1623, %v1529, %v1751
  %v1784 = vsel %vm1624, %v1534, %v1752
  %v1785 = vsel %vm1625, %v1537, %v1753
  %v1786 = vsel %vm1626, %v1542, %v1754
  %v1787 = vsel %vm1627, %v1545, %v1755
  %v1788 = vsel %vm1628, %v1550, %v1756
  %v1789 = vsel %vm1629, %v1553, %v1757
  %v1790 = vsel %vm1630, %v1558, %v1758
  %v1791 = vsel %vm1631, %v1561, %v1759
  %v1792 = vsel %vm1632, %v1566, %v1760
  %v1793 = vsel %vm1633, %v1569, %v1761
  %v1794 = vsel %vm1634, %v1574, %v1762
  %v1795 = vsel %vm1635, %v1577, %v1763
  %v1796 = vsel %vm1636, %v1582, %v1764
  %v1797 = vsel %vm1637, %v1585, %v1765
  %v1798 = vsel %vm1638, %v1590, %v1766
  %v1799 = vsel %vm1639, %v1593, %v1767
  %v1800 = vsel %vm1640, %v1598, %v1768
  %v1801 = vsel %vm1641, %v1601, %v1769
  %v1802 = vsel %vm1642, %v1606, %v1770
  %v1803 = vsel %vm1643, %v1609, %v1771
  %v1804 = vmul.f32 %v1772, 1.050701
  %v1805 = vmul.f32 %v1773, 1.050701
  %v1806 = vmul.f32 %v1774, 1.050701
  %v1807 = vmul.f32 %v1775, 1.050701
  %v1808 = vmul.f32 %v1776, 1.050701
  %v1809 = vmul.f32 %v1777, 1.050701
  %v1810 = vmul.f32 %v1778, 1.050701
  %v1811 = vmul.f32 %v1779, 1.050701
  %v1812 = vmul.f32 %v1780, 1.050701
  %v1813 = vmul.f32 %v1781, 1.050701
  %v1814 = vmul.f32 %v1782, 1.050701
  %v1815 = vmul.f32 %v1783, 1.050701
  %v1816 = vmul.f32 %v1784, 1.050701
  %v1817 = vmul.f32 %v1785, 1.050701
  %v1818 = vmul.f32 %v1786, 1.050701
  %v1819 = vmul.f32 %v1787, 1.050701
  %v1820 = vmul.f32 %v1788, 1.050701
  %v1821 = vmul.f32 %v1789, 1.050701
  %v1822 = vmul.f32 %v1790, 1.050701
  %v1823 = vmul.f32 %v1791, 1.050701
  %v1824 = vmul.f32 %v1792, 1.050701
  %v1825 = vmul.f32 %v1793, 1.050701
  %v1826 = vmul.f32 %v1794, 1.050701
  %v1827 = vmul.f32 %v1795, 1.050701
  %v1828 = vmul.f32 %v1796, 1.050701
  %v1829 = vmul.f32 %v1797, 1.050701
  %v1830 = vmul.f32 %v1798, 1.050701
  %v1831 = vmul.f32 %v1799, 1.050701
  %v1832 = vmul.f32 %v1800, 1.050701
  %v1833 = vmul.f32 %v1801, 1.050701
  %v1834 = vmul.f32 %v1802, 1.050701
  %v1835 = vmul.f32 %v1803, 1.050701
  %v1836 = vpack.c.bf16 %v1805, %v1804
  %v1837 = vpack.c.bf16 %v1807, %v1806
  %v1838 = vpack.c.bf16 %v1809, %v1808
  %v1839 = vpack.c.bf16 %v1811, %v1810
  %v1840 = vpack.c.bf16 %v1813, %v1812
  %v1841 = vpack.c.bf16 %v1815, %v1814
  %v1842 = vpack.c.bf16 %v1817, %v1816
  %v1843 = vpack.c.bf16 %v1819, %v1818
  %v1844 = vpack.c.bf16 %v1821, %v1820
  %v1845 = vpack.c.bf16 %v1823, %v1822
  %v1846 = vpack.c.bf16 %v1825, %v1824
  %v1847 = vpack.c.bf16 %v1827, %v1826
  %v1848 = vpack.c.bf16 %v1829, %v1828
  %v1849 = vpack.c.bf16 %v1831, %v1830
  %v1850 = vpack.c.bf16 %v1833, %v1832
  %v1851 = vpack.c.bf16 %v1835, %v1834
  %v1868 = vunpack.c.l.b16 %v1836
  %v1869 = vunpack.c.h.b16 %v1836
  %v1870 = vunpack.c.l.b16 %v1837
  %v1871 = vunpack.c.h.b16 %v1837
  %v1872 = vunpack.c.l.b16 %v1838
  %v1873 = vunpack.c.h.b16 %v1838
  %v1874 = vunpack.c.l.b16 %v1839
  %v1875 = vunpack.c.h.b16 %v1839
  %v1876 = vunpack.c.l.b16 %v1840
  %v1877 = vunpack.c.h.b16 %v1840
  %v1878 = vunpack.c.l.b16 %v1841
  %v1879 = vunpack.c.h.b16 %v1841
  %v1880 = vunpack.c.l.b16 %v1842
  %v1881 = vunpack.c.h.b16 %v1842
  %v1882 = vunpack.c.l.b16 %v1843
  %v1883 = vunpack.c.h.b16 %v1843
  %v1884 = vunpack.c.l.b16 %v1844
  %v1885 = vunpack.c.h.b16 %v1844
  %v1886 = vunpack.c.l.b16 %v1845
  %v1887 = vunpack.c.h.b16 %v1845
  %v1888 = vunpack.c.l.b16 %v1846
  %v1889 = vunpack.c.h.b16 %v1846
  %v1890 = vunpack.c.l.b16 %v1847
  %v1891 = vunpack.c.h.b16 %v1847
  %v1892 = vunpack.c.l.b16 %v1848
  %v1893 = vunpack.c.h.b16 %v1848
  %v1894 = vunpack.c.l.b16 %v1849
  %v1895 = vunpack.c.h.b16 %v1849
  %v1896 = vunpack.c.l.b16 %v1850
  %v1897 = vunpack.c.h.b16 %v1850
  %v1898 = vunpack.c.l.b16 %v1851
  %v1899 = vunpack.c.h.b16 %v1851
  %v1900 = vpack.c.b16 %v1868, %v1868
  %v1901 = vpack.c.b16 %v1869, %v1869
  %v1902 = vpack.c.b16 %v1870, %v1870
  %v1903 = vpack.c.b16 %v1871, %v1871
  %v1904 = vpack.c.b16 %v1872, %v1872
  %v1905 = vpack.c.b16 %v1873, %v1873
  %v1906 = vpack.c.b16 %v1874, %v1874
  %v1907 = vpack.c.b16 %v1875, %v1875
  %v1908 = vpack.c.b16 %v1876, %v1876
  %v1909 = vpack.c.b16 %v1877, %v1877
  %v1910 = vpack.c.b16 %v1878, %v1878
  %v1911 = vpack.c.b16 %v1879, %v1879
  %v1912 = vpack.c.b16 %v1880, %v1880
  %v1913 = vpack.c.b16 %v1881, %v1881
  %v1914 = vpack.c.b16 %v1882, %v1882
  %v1915 = vpack.c.b16 %v1883, %v1883
  %v1916 = vpack.c.b16 %v1884, %v1884
  %v1917 = vpack.c.b16 %v1885, %v1885
  %v1918 = vpack.c.b16 %v1886, %v1886
  %v1919 = vpack.c.b16 %v1887, %v1887
  %v1920 = vpack.c.b16 %v1888, %v1888
  %v1921 = vpack.c.b16 %v1889, %v1889
  %v1922 = vpack.c.b16 %v1890, %v1890
  %v1923 = vpack.c.b16 %v1891, %v1891
  %v1924 = vpack.c.b16 %v1892, %v1892
  %v1925 = vpack.c.b16 %v1893, %v1893
  %v1926 = vpack.c.b16 %v1894, %v1894
  %v1927 = vpack.c.b16 %v1895, %v1895
  %v1928 = vpack.c.b16 %v1896, %v1896
  %v1929 = vpack.c.b16 %v1897, %v1897
  %v1930 = vpack.c.b16 %v1898, %v1898
  %v1931 = vpack.c.b16 %v1899, %v1899
  %1964 = vst [vmem:[%s9] sm:$0xf] %v1900
  %1965 = vst [vmem:[%s9 + $0x4] sm:$0xf] %v1901
  %1966 = vst [vmem:[%s9 + $0x8] sm:$0xf] %v1902
  %1967 = vst [vmem:[%s9 + $0xc] sm:$0xf] %v1903
  %1968 = vst [vmem:[%s9 + $0x10] sm:$0xf] %v1904
  %1969 = vst [vmem:[%s9 + $0x14] sm:$0xf] %v1905
  %1970 = vst [vmem:[%s9 + $0x18] sm:$0xf] %v1906
  %1971 = vst [vmem:[%s9 + $0x1c] sm:$0xf] %v1907
  %1972 = vst [vmem:[%s9 + $0x20] sm:$0xf] %v1908
  %1973 = vst [vmem:[%s9 + $0x24] sm:$0xf] %v1909
  %1974 = vst [vmem:[%s9 + $0x28] sm:$0xf] %v1910
  %1975 = vst [vmem:[%s9 + $0x2c] sm:$0xf] %v1911
  %1976 = vst [vmem:[%s9 + $0x30] sm:$0xf] %v1912
  %1977 = vst [vmem:[%s9 + $0x34] sm:$0xf] %v1913
  %1978 = vst [vmem:[%s9 + $0x38] sm:$0xf] %v1914
  %1979 = vst [vmem:[%s9 + $0x3c] sm:$0xf] %v1915
  %1980 = vst [vmem:[%s9 + $0x40] sm:$0xf] %v1916
  %1981 = vst [vmem:[%s9 + $0x44] sm:$0xf] %v1917
  %1982 = vst [vmem:[%s9 + $0x48] sm:$0xf] %v1918
  %1983 = vst [vmem:[%s9 + $0x4c] sm:$0xf] %v1919
  %1984 = vst [vmem:[%s9 + $0x50] sm:$0xf] %v1920
  %1985 = vst [vmem:[%s9 + $0x54] sm:$0xf] %v1921
  %1986 = vst [vmem:[%s9 + $0x58] sm:$0xf] %v1922
  %1987 = vst [vmem:[%s9 + $0x5c] sm:$0xf] %v1923
  %1988 = vst [vmem:[%s9 + $0x60] sm:$0xf] %v1924
  %1989 = vst [vmem:[%s9 + $0x64] sm:$0xf] %v1925
  %1990 = vst [vmem:[%s9 + $0x68] sm:$0xf] %v1926
  %1991 = vst [vmem:[%s9 + $0x6c] sm:$0xf] %v1927
  %1992 = vst [vmem:[%s9 + $0x70] sm:$0xf] %v1928
  %1993 = vst [vmem:[%s9 + $0x74] sm:$0xf] %v1929
  %1994 = vst [vmem:[%s9 + $0x78] sm:$0xf] %v1930
  %1995 = vst [vmem:[%s9 + $0x7c] sm:$0xf] %v1931
  // Predicated region
  $region38: #{botrgcn_fmoe_double_forward.6} parent=0 // pred_check
    _
  $region39: #{botrgcn_fmoe_double_forward.6} parent=0 // pred_check_branch
    %1997 = sbr.rel (0) target = $region41
  $region40: #{botrgcn_fmoe_double_forward.6} parent=0 // pred_region
    _
  $region41: #{botrgcn_fmoe_double_forward.6} parent=0 // pred_fallthru
    _
  // Predicated region
  $region42: #{botrgcn_fmoe_double_forward.6} parent=0 // pred_check
    _
  $region43: #{botrgcn_fmoe_double_forward.6} parent=0 // pred_check_branch
    %1999 = sbr.rel (0) target = $region45
  $region44: #{botrgcn_fmoe_double_forward.6} parent=0 // pred_region
    _
  $region45: #{botrgcn_fmoe_double_forward.6} parent=0 // pred_fallthru
    _

// kernel: botrgcn_fmoe_double_forward.7
$region0: #{botrgcn_fmoe_double_forward.7}
  #allocation0 [shape = 'u32[]', space=smem, size = 0x4, offset = 0x4, fixed_abs, tag = 'smem constant byte address 0x4 - core index']
  #allocation1 [shape = 'u32[144,128]{1,0:T(1,128)}', space=vmem, size = 0x12000, scoped, tag = 'internal scratch']
  %s0 = inlined_call_operand.vmem [shape: bf16[2,256,256], index: 0, kind: input, shape index: {}]
  %s1 = inlined_call_operand.vmem [shape: f32[256,2], index: 1, kind: input, shape index: {}]
  %s2 = inlined_call_operand.vmem [shape: bf16[256,128], index: 2, kind: input, shape index: {}]
  %s3 = inlined_call_operand.vmem [shape: bf16[128,128], index: 3, kind: input, shape index: {}]
  %s4 = inlined_call_operand.vmem [shape: bf16[128,128], index: 4, kind: input, shape index: {}]
  %s5 = inlined_call_operand.vmem [shape: bf16[128,128], index: 5, kind: input, shape index: {}]
  %s6 = inlined_call_operand.vmem [shape: f32[1,128], index: 6, kind: input, shape index: {}]
  %s7 = inlined_call_operand.vmem [shape: bf16[256,128], index: 7, kind: output, shape index: {}]
  %s8 = sld [smem:[#allocation0]]
  $region38: #{botrgcn_fmoe_double_forward.7} parent=0
    _
  %s10 = ssub.s32 1, %s8
  %s11 = scalar_select 0, %s10, %s8
  // Predicated region
  $region2: #{botrgcn_fmoe_double_forward.7} parent=0 // pred_check
    _
  $region3: #{botrgcn_fmoe_double_forward.7} parent=0 // pred_check_branch
    %13 = sbr.rel (0) target = $region5
  $region4: #{botrgcn_fmoe_double_forward.7} parent=0 // pred_region
    _
  $region5: #{botrgcn_fmoe_double_forward.7} parent=0 // pred_fallthru
    _
  // Predicated region
  $region6: #{botrgcn_fmoe_double_forward.7} parent=0 // pred_check
    _
  $region7: #{botrgcn_fmoe_double_forward.7} parent=0 // pred_check_branch
    %15 = sbr.rel (0) target = $region9
  $region8: #{botrgcn_fmoe_double_forward.7} parent=0 // pred_region
    _
  $region9: #{botrgcn_fmoe_double_forward.7} parent=0 // pred_fallthru
    _
  // Predicated region
  $region10: #{botrgcn_fmoe_double_forward.7} parent=0 // pred_check
    _
  $region11: #{botrgcn_fmoe_double_forward.7} parent=0 // pred_check_branch
    %17 = sbr.rel (0) target = $region13
  $region12: #{botrgcn_fmoe_double_forward.7} parent=0 // pred_region
    _
  $region13: #{botrgcn_fmoe_double_forward.7} parent=0 // pred_fallthru
    _
  // Predicated region
  $region14: #{botrgcn_fmoe_double_forward.7} parent=0 // pred_check
    _
  $region15: #{botrgcn_fmoe_double_forward.7} parent=0 // pred_check_branch
    %19 = sbr.rel (0) target = $region17
  $region16: #{botrgcn_fmoe_double_forward.7} parent=0 // pred_region
    _
  $region17: #{botrgcn_fmoe_double_forward.7} parent=0 // pred_fallthru
    _
  // Predicated region
  $region18: #{botrgcn_fmoe_double_forward.7} parent=0 // pred_check
    _
  $region19: #{botrgcn_fmoe_double_forward.7} parent=0 // pred_check_branch
    %21 = sbr.rel (0) target = $region21
  $region20: #{botrgcn_fmoe_double_forward.7} parent=0 // pred_region
    _
  $region21: #{botrgcn_fmoe_double_forward.7} parent=0 // pred_fallthru
    _
  // Predicated region
  $region22: #{botrgcn_fmoe_double_forward.7} parent=0 // pred_check
    _
  $region23: #{botrgcn_fmoe_double_forward.7} parent=0 // pred_check_branch
    %23 = sbr.rel (0) target = $region25
  $region24: #{botrgcn_fmoe_double_forward.7} parent=0 // pred_region
    _
  $region25: #{botrgcn_fmoe_double_forward.7} parent=0 // pred_fallthru
    _
  // Predicated region
  $region26: #{botrgcn_fmoe_double_forward.7} parent=0 // pred_check
    _
  $region27: #{botrgcn_fmoe_double_forward.7} parent=0 // pred_check_branch
    %25 = sbr.rel (0) target = $region29
  $region28: #{botrgcn_fmoe_double_forward.7} parent=0 // pred_region
    _
  $region29: #{botrgcn_fmoe_double_forward.7} parent=0 // pred_fallthru
    _
  %v27 = vld [vmem:[%s2] sm:$0xf]
  %v28 = vld [vmem:[%s2 + $0x4] sm:$0xf]
  %v29 = vld [vmem:[%s2 + $0x8] sm:$0xf]
  %v30 = vld [vmem:[%s2 + $0xc] sm:$0xf]
  %v31 = vld [vmem:[%s2 + $0x10] sm:$0xf]
  %v32 = vld [vmem:[%s2 + $0x14] sm:$0xf]
  %v33 = vld [vmem:[%s2 + $0x18] sm:$0xf]
  %v34 = vld [vmem:[%s2 + $0x1c] sm:$0xf]
  %v35 = vld [vmem:[%s2 + $0x20] sm:$0xf]
  %v36 = vld [vmem:[%s2 + $0x24] sm:$0xf]
  %v37 = vld [vmem:[%s2 + $0x28] sm:$0xf]
  %v38 = vld [vmem:[%s2 + $0x2c] sm:$0xf]
  %v39 = vld [vmem:[%s2 + $0x30] sm:$0xf]
  %v40 = vld [vmem:[%s2 + $0x34] sm:$0xf]
  %v41 = vld [vmem:[%s2 + $0x38] sm:$0xf]
  %v42 = vld [vmem:[%s2 + $0x3c] sm:$0xf]
  %v43 = vld [vmem:[%s2 + $0x40] sm:$0xf]
  %v44 = vld [vmem:[%s2 + $0x44] sm:$0xf]
  %v45 = vld [vmem:[%s2 + $0x48] sm:$0xf]
  %v46 = vld [vmem:[%s2 + $0x4c] sm:$0xf]
  %v47 = vld [vmem:[%s2 + $0x50] sm:$0xf]
  %v48 = vld [vmem:[%s2 + $0x54] sm:$0xf]
  %v49 = vld [vmem:[%s2 + $0x58] sm:$0xf]
  %v50 = vld [vmem:[%s2 + $0x5c] sm:$0xf]
  %v51 = vld [vmem:[%s2 + $0x60] sm:$0xf]
  %v52 = vld [vmem:[%s2 + $0x64] sm:$0xf]
  %v53 = vld [vmem:[%s2 + $0x68] sm:$0xf]
  %v54 = vld [vmem:[%s2 + $0x6c] sm:$0xf]
  %v55 = vld [vmem:[%s2 + $0x70] sm:$0xf]
  %v56 = vld [vmem:[%s2 + $0x74] sm:$0xf]
  %v57 = vld [vmem:[%s2 + $0x78] sm:$0xf]
  %v58 = vld [vmem:[%s2 + $0x7c] sm:$0xf]
  %v59 = vld [vmem:[%s0] sm:$0xff]
  %v60 = vld [vmem:[%s0 + $0x8] sm:$0xff]
  %v61 = vld [vmem:[%s0 + $0x10] sm:$0xff]
  %v62 = vld [vmem:[%s0 + $0x18] sm:$0xff]
  %v63 = vld [vmem:[%s0 + $0x20] sm:$0xff]
  %v64 = vld [vmem:[%s0 + $0x28] sm:$0xff]
  %v65 = vld [vmem:[%s0 + $0x30] sm:$0xff]
  %v66 = vld [vmem:[%s0 + $0x38] sm:$0xff]
  %v67 = vld [vmem:[%s0 + $0x40] sm:$0xff]
  %v68 = vld [vmem:[%s0 + $0x48] sm:$0xff]
  %v69 = vld [vmem:[%s0 + $0x50] sm:$0xff]
  %v70 = vld [vmem:[%s0 + $0x58] sm:$0xff]
  %v71 = vld [vmem:[%s0 + $0x60] sm:$0xff]
  %v72 = vld [vmem:[%s0 + $0x68] sm:$0xff]
  %v73 = vld [vmem:[%s0 + $0x70] sm:$0xff]
  %v74 = vld [vmem:[%s0 + $0x78] sm:$0xff]
  %v75 = vld [vmem:[%s0 + $0x80] sm:$0xff]
  %v76 = vld [vmem:[%s0 + $0x88] sm:$0xff]
  %v77 = vld [vmem:[%s0 + $0x90] sm:$0xff]
  %v78 = vld [vmem:[%s0 + $0x98] sm:$0xff]
  %v79 = vld [vmem:[%s0 + $0xa0] sm:$0xff]
  %v80 = vld [vmem:[%s0 + $0xa8] sm:$0xff]
  %v81 = vld [vmem:[%s0 + $0xb0] sm:$0xff]
  %v82 = vld [vmem:[%s0 + $0xb8] sm:$0xff]
  %v83 = vld [vmem:[%s0 + $0xc0] sm:$0xff]
  %v84 = vld [vmem:[%s0 + $0xc8] sm:$0xff]
  %v85 = vld [vmem:[%s0 + $0xd0] sm:$0xff]
  %v86 = vld [vmem:[%s0 + $0xd8] sm:$0xff]
  %v87 = vld [vmem:[%s0 + $0xe0] sm:$0xff]
  %v88 = vld [vmem:[%s0 + $0xe8] sm:$0xff]
  %v89 = vld [vmem:[%s0 + $0xf0] sm:$0xff]
  %v90 = vld [vmem:[%s0 + $0xf8] sm:$0xff]
  %v123 = vunpack.c.l.b16 %v59
  %v124 = vunpack.c.h.b16 %v59
  %v125 = vunpack.c.l.b16 %v60
  %v126 = vunpack.c.h.b16 %v60
  %v127 = vunpack.c.l.b16 %v61
  %v128 = vunpack.c.h.b16 %v61
  %v129 = vunpack.c.l.b16 %v62
  %v130 = vunpack.c.h.b16 %v62
  %v131 = vunpack.c.l.b16 %v63
  %v132 = vunpack.c.h.b16 %v63
  %v133 = vunpack.c.l.b16 %v64
  %v134 = vunpack.c.h.b16 %v64
  %v135 = vunpack.c.l.b16 %v65
  %v136 = vunpack.c.h.b16 %v65
  %v137 = vunpack.c.l.b16 %v66
  %v138 = vunpack.c.h.b16 %v66
  %v139 = vunpack.c.l.b16 %v67
  %v140 = vunpack.c.h.b16 %v67
  %v141 = vunpack.c.l.b16 %v68
  %v142 = vunpack.c.h.b16 %v68
  %v143 = vunpack.c.l.b16 %v69
  %v144 = vunpack.c.h.b16 %v69
  %v145 = vunpack.c.l.b16 %v70
  %v146 = vunpack.c.h.b16 %v70
  %v147 = vunpack.c.l.b16 %v71
  %v148 = vunpack.c.h.b16 %v71
  %v149 = vunpack.c.l.b16 %v72
  %v150 = vunpack.c.h.b16 %v72
  %v151 = vunpack.c.l.b16 %v73
  %v152 = vunpack.c.h.b16 %v73
  %v153 = vunpack.c.l.b16 %v74
  %v154 = vunpack.c.h.b16 %v74
  %v155 = vunpack.c.l.b16 %v75
  %v156 = vunpack.c.h.b16 %v75
  %v157 = vunpack.c.l.b16 %v76
  %v158 = vunpack.c.h.b16 %v76
  %v159 = vunpack.c.l.b16 %v77
  %v160 = vunpack.c.h.b16 %v77
  %v161 = vunpack.c.l.b16 %v78
  %v162 = vunpack.c.h.b16 %v78
  %v163 = vunpack.c.l.b16 %v79
  %v164 = vunpack.c.h.b16 %v79
  %v165 = vunpack.c.l.b16 %v80
  %v166 = vunpack.c.h.b16 %v80
  %v167 = vunpack.c.l.b16 %v81
  %v168 = vunpack.c.h.b16 %v81
  %v169 = vunpack.c.l.b16 %v82
  %v170 = vunpack.c.h.b16 %v82
  %v171 = vunpack.c.l.b16 %v83
  %v172 = vunpack.c.h.b16 %v83
  %v173 = vunpack.c.l.b16 %v84
  %v174 = vunpack.c.h.b16 %v84
  %v175 = vunpack.c.l.b16 %v85
  %v176 = vunpack.c.h.b16 %v85
  %v177 = vunpack.c.l.b16 %v86
  %v178 = vunpack.c.h.b16 %v86
  %v179 = vunpack.c.l.b16 %v87
  %v180 = vunpack.c.h.b16 %v87
  %v181 = vunpack.c.l.b16 %v88
  %v182 = vunpack.c.h.b16 %v88
  %v183 = vunpack.c.l.b16 %v89
  %v184 = vunpack.c.h.b16 %v89
  %v185 = vunpack.c.l.b16 %v90
  %v186 = vunpack.c.h.b16 %v90
  %v187 = vpack.c.b16 %v125, %v123
  %v188 = vpack.c.b16 %v126, %v124
  %v189 = vpack.c.b16 %v129, %v127
  %v190 = vpack.c.b16 %v130, %v128
  %v191 = vpack.c.b16 %v133, %v131
  %v192 = vpack.c.b16 %v134, %v132
  %v193 = vpack.c.b16 %v137, %v135
  %v194 = vpack.c.b16 %v138, %v136
  %v195 = vpack.c.b16 %v141, %v139
  %v196 = vpack.c.b16 %v142, %v140
  %v197 = vpack.c.b16 %v145, %v143
  %v198 = vpack.c.b16 %v146, %v144
  %v199 = vpack.c.b16 %v149, %v147
  %v200 = vpack.c.b16 %v150, %v148
  %v201 = vpack.c.b16 %v153, %v151
  %v202 = vpack.c.b16 %v154, %v152
  %v203 = vpack.c.b16 %v157, %v155
  %v204 = vpack.c.b16 %v158, %v156
  %v205 = vpack.c.b16 %v161, %v159
  %v206 = vpack.c.b16 %v162, %v160
  %v207 = vpack.c.b16 %v165, %v163
  %v208 = vpack.c.b16 %v166, %v164
  %v209 = vpack.c.b16 %v169, %v167
  %v210 = vpack.c.b16 %v170, %v168
  %v211 = vpack.c.b16 %v173, %v171
  %v212 = vpack.c.b16 %v174, %v172
  %v213 = vpack.c.b16 %v177, %v175
  %v214 = vpack.c.b16 %v178, %v176
  %v215 = vpack.c.b16 %v181, %v179
  %v216 = vpack.c.b16 %v182, %v180
  %v217 = vpack.c.b16 %v185, %v183
  %v218 = vpack.c.b16 %v186, %v184
  %v283 = vunpack.c.l.b16 %v27
  %v284 = vunpack.c.l.b16 %v28
  %v285 = vunpack.c.l.b16 %v29
  %v286 = vunpack.c.l.b16 %v30
  %v287 = vunpack.c.l.b16 %v31
  %v288 = vunpack.c.l.b16 %v32
  %v289 = vunpack.c.l.b16 %v33
  %v290 = vunpack.c.l.b16 %v34
  %v291 = vunpack.c.l.b16 %v35
  %v292 = vunpack.c.l.b16 %v36
  %v293 = vunpack.c.l.b16 %v37
  %v294 = vunpack.c.l.b16 %v38
  %v295 = vunpack.c.l.b16 %v39
  %v296 = vunpack.c.l.b16 %v40
  %v297 = vunpack.c.l.b16 %v41
  %v298 = vunpack.c.l.b16 %v42
  %v299 = vunpack.c.l.b16 %v43
  %v300 = vunpack.c.l.b16 %v44
  %v301 = vunpack.c.l.b16 %v45
  %v302 = vunpack.c.l.b16 %v46
  %v303 = vunpack.c.l.b16 %v47
  %v304 = vunpack.c.l.b16 %v48
  %v305 = vunpack.c.l.b16 %v49
  %v306 = vunpack.c.l.b16 %v50
  %v307 = vunpack.c.l.b16 %v51
  %v308 = vunpack.c.l.b16 %v52
  %v309 = vunpack.c.l.b16 %v53
  %v310 = vunpack.c.l.b16 %v54
  %v311 = vunpack.c.l.b16 %v55
  %v312 = vunpack.c.l.b16 %v56
  %v313 = vunpack.c.l.b16 %v57
  %v314 = vunpack.c.l.b16 %v58
  %v315 = vpack.c.b16 %v284, %v283
  %v316 = vpack.c.b16 %v286, %v285
  %v317 = vpack.c.b16 %v288, %v287
  %v318 = vpack.c.b16 %v290, %v289
  %v319 = vpack.c.b16 %v292, %v291
  %v320 = vpack.c.b16 %v294, %v293
  %v321 = vpack.c.b16 %v296, %v295
  %v322 = vpack.c.b16 %v298, %v297
  %v323 = vpack.c.b16 %v300, %v299
  %v324 = vpack.c.b16 %v302, %v301
  %v325 = vpack.c.b16 %v304, %v303
  %v326 = vpack.c.b16 %v306, %v305
  %v327 = vpack.c.b16 %v308, %v307
  %v328 = vpack.c.b16 %v310, %v309
  %v329 = vpack.c.b16 %v312, %v311
  %v330 = vpack.c.b16 %v314, %v313
  %347 = vmatprep.subr.bf16.mxu0 0
  %348 = vmatpush1.bf16.msra.mxu0 %v322
  %349 = vmatprep.subr.bf16.mxu0 0
  %350 = vmatpush1.bf16.msra.mxu0 %v321
  %351 = vmatprep.subr.bf16.mxu0 0
  %352 = vmatpush1.bf16.msra.mxu0 %v320
  %353 = vmatprep.subr.bf16.mxu0 0
  %354 = vmatpush1.bf16.msra.mxu0 %v319
  %355 = vmatprep.subr.bf16.mxu0 0
  %356 = vmatpush1.bf16.msra.mxu0 %v318
  %357 = vmatprep.subr.bf16.mxu0 0
  %358 = vmatpush1.bf16.msra.mxu0 %v317
  %359 = vmatprep.subr.bf16.mxu0 0
  %360 = vmatpush1.bf16.msra.mxu0 %v316
  %361 = vmatprep.subr.bf16.mxu0 0
  %362 = vmatpush1.bf16.msra.mxu0 %v315
  %363 = vmatprep.subr.bf16.mxu0 0
  %364 = vmatpush2.bf16.msra.mxu0 %v330
  %365 = vmatprep.subr.bf16.mxu0 0
  %366 = vmatpush2.bf16.msra.mxu0 %v329
  %367 = vmatprep.subr.bf16.mxu0 0
  %368 = vmatpush2.bf16.msra.mxu0 %v328
  %369 = vmatprep.subr.bf16.mxu0 0
  %370 = vmatpush2.bf16.msra.mxu0 %v327
  %371 = vmatprep.subr.bf16.mxu0 0
  %372 = vmatpush2.bf16.msra.mxu0 %v326
  %373 = vmatprep.subr.bf16.mxu0 0
  %374 = vmatpush2.bf16.msra.mxu0 %v325
  %375 = vmatprep.subr.bf16.mxu0 0
  %376 = vmatpush2.bf16.msra.mxu0 %v324
  %377 = vmatprep.subr.bf16.mxu0 0
  %378 = vmatpush2.bf16.msra.mxu0 %v323
  %379 = vmatprep.mubr.bf16.mxu0 %v188
  %380 = vmatmul.mubr.bf16.gmra.mxu0 %v187
  %v381 = vpop.f32.mrf.mxu0
  %v382 = vadd.f32 0.0, %v381
  %v383 = vpop.f32.mrf.mxu0
  %v384 = vpop.f32.mrf.mxu0
  %v385 = vadd.f32 0.0, %v384
  %v386 = vpop.f32.mrf.mxu0
  %387 = vmatprep.mubr.bf16.mxu0 %v190
  %388 = vmatmul.mubr.bf16.gmra.mxu0 %v189
  %v389 = vpop.f32.mrf.mxu0
  %v390 = vadd.f32 0.0, %v389
  %v391 = vpop.f32.mrf.mxu0
  %v392 = vpop.f32.mrf.mxu0
  %v393 = vadd.f32 0.0, %v392
  %v394 = vpop.f32.mrf.mxu0
  %395 = vmatprep.mubr.bf16.mxu0 %v192
  %396 = vmatmul.mubr.bf16.gmra.mxu0 %v191
  %v397 = vpop.f32.mrf.mxu0
  %v398 = vadd.f32 0.0, %v397
  %v399 = vpop.f32.mrf.mxu0
  %v400 = vpop.f32.mrf.mxu0
  %v401 = vadd.f32 0.0, %v400
  %v402 = vpop.f32.mrf.mxu0
  %403 = vmatprep.mubr.bf16.mxu0 %v194
  %404 = vmatmul.mubr.bf16.gmra.mxu0 %v193
  %v405 = vpop.f32.mrf.mxu0
  %v406 = vadd.f32 0.0, %v405
  %v407 = vpop.f32.mrf.mxu0
  %v408 = vpop.f32.mrf.mxu0
  %v409 = vadd.f32 0.0, %v408
  %v410 = vpop.f32.mrf.mxu0
  %411 = vmatprep.mubr.bf16.mxu0 %v196
  %412 = vmatmul.mubr.bf16.gmra.mxu0 %v195
  %v413 = vpop.f32.mrf.mxu0
  %v414 = vadd.f32 0.0, %v413
  %v415 = vpop.f32.mrf.mxu0
  %v416 = vpop.f32.mrf.mxu0
  %v417 = vadd.f32 0.0, %v416
  %v418 = vpop.f32.mrf.mxu0
  %419 = vmatprep.mubr.bf16.mxu0 %v198
  %420 = vmatmul.mubr.bf16.gmra.mxu0 %v197
  %v421 = vpop.f32.mrf.mxu0
  %v422 = vadd.f32 0.0, %v421
  %v423 = vpop.f32.mrf.mxu0
  %v424 = vpop.f32.mrf.mxu0
  %v425 = vadd.f32 0.0, %v424
  %v426 = vpop.f32.mrf.mxu0
  %427 = vmatprep.mubr.bf16.mxu0 %v200
  %428 = vmatmul.mubr.bf16.gmra.mxu0 %v199
  %v429 = vpop.f32.mrf.mxu0
  %v430 = vadd.f32 0.0, %v429
  %v431 = vpop.f32.mrf.mxu0
  %v432 = vpop.f32.mrf.mxu0
  %v433 = vadd.f32 0.0, %v432
  %v434 = vpop.f32.mrf.mxu0
  %435 = vmatprep.mubr.bf16.mxu0 %v202
  %436 = vmatmul.mubr.bf16.gmra.mxu0 %v201
  %v437 = vpop.f32.mrf.mxu0
  %v438 = vadd.f32 0.0, %v437
  %v439 = vpop.f32.mrf.mxu0
  %v440 = vpop.f32.mrf.mxu0
  %v441 = vadd.f32 0.0, %v440
  %v442 = vpop.f32.mrf.mxu0
  %443 = vmatprep.mubr.bf16.mxu0 %v204
  %444 = vmatmul.mubr.bf16.gmra.mxu0 %v203
  %v445 = vpop.f32.mrf.mxu0
  %v446 = vadd.f32 0.0, %v445
  %v447 = vpop.f32.mrf.mxu0
  %v448 = vpop.f32.mrf.mxu0
  %v449 = vadd.f32 0.0, %v448
  %v450 = vpop.f32.mrf.mxu0
  %451 = vmatprep.mubr.bf16.mxu0 %v206
  %452 = vmatmul.mubr.bf16.gmra.mxu0 %v205
  %v453 = vpop.f32.mrf.mxu0
  %v454 = vadd.f32 0.0, %v453
  %v455 = vpop.f32.mrf.mxu0
  %v456 = vpop.f32.mrf.mxu0
  %v457 = vadd.f32 0.0, %v456
  %v458 = vpop.f32.mrf.mxu0
  %459 = vmatprep.mubr.bf16.mxu0 %v208
  %460 = vmatmul.mubr.bf16.gmra.mxu0 %v207
  %v461 = vpop.f32.mrf.mxu0
  %v462 = vadd.f32 0.0, %v461
  %v463 = vpop.f32.mrf.mxu0
  %v464 = vpop.f32.mrf.mxu0
  %v465 = vadd.f32 0.0, %v464
  %v466 = vpop.f32.mrf.mxu0
  %467 = vmatprep.mubr.bf16.mxu0 %v210
  %468 = vmatmul.mubr.bf16.gmra.mxu0 %v209
  %v469 = vpop.f32.mrf.mxu0
  %v470 = vadd.f32 0.0, %v469
  %v471 = vpop.f32.mrf.mxu0
  %v472 = vpop.f32.mrf.mxu0
  %v473 = vadd.f32 0.0, %v472
  %v474 = vpop.f32.mrf.mxu0
  %475 = vmatprep.mubr.bf16.mxu0 %v212
  %476 = vmatmul.mubr.bf16.gmra.mxu0 %v211
  %v477 = vpop.f32.mrf.mxu0
  %v478 = vadd.f32 0.0, %v477
  %v479 = vpop.f32.mrf.mxu0
  %v480 = vpop.f32.mrf.mxu0
  %v481 = vadd.f32 0.0, %v480
  %v482 = vpop.f32.mrf.mxu0
  %483 = vmatprep.mubr.bf16.mxu0 %v214
  %484 = vmatmul.mubr.bf16.gmra.mxu0 %v213
  %v485 = vpop.f32.mrf.mxu0
  %v486 = vadd.f32 0.0, %v485
  %v487 = vpop.f32.mrf.mxu0
  %v488 = vpop.f32.mrf.mxu0
  %v489 = vadd.f32 0.0, %v488
  %v490 = vpop.f32.mrf.mxu0
  %491 = vmatprep.mubr.bf16.mxu0 %v216
  %492 = vmatmul.mubr.bf16.gmra.mxu0 %v215
  %v493 = vpop.f32.mrf.mxu0
  %v494 = vadd.f32 0.0, %v493
  %v495 = vpop.f32.mrf.mxu0
  %v496 = vpop.f32.mrf.mxu0
  %v497 = vadd.f32 0.0, %v496
  %v498 = vpop.f32.mrf.mxu0
  %499 = vmatprep.mubr.bf16.mxu0 %v218
  %500 = vmatmul.mubr.bf16.gmra.mxu0 %v217
  %v501 = vpop.f32.mrf.mxu0
  %v502 = vadd.f32 0.0, %v501
  %v503 = vpop.f32.mrf.mxu0
  %v504 = vpop.f32.mrf.mxu0
  %v505 = vadd.f32 0.0, %v504
  %v506 = vpop.f32.mrf.mxu0
  %507 = vdwg.mxu0
  %v508 = vld [vmem:[%s1] sm:$0xff]
  %v509 = vld [vmem:[%s1 + $0x8] sm:$0xff]
  %v510 = vld [vmem:[%s1 + $0x10] sm:$0xff]
  %v511 = vld [vmem:[%s1 + $0x18] sm:$0xff]
  %v512 = vld [vmem:[%s1 + $0x20] sm:$0xff]
  %v513 = vld [vmem:[%s1 + $0x28] sm:$0xff]
  %v514 = vld [vmem:[%s1 + $0x30] sm:$0xff]
  %v515 = vld [vmem:[%s1 + $0x38] sm:$0xff]
  %v516 = vld [vmem:[%s1 + $0x40] sm:$0xff]
  %v517 = vld [vmem:[%s1 + $0x48] sm:$0xff]
  %v518 = vld [vmem:[%s1 + $0x50] sm:$0xff]
  %v519 = vld [vmem:[%s1 + $0x58] sm:$0xff]
  %v520 = vld [vmem:[%s1 + $0x60] sm:$0xff]
  %v521 = vld [vmem:[%s1 + $0x68] sm:$0xff]
  %v522 = vld [vmem:[%s1 + $0x70] sm:$0xff]
  %v523 = vld [vmem:[%s1 + $0x78] sm:$0xff]
  %v524 = vld [vmem:[%s1 + $0x80] sm:$0xff]
  %v525 = vld [vmem:[%s1 + $0x88] sm:$0xff]
  %v526 = vld [vmem:[%s1 + $0x90] sm:$0xff]
  %v527 = vld [vmem:[%s1 + $0x98] sm:$0xff]
  %v528 = vld [vmem:[%s1 + $0xa0] sm:$0xff]
  %v529 = vld [vmem:[%s1 + $0xa8] sm:$0xff]
  %v530 = vld [vmem:[%s1 + $0xb0] sm:$0xff]
  %v531 = vld [vmem:[%s1 + $0xb8] sm:$0xff]
  %v532 = vld [vmem:[%s1 + $0xc0] sm:$0xff]
  %v533 = vld [vmem:[%s1 + $0xc8] sm:$0xff]
  %v534 = vld [vmem:[%s1 + $0xd0] sm:$0xff]
  %v535 = vld [vmem:[%s1 + $0xd8] sm:$0xff]
  %v536 = vld [vmem:[%s1 + $0xe0] sm:$0xff]
  %v537 = vld [vmem:[%s1 + $0xe8] sm:$0xff]
  %v538 = vld [vmem:[%s1 + $0xf0] sm:$0xff]
  %v539 = vld [vmem:[%s1 + $0xf8] sm:$0xff]
  %541 = vset.pattern.permute.xlu0 0
  %542 = vperm.xlu0 %541, %v508
  %v543 = vpop.permute.xlu0 %542
  %546 = vset.pattern.permute.xlu0 0
  %547 = vperm.xlu0 %546, %v509
  %v548 = vpop.permute.xlu0 %547
  %551 = vset.pattern.permute.xlu0 0
  %552 = vperm.xlu0 %551, %v510
  %v553 = vpop.permute.xlu0 %552
  %556 = vset.pattern.permute.xlu0 0
  %557 = vperm.xlu0 %556, %v511
  %v558 = vpop.permute.xlu0 %557
  %561 = vset.pattern.permute.xlu0 0
  %562 = vperm.xlu0 %561, %v512
  %v563 = vpop.permute.xlu0 %562
  %566 = vset.pattern.permute.xlu0 0
  %567 = vperm.xlu0 %566, %v513
  %v568 = vpop.permute.xlu0 %567
  %571 = vset.pattern.permute.xlu0 0
  %572 = vperm.xlu0 %571, %v514
  %v573 = vpop.permute.xlu0 %572
  %576 = vset.pattern.permute.xlu0 0
  %577 = vperm.xlu0 %576, %v515
  %v578 = vpop.permute.xlu0 %577
  %581 = vset.pattern.permute.xlu0 0
  %582 = vperm.xlu0 %581, %v516
  %v583 = vpop.permute.xlu0 %582
  %586 = vset.pattern.permute.xlu0 0
  %587 = vperm.xlu0 %586, %v517
  %v588 = vpop.permute.xlu0 %587
  %591 = vset.pattern.permute.xlu0 0
  %592 = vperm.xlu0 %591, %v518
  %v593 = vpop.permute.xlu0 %592
  %596 = vset.pattern.permute.xlu0 0
  %597 = vperm.xlu0 %596, %v519
  %v598 = vpop.permute.xlu0 %597
  %601 = vset.pattern.permute.xlu0 0
  %602 = vperm.xlu0 %601, %v520
  %v603 = vpop.permute.xlu0 %602
  %606 = vset.pattern.permute.xlu0 0
  %607 = vperm.xlu0 %606, %v521
  %v608 = vpop.permute.xlu0 %607
  %611 = vset.pattern.permute.xlu0 0
  %612 = vperm.xlu0 %611, %v522
  %v613 = vpop.permute.xlu0 %612
  %616 = vset.pattern.permute.xlu0 0
  %617 = vperm.xlu0 %616, %v523
  %v618 = vpop.permute.xlu0 %617
  %621 = vset.pattern.permute.xlu0 0
  %622 = vperm.xlu0 %621, %v524
  %v623 = vpop.permute.xlu0 %622
  %626 = vset.pattern.permute.xlu0 0
  %627 = vperm.xlu0 %626, %v525
  %v628 = vpop.permute.xlu0 %627
  %631 = vset.pattern.permute.xlu0 0
  %632 = vperm.xlu0 %631, %v526
  %v633 = vpop.permute.xlu0 %632
  %636 = vset.pattern.permute.xlu0 0
  %637 = vperm.xlu0 %636, %v527
  %v638 = vpop.permute.xlu0 %637
  %641 = vset.pattern.permute.xlu0 0
  %642 = vperm.xlu0 %641, %v528
  %v643 = vpop.permute.xlu0 %642
  %646 = vset.pattern.permute.xlu0 0
  %647 = vperm.xlu0 %646, %v529
  %v648 = vpop.permute.xlu0 %647
  %651 = vset.pattern.permute.xlu0 0
  %652 = vperm.xlu0 %651, %v530
  %v653 = vpop.permute.xlu0 %652
  %656 = vset.pattern.permute.xlu0 0
  %657 = vperm.xlu0 %656, %v531
  %v658 = vpop.permute.xlu0 %657
  %661 = vset.pattern.permute.xlu0 0
  %662 = vperm.xlu0 %661, %v532
  %v663 = vpop.permute.xlu0 %662
  %666 = vset.pattern.permute.xlu0 0
  %667 = vperm.xlu0 %666, %v533
  %v668 = vpop.permute.xlu0 %667
  %671 = vset.pattern.permute.xlu0 0
  %672 = vperm.xlu0 %671, %v534
  %v673 = vpop.permute.xlu0 %672
  %676 = vset.pattern.permute.xlu0 0
  %677 = vperm.xlu0 %676, %v535
  %v678 = vpop.permute.xlu0 %677
  %681 = vset.pattern.permute.xlu0 0
  %682 = vperm.xlu0 %681, %v536
  %v683 = vpop.permute.xlu0 %682
  %686 = vset.pattern.permute.xlu0 0
  %687 = vperm.xlu0 %686, %v537
  %v688 = vpop.permute.xlu0 %687
  %691 = vset.pattern.permute.xlu0 0
  %692 = vperm.xlu0 %691, %v538
  %v693 = vpop.permute.xlu0 %692
  %696 = vset.pattern.permute.xlu0 0
  %697 = vperm.xlu0 %696, %v539
  %v698 = vpop.permute.xlu0 %697
  %v700 = vmul.f32 %v382, %v543
  %v701 = vmul.f32 %v385, %v548
  %v702 = vmul.f32 %v390, %v553
  %v703 = vmul.f32 %v393, %v558
  %v704 = vmul.f32 %v398, %v563
  %v705 = vmul.f32 %v401, %v568
  %v706 = vmul.f32 %v406, %v573
  %v707 = vmul.f32 %v409, %v578
  %v708 = vmul.f32 %v414, %v583
  %v709 = vmul.f32 %v417, %v588
  %v710 = vmul.f32 %v422, %v593
  %v711 = vmul.f32 %v425, %v598
  %v712 = vmul.f32 %v430, %v603
  %v713 = vmul.f32 %v433, %v608
  %v714 = vmul.f32 %v438, %v613
  %v715 = vmul.f32 %v441, %v618
  %v716 = vmul.f32 %v446, %v623
  %v717 = vmul.f32 %v449, %v628
  %v718 = vmul.f32 %v454, %v633
  %v719 = vmul.f32 %v457, %v638
  %v720 = vmul.f32 %v462, %v643
  %v721 = vmul.f32 %v465, %v648
  %v722 = vmul.f32 %v470, %v653
  %v723 = vmul.f32 %v473, %v658
  %v724 = vmul.f32 %v478, %v663
  %v725 = vmul.f32 %v481, %v668
  %v726 = vmul.f32 %v486, %v673
  %v727 = vmul.f32 %v489, %v678
  %v728 = vmul.f32 %v494, %v683
  %v729 = vmul.f32 %v497, %v688
  %v730 = vmul.f32 %v502, %v693
  %v731 = vmul.f32 %v505, %v698
  %s732 = scalar_lea.vmem %s0, 256
  %v733 = vld [vmem:[%s732] sm:$0xff]
  %v734 = vld [vmem:[%s732 + $0x8] sm:$0xff]
  %v735 = vld [vmem:[%s732 + $0x10] sm:$0xff]
  %v736 = vld [vmem:[%s732 + $0x18] sm:$0xff]
  %v737 = vld [vmem:[%s732 + $0x20] sm:$0xff]
  %v738 = vld [vmem:[%s732 + $0x28] sm:$0xff]
  %v739 = vld [vmem:[%s732 + $0x30] sm:$0xff]
  %v740 = vld [vmem:[%s732 + $0x38] sm:$0xff]
  %v741 = vld [vmem:[%s732 + $0x40] sm:$0xff]
  %v742 = vld [vmem:[%s732 + $0x48] sm:$0xff]
  %v743 = vld [vmem:[%s732 + $0x50] sm:$0xff]
  %v744 = vld [vmem:[%s732 + $0x58] sm:$0xff]
  %v745 = vld [vmem:[%s732 + $0x60] sm:$0xff]
  %v746 = vld [vmem:[%s732 + $0x68] sm:$0xff]
  %v747 = vld [vmem:[%s732 + $0x70] sm:$0xff]
  %v748 = vld [vmem:[%s732 + $0x78] sm:$0xff]
  %v749 = vld [vmem:[%s732 + $0x80] sm:$0xff]
  %v750 = vld [vmem:[%s732 + $0x88] sm:$0xff]
  %v751 = vld [vmem:[%s732 + $0x90] sm:$0xff]
  %v752 = vld [vmem:[%s732 + $0x98] sm:$0xff]
  %v753 = vld [vmem:[%s732 + $0xa0] sm:$0xff]
  %v754 = vld [vmem:[%s732 + $0xa8] sm:$0xff]
  %v755 = vld [vmem:[%s732 + $0xb0] sm:$0xff]
  %v756 = vld [vmem:[%s732 + $0xb8] sm:$0xff]
  %v757 = vld [vmem:[%s732 + $0xc0] sm:$0xff]
  %v758 = vld [vmem:[%s732 + $0xc8] sm:$0xff]
  %v759 = vld [vmem:[%s732 + $0xd0] sm:$0xff]
  %v760 = vld [vmem:[%s732 + $0xd8] sm:$0xff]
  %v761 = vld [vmem:[%s732 + $0xe0] sm:$0xff]
  %v762 = vld [vmem:[%s732 + $0xe8] sm:$0xff]
  %v763 = vld [vmem:[%s732 + $0xf0] sm:$0xff]
  %v764 = vld [vmem:[%s732 + $0xf8] sm:$0xff]
  %v797 = vunpack.c.l.b16 %v733
  %v798 = vunpack.c.h.b16 %v733
  %v799 = vunpack.c.l.b16 %v734
  %v800 = vunpack.c.h.b16 %v734
  %v801 = vunpack.c.l.b16 %v735
  %v802 = vunpack.c.h.b16 %v735
  %v803 = vunpack.c.l.b16 %v736
  %v804 = vunpack.c.h.b16 %v736
  %v805 = vunpack.c.l.b16 %v737
  %v806 = vunpack.c.h.b16 %v737
  %v807 = vunpack.c.l.b16 %v738
  %v808 = vunpack.c.h.b16 %v738
  %v809 = vunpack.c.l.b16 %v739
  %v810 = vunpack.c.h.b16 %v739
  %v811 = vunpack.c.l.b16 %v740
  %v812 = vunpack.c.h.b16 %v740
  %v813 = vunpack.c.l.b16 %v741
  %v814 = vunpack.c.h.b16 %v741
  %v815 = vunpack.c.l.b16 %v742
  %v816 = vunpack.c.h.b16 %v742
  %v817 = vunpack.c.l.b16 %v743
  %v818 = vunpack.c.h.b16 %v743
  %v819 = vunpack.c.l.b16 %v744
  %v820 = vunpack.c.h.b16 %v744
  %v821 = vunpack.c.l.b16 %v745
  %v822 = vunpack.c.h.b16 %v745
  %v823 = vunpack.c.l.b16 %v746
  %v824 = vunpack.c.h.b16 %v746
  %v825 = vunpack.c.l.b16 %v747
  %v826 = vunpack.c.h.b16 %v747
  %v827 = vunpack.c.l.b16 %v748
  %v828 = vunpack.c.h.b16 %v748
  %v829 = vunpack.c.l.b16 %v749
  %v830 = vunpack.c.h.b16 %v749
  %v831 = vunpack.c.l.b16 %v750
  %v832 = vunpack.c.h.b16 %v750
  %v833 = vunpack.c.l.b16 %v751
  %v834 = vunpack.c.h.b16 %v751
  %v835 = vunpack.c.l.b16 %v752
  %v836 = vunpack.c.h.b16 %v752
  %v837 = vunpack.c.l.b16 %v753
  %v838 = vunpack.c.h.b16 %v753
  %v839 = vunpack.c.l.b16 %v754
  %v840 = vunpack.c.h.b16 %v754
  %v841 = vunpack.c.l.b16 %v755
  %v842 = vunpack.c.h.b16 %v755
  %v843 = vunpack.c.l.b16 %v756
  %v844 = vunpack.c.h.b16 %v756
  %v845 = vunpack.c.l.b16 %v757
  %v846 = vunpack.c.h.b16 %v757
  %v847 = vunpack.c.l.b16 %v758
  %v848 = vunpack.c.h.b16 %v758
  %v849 = vunpack.c.l.b16 %v759
  %v850 = vunpack.c.h.b16 %v759
  %v851 = vunpack.c.l.b16 %v760
  %v852 = vunpack.c.h.b16 %v760
  %v853 = vunpack.c.l.b16 %v761
  %v854 = vunpack.c.h.b16 %v761
  %v855 = vunpack.c.l.b16 %v762
  %v856 = vunpack.c.h.b16 %v762
  %v857 = vunpack.c.l.b16 %v763
  %v858 = vunpack.c.h.b16 %v763
  %v859 = vunpack.c.l.b16 %v764
  %v860 = vunpack.c.h.b16 %v764
  %v861 = vpack.c.b16 %v799, %v797
  %v862 = vpack.c.b16 %v800, %v798
  %v863 = vpack.c.b16 %v803, %v801
  %v864 = vpack.c.b16 %v804, %v802
  %v865 = vpack.c.b16 %v807, %v805
  %v866 = vpack.c.b16 %v808, %v806
  %v867 = vpack.c.b16 %v811, %v809
  %v868 = vpack.c.b16 %v812, %v810
  %v869 = vpack.c.b16 %v815, %v813
  %v870 = vpack.c.b16 %v816, %v814
  %v871 = vpack.c.b16 %v819, %v817
  %v872 = vpack.c.b16 %v820, %v818
  %v873 = vpack.c.b16 %v823, %v821
  %v874 = vpack.c.b16 %v824, %v822
  %v875 = vpack.c.b16 %v827, %v825
  %v876 = vpack.c.b16 %v828, %v826
  %v877 = vpack.c.b16 %v831, %v829
  %v878 = vpack.c.b16 %v832, %v830
  %v879 = vpack.c.b16 %v835, %v833
  %v880 = vpack.c.b16 %v836, %v834
  %v881 = vpack.c.b16 %v839, %v837
  %v882 = vpack.c.b16 %v840, %v838
  %v883 = vpack.c.b16 %v843, %v841
  %v884 = vpack.c.b16 %v844, %v842
  %v885 = vpack.c.b16 %v847, %v845
  %v886 = vpack.c.b16 %v848, %v846
  %v887 = vpack.c.b16 %v851, %v849
  %v888 = vpack.c.b16 %v852, %v850
  %v889 = vpack.c.b16 %v855, %v853
  %v890 = vpack.c.b16 %v856, %v854
  %v891 = vpack.c.b16 %v859, %v857
  %v892 = vpack.c.b16 %v860, %v858
  %925 = vmatprep.subr.bf16.mxu0 0
  %926 = vmatpush1.bf16.msra.mxu0 %v322
  %927 = vmatprep.subr.bf16.mxu0 0
  %928 = vmatpush1.bf16.msra.mxu0 %v321
  %929 = vmatprep.subr.bf16.mxu0 0
  %930 = vmatpush1.bf16.msra.mxu0 %v320
  %931 = vmatprep.subr.bf16.mxu0 0
  %932 = vmatpush1.bf16.msra.mxu0 %v319
  %933 = vmatprep.subr.bf16.mxu0 0
  %934 = vmatpush1.bf16.msra.mxu0 %v318
  %935 = vmatprep.subr.bf16.mxu0 0
  %936 = vmatpush1.bf16.msra.mxu0 %v317
  %937 = vmatprep.subr.bf16.mxu0 0
  %938 = vmatpush1.bf16.msra.mxu0 %v316
  %939 = vmatprep.subr.bf16.mxu0 0
  %940 = vmatpush1.bf16.msra.mxu0 %v315
  %941 = vmatprep.subr.bf16.mxu0 0
  %942 = vmatpush2.bf16.msra.mxu0 %v330
  %943 = vmatprep.subr.bf16.mxu0 0
  %944 = vmatpush2.bf16.msra.mxu0 %v329
  %945 = vmatprep.subr.bf16.mxu0 0
  %946 = vmatpush2.bf16.msra.mxu0 %v328
  %947 = vmatprep.subr.bf16.mxu0 0
  %948 = vmatpush2.bf16.msra.mxu0 %v327
  %949 = vmatprep.subr.bf16.mxu0 0
  %950 = vmatpush2.bf16.msra.mxu0 %v326
  %951 = vmatprep.subr.bf16.mxu0 0
  %952 = vmatpush2.bf16.msra.mxu0 %v325
  %953 = vmatprep.subr.bf16.mxu0 0
  %954 = vmatpush2.bf16.msra.mxu0 %v324
  %955 = vmatprep.subr.bf16.mxu0 0
  %956 = vmatpush2.bf16.msra.mxu0 %v323
  %957 = vmatprep.mubr.bf16.mxu0 %v862
  %958 = vmatmul.mubr.bf16.gmra.mxu0 %v861
  %v959 = vpop.f32.mrf.mxu0
  %v960 = vadd.f32 0.0, %v959
  %v961 = vpop.f32.mrf.mxu0
  %v962 = vpop.f32.mrf.mxu0
  %v963 = vadd.f32 0.0, %v962
  %v964 = vpop.f32.mrf.mxu0
  %965 = vmatprep.mubr.bf16.mxu0 %v864
  %966 = vmatmul.mubr.bf16.gmra.mxu0 %v863
  %v967 = vpop.f32.mrf.mxu0
  %v968 = vadd.f32 0.0, %v967
  %v969 = vpop.f32.mrf.mxu0
  %v970 = vpop.f32.mrf.mxu0
  %v971 = vadd.f32 0.0, %v970
  %v972 = vpop.f32.mrf.mxu0
  %973 = vmatprep.mubr.bf16.mxu0 %v866
  %974 = vmatmul.mubr.bf16.gmra.mxu0 %v865
  %v975 = vpop.f32.mrf.mxu0
  %v976 = vadd.f32 0.0, %v975
  %v977 = vpop.f32.mrf.mxu0
  %v978 = vpop.f32.mrf.mxu0
  %v979 = vadd.f32 0.0, %v978
  %v980 = vpop.f32.mrf.mxu0
  %981 = vmatprep.mubr.bf16.mxu0 %v868
  %982 = vmatmul.mubr.bf16.gmra.mxu0 %v867
  %v983 = vpop.f32.mrf.mxu0
  %v984 = vadd.f32 0.0, %v983
  %v985 = vpop.f32.mrf.mxu0
  %v986 = vpop.f32.mrf.mxu0
  %v987 = vadd.f32 0.0, %v986
  %v988 = vpop.f32.mrf.mxu0
  %989 = vmatprep.mubr.bf16.mxu0 %v870
  %990 = vmatmul.mubr.bf16.gmra.mxu0 %v869
  %v991 = vpop.f32.mrf.mxu0
  %v992 = vadd.f32 0.0, %v991
  %v993 = vpop.f32.mrf.mxu0
  %v994 = vpop.f32.mrf.mxu0
  %v995 = vadd.f32 0.0, %v994
  %v996 = vpop.f32.mrf.mxu0
  %997 = vmatprep.mubr.bf16.mxu0 %v872
  %998 = vmatmul.mubr.bf16.gmra.mxu0 %v871
  %v999 = vpop.f32.mrf.mxu0
  %v1000 = vadd.f32 0.0, %v999
  %v1001 = vpop.f32.mrf.mxu0
  %v1002 = vpop.f32.mrf.mxu0
  %v1003 = vadd.f32 0.0, %v1002
  %v1004 = vpop.f32.mrf.mxu0
  %1005 = vmatprep.mubr.bf16.mxu0 %v874
  %1006 = vmatmul.mubr.bf16.gmra.mxu0 %v873
  %v1007 = vpop.f32.mrf.mxu0
  %v1008 = vadd.f32 0.0, %v1007
  %v1009 = vpop.f32.mrf.mxu0
  %v1010 = vpop.f32.mrf.mxu0
  %v1011 = vadd.f32 0.0, %v1010
  %v1012 = vpop.f32.mrf.mxu0
  %1013 = vmatprep.mubr.bf16.mxu0 %v876
  %1014 = vmatmul.mubr.bf16.gmra.mxu0 %v875
  %v1015 = vpop.f32.mrf.mxu0
  %v1016 = vadd.f32 0.0, %v1015
  %v1017 = vpop.f32.mrf.mxu0
  %v1018 = vpop.f32.mrf.mxu0
  %v1019 = vadd.f32 0.0, %v1018
  %v1020 = vpop.f32.mrf.mxu0
  %1021 = vmatprep.mubr.bf16.mxu0 %v878
  %1022 = vmatmul.mubr.bf16.gmra.mxu0 %v877
  %v1023 = vpop.f32.mrf.mxu0
  %v1024 = vadd.f32 0.0, %v1023
  %v1025 = vpop.f32.mrf.mxu0
  %v1026 = vpop.f32.mrf.mxu0
  %v1027 = vadd.f32 0.0, %v1026
  %v1028 = vpop.f32.mrf.mxu0
  %1029 = vmatprep.mubr.bf16.mxu0 %v880
  %1030 = vmatmul.mubr.bf16.gmra.mxu0 %v879
  %v1031 = vpop.f32.mrf.mxu0
  %v1032 = vadd.f32 0.0, %v1031
  %v1033 = vpop.f32.mrf.mxu0
  %v1034 = vpop.f32.mrf.mxu0
  %v1035 = vadd.f32 0.0, %v1034
  %v1036 = vpop.f32.mrf.mxu0
  %1037 = vmatprep.mubr.bf16.mxu0 %v882
  %1038 = vmatmul.mubr.bf16.gmra.mxu0 %v881
  %v1039 = vpop.f32.mrf.mxu0
  %v1040 = vadd.f32 0.0, %v1039
  %v1041 = vpop.f32.mrf.mxu0
  %v1042 = vpop.f32.mrf.mxu0
  %v1043 = vadd.f32 0.0, %v1042
  %v1044 = vpop.f32.mrf.mxu0
  %1045 = vmatprep.mubr.bf16.mxu0 %v884
  %1046 = vmatmul.mubr.bf16.gmra.mxu0 %v883
  %v1047 = vpop.f32.mrf.mxu0
  %v1048 = vadd.f32 0.0, %v1047
  %v1049 = vpop.f32.mrf.mxu0
  %v1050 = vpop.f32.mrf.mxu0
  %v1051 = vadd.f32 0.0, %v1050
  %v1052 = vpop.f32.mrf.mxu0
  %1053 = vmatprep.mubr.bf16.mxu0 %v886
  %1054 = vmatmul.mubr.bf16.gmra.mxu0 %v885
  %v1055 = vpop.f32.mrf.mxu0
  %v1056 = vadd.f32 0.0, %v1055
  %v1057 = vpop.f32.mrf.mxu0
  %v1058 = vpop.f32.mrf.mxu0
  %v1059 = vadd.f32 0.0, %v1058
  %v1060 = vpop.f32.mrf.mxu0
  %1061 = vmatprep.mubr.bf16.mxu0 %v888
  %1062 = vmatmul.mubr.bf16.gmra.mxu0 %v887
  %v1063 = vpop.f32.mrf.mxu0
  %v1064 = vadd.f32 0.0, %v1063
  %v1065 = vpop.f32.mrf.mxu0
  %v1066 = vpop.f32.mrf.mxu0
  %v1067 = vadd.f32 0.0, %v1066
  %v1068 = vpop.f32.mrf.mxu0
  %1069 = vmatprep.mubr.bf16.mxu0 %v890
  %1070 = vmatmul.mubr.bf16.gmra.mxu0 %v889
  %v1071 = vpop.f32.mrf.mxu0
  %v1072 = vadd.f32 0.0, %v1071
  %v1073 = vpop.f32.mrf.mxu0
  %v1074 = vpop.f32.mrf.mxu0
  %v1075 = vadd.f32 0.0, %v1074
  %v1076 = vpop.f32.mrf.mxu0
  %1077 = vmatprep.mubr.bf16.mxu0 %v892
  %1078 = vmatmul.mubr.bf16.gmra.mxu0 %v891
  %v1079 = vpop.f32.mrf.mxu0
  %v1080 = vadd.f32 0.0, %v1079
  %v1081 = vpop.f32.mrf.mxu0
  %v1082 = vpop.f32.mrf.mxu0
  %v1083 = vadd.f32 0.0, %v1082
  %v1084 = vpop.f32.mrf.mxu0
  %1085 = vdwg.mxu0
  %1086 = vset.pattern.permute.xlu0 1
  %1087 = vperm.xlu0 %1086, %v508
  %v1088 = vpop.permute.xlu0 %1087
  %1090 = vset.pattern.permute.xlu0 1
  %1091 = vperm.xlu0 %1090, %v509
  %v1092 = vpop.permute.xlu0 %1091
  %1094 = vset.pattern.permute.xlu0 1
  %1095 = vperm.xlu0 %1094, %v510
  %v1096 = vpop.permute.xlu0 %1095
  %1098 = vset.pattern.permute.xlu0 1
  %1099 = vperm.xlu0 %1098, %v511
  %v1100 = vpop.permute.xlu0 %1099
  %1102 = vset.pattern.permute.xlu0 1
  %1103 = vperm.xlu0 %1102, %v512
  %v1104 = vpop.permute.xlu0 %1103
  %1106 = vset.pattern.permute.xlu0 1
  %1107 = vperm.xlu0 %1106, %v513
  %v1108 = vpop.permute.xlu0 %1107
  %1110 = vset.pattern.permute.xlu0 1
  %1111 = vperm.xlu0 %1110, %v514
  %v1112 = vpop.permute.xlu0 %1111
  %1114 = vset.pattern.permute.xlu0 1
  %1115 = vperm.xlu0 %1114, %v515
  %v1116 = vpop.permute.xlu0 %1115
  %1118 = vset.pattern.permute.xlu0 1
  %1119 = vperm.xlu0 %1118, %v516
  %v1120 = vpop.permute.xlu0 %1119
  %1122 = vset.pattern.permute.xlu0 1
  %1123 = vperm.xlu0 %1122, %v517
  %v1124 = vpop.permute.xlu0 %1123
  %1126 = vset.pattern.permute.xlu0 1
  %1127 = vperm.xlu0 %1126, %v518
  %v1128 = vpop.permute.xlu0 %1127
  %1130 = vset.pattern.permute.xlu0 1
  %1131 = vperm.xlu0 %1130, %v519
  %v1132 = vpop.permute.xlu0 %1131
  %1134 = vset.pattern.permute.xlu0 1
  %1135 = vperm.xlu0 %1134, %v520
  %v1136 = vpop.permute.xlu0 %1135
  %1138 = vset.pattern.permute.xlu0 1
  %1139 = vperm.xlu0 %1138, %v521
  %v1140 = vpop.permute.xlu0 %1139
  %1142 = vset.pattern.permute.xlu0 1
  %1143 = vperm.xlu0 %1142, %v522
  %v1144 = vpop.permute.xlu0 %1143
  %1146 = vset.pattern.permute.xlu0 1
  %1147 = vperm.xlu0 %1146, %v523
  %v1148 = vpop.permute.xlu0 %1147
  %1150 = vset.pattern.permute.xlu0 1
  %1151 = vperm.xlu0 %1150, %v524
  %v1152 = vpop.permute.xlu0 %1151
  %1154 = vset.pattern.permute.xlu0 1
  %1155 = vperm.xlu0 %1154, %v525
  %v1156 = vpop.permute.xlu0 %1155
  %1158 = vset.pattern.permute.xlu0 1
  %1159 = vperm.xlu0 %1158, %v526
  %v1160 = vpop.permute.xlu0 %1159
  %1162 = vset.pattern.permute.xlu0 1
  %1163 = vperm.xlu0 %1162, %v527
  %v1164 = vpop.permute.xlu0 %1163
  %1166 = vset.pattern.permute.xlu0 1
  %1167 = vperm.xlu0 %1166, %v528
  %v1168 = vpop.permute.xlu0 %1167
  %1170 = vset.pattern.permute.xlu0 1
  %1171 = vperm.xlu0 %1170, %v529
  %v1172 = vpop.permute.xlu0 %1171
  %1174 = vset.pattern.permute.xlu0 1
  %1175 = vperm.xlu0 %1174, %v530
  %v1176 = vpop.permute.xlu0 %1175
  %1178 = vset.pattern.permute.xlu0 1
  %1179 = vperm.xlu0 %1178, %v531
  %v1180 = vpop.permute.xlu0 %1179
  %1182 = vset.pattern.permute.xlu0 1
  %1183 = vperm.xlu0 %1182, %v532
  %v1184 = vpop.permute.xlu0 %1183
  %1186 = vset.pattern.permute.xlu0 1
  %1187 = vperm.xlu0 %1186, %v533
  %v1188 = vpop.permute.xlu0 %1187
  %1190 = vset.pattern.permute.xlu0 1
  %1191 = vperm.xlu0 %1190, %v534
  %v1192 = vpop.permute.xlu0 %1191
  %1194 = vset.pattern.permute.xlu0 1
  %1195 = vperm.xlu0 %1194, %v535
  %v1196 = vpop.permute.xlu0 %1195
  %1198 = vset.pattern.permute.xlu0 1
  %1199 = vperm.xlu0 %1198, %v536
  %v1200 = vpop.permute.xlu0 %1199
  %1202 = vset.pattern.permute.xlu0 1
  %1203 = vperm.xlu0 %1202, %v537
  %v1204 = vpop.permute.xlu0 %1203
  %1206 = vset.pattern.permute.xlu0 1
  %1207 = vperm.xlu0 %1206, %v538
  %v1208 = vpop.permute.xlu0 %1207
  %1210 = vset.pattern.permute.xlu0 1
  %1211 = vperm.xlu0 %1210, %v539
  %v1212 = vpop.permute.xlu0 %1211
  %v1214 = vmul.f32 %v960, %v1088
  %v1215 = vmul.f32 %v963, %v1092
  %v1216 = vmul.f32 %v968, %v1096
  %v1217 = vmul.f32 %v971, %v1100
  %v1218 = vmul.f32 %v976, %v1104
  %v1219 = vmul.f32 %v979, %v1108
  %v1220 = vmul.f32 %v984, %v1112
  %v1221 = vmul.f32 %v987, %v1116
  %v1222 = vmul.f32 %v992, %v1120
  %v1223 = vmul.f32 %v995, %v1124
  %v1224 = vmul.f32 %v1000, %v1128
  %v1225 = vmul.f32 %v1003, %v1132
  %v1226 = vmul.f32 %v1008, %v1136
  %v1227 = vmul.f32 %v1011, %v1140
  %v1228 = vmul.f32 %v1016, %v1144
  %v1229 = vmul.f32 %v1019, %v1148
  %v1230 = vmul.f32 %v1024, %v1152
  %v1231 = vmul.f32 %v1027, %v1156
  %v1232 = vmul.f32 %v1032, %v1160
  %v1233 = vmul.f32 %v1035, %v1164
  %v1234 = vmul.f32 %v1040, %v1168
  %v1235 = vmul.f32 %v1043, %v1172
  %v1236 = vmul.f32 %v1048, %v1176
  %v1237 = vmul.f32 %v1051, %v1180
  %v1238 = vmul.f32 %v1056, %v1184
  %v1239 = vmul.f32 %v1059, %v1188
  %v1240 = vmul.f32 %v1064, %v1192
  %v1241 = vmul.f32 %v1067, %v1196
  %v1242 = vmul.f32 %v1072, %v1200
  %v1243 = vmul.f32 %v1075, %v1204
  %v1244 = vmul.f32 %v1080, %v1208
  %v1245 = vmul.f32 %v1083, %v1212
  %s1246 = smul.u32 0, 256
  %s1247 = sshra.s32 %s1246, 3
  %s1248 = sand.u32 %s1246, 7
  %s1249 = smul.addr %s1247, 4
  %s1250 = scalar_lea.vmem %s2, %s1249
  %v1251 = vld [vmem:[%s1250] sm:$0xf]
  %v1252 = vld [vmem:[%s1250 + $0x4] sm:$0xf]
  %v1253 = vld [vmem:[%s1250 + $0x8] sm:$0xf]
  %v1254 = vld [vmem:[%s1250 + $0xc] sm:$0xf]
  %v1255 = vld [vmem:[%s1250 + $0x10] sm:$0xf]
  %v1256 = vld [vmem:[%s1250 + $0x14] sm:$0xf]
  %v1257 = vld [vmem:[%s1250 + $0x18] sm:$0xf]
  %v1258 = vld [vmem:[%s1250 + $0x1c] sm:$0xf]
  %v1259 = vld [vmem:[%s1250 + $0x20] sm:$0xf]
  %v1260 = vld [vmem:[%s1250 + $0x24] sm:$0xf]
  %v1261 = vld [vmem:[%s1250 + $0x28] sm:$0xf]
  %v1262 = vld [vmem:[%s1250 + $0x2c] sm:$0xf]
  %v1263 = vld [vmem:[%s1250 + $0x30] sm:$0xf]
  %v1264 = vld [vmem:[%s1250 + $0x34] sm:$0xf]
  %v1265 = vld [vmem:[%s1250 + $0x38] sm:$0xf]
  %v1266 = vld [vmem:[%s1250 + $0x3c] sm:$0xf]
  %v1267 = vld [vmem:[%s1250 + $0x40] sm:$0xf]
  %v1268 = vld [vmem:[%s1250 + $0x44] sm:$0xf]
  %v1269 = vld [vmem:[%s1250 + $0x48] sm:$0xf]
  %v1270 = vld [vmem:[%s1250 + $0x4c] sm:$0xf]
  %v1271 = vld [vmem:[%s1250 + $0x50] sm:$0xf]
  %v1272 = vld [vmem:[%s1250 + $0x54] sm:$0xf]
  %v1273 = vld [vmem:[%s1250 + $0x58] sm:$0xf]
  %v1274 = vld [vmem:[%s1250 + $0x5c] sm:$0xf]
  %v1275 = vld [vmem:[%s1250 + $0x60] sm:$0xf]
  %v1276 = vld [vmem:[%s1250 + $0x64] sm:$0xf]
  %v1277 = vld [vmem:[%s1250 + $0x68] sm:$0xf]
  %v1278 = vld [vmem:[%s1250 + $0x6c] sm:$0xf]
  %v1279 = vld [vmem:[%s1250 + $0x70] sm:$0xf]
  %v1280 = vld [vmem:[%s1250 + $0x74] sm:$0xf]
  %v1281 = vld [vmem:[%s1250 + $0x78] sm:$0xf]
  %v1282 = vld [vmem:[%s1250 + $0x7c] sm:$0xf]
  %v1283 = vpack.c.bf16 %v701, %v700
  %v1284 = vpack.c.bf16 %v703, %v702
  %v1285 = vpack.c.bf16 %v705, %v704
  %v1286 = vpack.c.bf16 %v707, %v706
  %v1287 = vpack.c.bf16 %v709, %v708
  %v1288 = vpack.c.bf16 %v711, %v710
  %v1289 = vpack.c.bf16 %v713, %v712
  %v1290 = vpack.c.bf16 %v715, %v714
  %v1291 = vpack.c.bf16 %v717, %v716
  %v1292 = vpack.c.bf16 %v719, %v718
  %v1293 = vpack.c.bf16 %v721, %v720
  %v1294 = vpack.c.bf16 %v723, %v722
  %v1295 = vpack.c.bf16 %v725, %v724
  %v1296 = vpack.c.bf16 %v727, %v726
  %v1297 = vpack.c.bf16 %v729, %v728
  %v1298 = vpack.c.bf16 %v731, %v730
  %v1299 = vld [vmem:[%s3] sm:$0xf]
  %v1300 = vld [vmem:[%s3 + $0x4] sm:$0xf]
  %v1301 = vld [vmem:[%s3 + $0x8] sm:$0xf]
  %v1302 = vld [vmem:[%s3 + $0xc] sm:$0xf]
  %v1303 = vld [vmem:[%s3 + $0x10] sm:$0xf]
  %v1304 = vld [vmem:[%s3 + $0x14] sm:$0xf]
  %v1305 = vld [vmem:[%s3 + $0x18] sm:$0xf]
  %v1306 = vld [vmem:[%s3 + $0x1c] sm:$0xf]
  %v1307 = vld [vmem:[%s3 + $0x20] sm:$0xf]
  %v1308 = vld [vmem:[%s3 + $0x24] sm:$0xf]
  %v1309 = vld [vmem:[%s3 + $0x28] sm:$0xf]
  %v1310 = vld [vmem:[%s3 + $0x2c] sm:$0xf]
  %v1311 = vld [vmem:[%s3 + $0x30] sm:$0xf]
  %v1312 = vld [vmem:[%s3 + $0x34] sm:$0xf]
  %v1313 = vld [vmem:[%s3 + $0x38] sm:$0xf]
  %v1314 = vld [vmem:[%s3 + $0x3c] sm:$0xf]
  %v1315 = vpack.c.bf16 %v1215, %v1214
  %v1316 = vpack.c.bf16 %v1217, %v1216
  %v1317 = vpack.c.bf16 %v1219, %v1218
  %v1318 = vpack.c.bf16 %v1221, %v1220
  %v1319 = vpack.c.bf16 %v1223, %v1222
  %v1320 = vpack.c.bf16 %v1225, %v1224
  %v1321 = vpack.c.bf16 %v1227, %v1226
  %v1322 = vpack.c.bf16 %v1229, %v1228
  %v1323 = vpack.c.bf16 %v1231, %v1230
  %v1324 = vpack.c.bf16 %v1233, %v1232
  %v1325 = vpack.c.bf16 %v1235, %v1234
  %v1326 = vpack.c.bf16 %v1237, %v1236
  %v1327 = vpack.c.bf16 %v1239, %v1238
  %v1328 = vpack.c.bf16 %v1241, %v1240
  %v1329 = vpack.c.bf16 %v1243, %v1242
  %v1330 = vpack.c.bf16 %v1245, %v1244
  %v1331 = vld [vmem:[%s4] sm:$0xf]
  %v1332 = vld [vmem:[%s4 + $0x4] sm:$0xf]
  %v1333 = vld [vmem:[%s4 + $0x8] sm:$0xf]
  %v1334 = vld [vmem:[%s4 + $0xc] sm:$0xf]
  %v1335 = vld [vmem:[%s4 + $0x10] sm:$0xf]
  %v1336 = vld [vmem:[%s4 + $0x14] sm:$0xf]
  %v1337 = vld [vmem:[%s4 + $0x18] sm:$0xf]
  %v1338 = vld [vmem:[%s4 + $0x1c] sm:$0xf]
  %v1339 = vld [vmem:[%s4 + $0x20] sm:$0xf]
  %v1340 = vld [vmem:[%s4 + $0x24] sm:$0xf]
  %v1341 = vld [vmem:[%s4 + $0x28] sm:$0xf]
  %v1342 = vld [vmem:[%s4 + $0x2c] sm:$0xf]
  %v1343 = vld [vmem:[%s4 + $0x30] sm:$0xf]
  %v1344 = vld [vmem:[%s4 + $0x34] sm:$0xf]
  %v1345 = vld [vmem:[%s4 + $0x38] sm:$0xf]
  %v1346 = vld [vmem:[%s4 + $0x3c] sm:$0xf]
  %v1363 = vunpack.c.l.b16 %v1331
  %v1364 = vunpack.c.l.b16 %v1332
  %v1365 = vunpack.c.l.b16 %v1333
  %v1366 = vunpack.c.l.b16 %v1334
  %v1367 = vunpack.c.l.b16 %v1335
  %v1368 = vunpack.c.l.b16 %v1336
  %v1369 = vunpack.c.l.b16 %v1337
  %v1370 = vunpack.c.l.b16 %v1338
  %v1371 = vunpack.c.l.b16 %v1339
  %v1372 = vunpack.c.l.b16 %v1340
  %v1373 = vunpack.c.l.b16 %v1341
  %v1374 = vunpack.c.l.b16 %v1342
  %v1375 = vunpack.c.l.b16 %v1343
  %v1376 = vunpack.c.l.b16 %v1344
  %v1377 = vunpack.c.l.b16 %v1345
  %v1378 = vunpack.c.l.b16 %v1346
  %v1379 = vpack.c.b16 %v1364, %v1363
  %v1380 = vpack.c.b16 %v1366, %v1365
  %v1381 = vpack.c.b16 %v1368, %v1367
  %v1382 = vpack.c.b16 %v1370, %v1369
  %v1383 = vpack.c.b16 %v1372, %v1371
  %v1384 = vpack.c.b16 %v1374, %v1373
  %v1385 = vpack.c.b16 %v1376, %v1375
  %v1386 = vpack.c.b16 %v1378, %v1377
  %1395 = vmatprep.subr.bf16.mxu0 0
  %1396 = vmatpush1.bf16.msra.mxu0 %v1386
  %1397 = vmatprep.subr.bf16.mxu0 0
  %1398 = vmatpush1.bf16.msra.mxu0 %v1385
  %1399 = vmatprep.subr.bf16.mxu0 0
  %1400 = vmatpush1.bf16.msra.mxu0 %v1384
  %1401 = vmatprep.subr.bf16.mxu0 0
  %1402 = vmatpush1.bf16.msra.mxu0 %v1383
  %1403 = vmatprep.subr.bf16.mxu0 0
  %1404 = vmatpush1.bf16.msra.mxu0 %v1382
  %1405 = vmatprep.subr.bf16.mxu0 0
  %1406 = vmatpush1.bf16.msra.mxu0 %v1381
  %1407 = vmatprep.subr.bf16.mxu0 0
  %1408 = vmatpush1.bf16.msra.mxu0 %v1380
  %1409 = vmatprep.subr.bf16.mxu0 0
  %1410 = vmatpush1.bf16.msra.mxu0 %v1379
  %1411 = vmatprep.subr.bf16.mxu0 0
  %1412 = vmatpush2.bf16.msra.mxu0 0
  %1413 = vmatprep.subr.bf16.mxu0 0
  %1414 = vmatpush2.bf16.msra.mxu0 0
  %1415 = vmatprep.subr.bf16.mxu0 0
  %1416 = vmatpush2.bf16.msra.mxu0 0
  %1417 = vmatprep.subr.bf16.mxu0 0
  %1418 = vmatpush2.bf16.msra.mxu0 0
  %1419 = vmatprep.subr.bf16.mxu0 0
  %1420 = vmatpush2.bf16.msra.mxu0 0
  %1421 = vmatprep.subr.bf16.mxu0 0
  %1422 = vmatpush2.bf16.msra.mxu0 0
  %1423 = vmatprep.subr.bf16.mxu0 0
  %1424 = vmatpush2.bf16.msra.mxu0 0
  %1425 = vmatprep.subr.bf16.mxu0 0
  %1426 = vmatpush2.bf16.msra.mxu0 0
  %1427 = vmatprep.mubr.bf16.mxu0 0
  %1428 = vmatmul.mubr.bf16.gmra.mxu0 %v1315
  %v1429 = vpop.f32.mrf.mxu0
  %v1430 = vadd.f32 0.0, %v1429
  %v1431 = vpop.f32.mrf.mxu0
  %v1432 = vpop.f32.mrf.mxu0
  %v1433 = vadd.f32 0.0, %v1432
  %v1434 = vpop.f32.mrf.mxu0
  %1435 = vmatprep.mubr.bf16.mxu0 0
  %1436 = vmatmul.mubr.bf16.gmra.mxu0 %v1316
  %v1437 = vpop.f32.mrf.mxu0
  %v1438 = vadd.f32 0.0, %v1437
  %v1439 = vpop.f32.mrf.mxu0
  %v1440 = vpop.f32.mrf.mxu0
  %v1441 = vadd.f32 0.0, %v1440
  %v1442 = vpop.f32.mrf.mxu0
  %1443 = vmatprep.mubr.bf16.mxu0 0
  %1444 = vmatmul.mubr.bf16.gmra.mxu0 %v1317
  %v1445 = vpop.f32.mrf.mxu0
  %v1446 = vadd.f32 0.0, %v1445
  %v1447 = vpop.f32.mrf.mxu0
  %v1448 = vpop.f32.mrf.mxu0
  %v1449 = vadd.f32 0.0, %v1448
  %v1450 = vpop.f32.mrf.mxu0
  %1451 = vmatprep.mubr.bf16.mxu0 0
  %1452 = vmatmul.mubr.bf16.gmra.mxu0 %v1318
  %v1453 = vpop.f32.mrf.mxu0
  %v1454 = vadd.f32 0.0, %v1453
  %v1455 = vpop.f32.mrf.mxu0
  %v1456 = vpop.f32.mrf.mxu0
  %v1457 = vadd.f32 0.0, %v1456
  %v1458 = vpop.f32.mrf.mxu0
  %1459 = vmatprep.mubr.bf16.mxu0 0
  %1460 = vmatmul.mubr.bf16.gmra.mxu0 %v1319
  %v1461 = vpop.f32.mrf.mxu0
  %v1462 = vadd.f32 0.0, %v1461
  %v1463 = vpop.f32.mrf.mxu0
  %v1464 = vpop.f32.mrf.mxu0
  %v1465 = vadd.f32 0.0, %v1464
  %v1466 = vpop.f32.mrf.mxu0
  %1467 = vmatprep.mubr.bf16.mxu0 0
  %1468 = vmatmul.mubr.bf16.gmra.mxu0 %v1320
  %v1469 = vpop.f32.mrf.mxu0
  %v1470 = vadd.f32 0.0, %v1469
  %v1471 = vpop.f32.mrf.mxu0
  %v1472 = vpop.f32.mrf.mxu0
  %v1473 = vadd.f32 0.0, %v1472
  %v1474 = vpop.f32.mrf.mxu0
  %1475 = vmatprep.mubr.bf16.mxu0 0
  %1476 = vmatmul.mubr.bf16.gmra.mxu0 %v1321
  %v1477 = vpop.f32.mrf.mxu0
  %v1478 = vadd.f32 0.0, %v1477
  %v1479 = vpop.f32.mrf.mxu0
  %v1480 = vpop.f32.mrf.mxu0
  %v1481 = vadd.f32 0.0, %v1480
  %v1482 = vpop.f32.mrf.mxu0
  %1483 = vmatprep.mubr.bf16.mxu0 0
  %1484 = vmatmul.mubr.bf16.gmra.mxu0 %v1322
  %v1485 = vpop.f32.mrf.mxu0
  %v1486 = vadd.f32 0.0, %v1485
  %v1487 = vpop.f32.mrf.mxu0
  %v1488 = vpop.f32.mrf.mxu0
  %v1489 = vadd.f32 0.0, %v1488
  %v1490 = vpop.f32.mrf.mxu0
  %1491 = vmatprep.mubr.bf16.mxu0 0
  %1492 = vmatmul.mubr.bf16.gmra.mxu0 %v1323
  %v1493 = vpop.f32.mrf.mxu0
  %v1494 = vadd.f32 0.0, %v1493
  %v1495 = vpop.f32.mrf.mxu0
  %v1496 = vpop.f32.mrf.mxu0
  %v1497 = vadd.f32 0.0, %v1496
  %v1498 = vpop.f32.mrf.mxu0
  %1499 = vmatprep.mubr.bf16.mxu0 0
  %1500 = vmatmul.mubr.bf16.gmra.mxu0 %v1324
  %v1501 = vpop.f32.mrf.mxu0
  %v1502 = vadd.f32 0.0, %v1501
  %v1503 = vpop.f32.mrf.mxu0
  %v1504 = vpop.f32.mrf.mxu0
  %v1505 = vadd.f32 0.0, %v1504
  %v1506 = vpop.f32.mrf.mxu0
  %1507 = vmatprep.mubr.bf16.mxu0 0
  %1508 = vmatmul.mubr.bf16.gmra.mxu0 %v1325
  %v1509 = vpop.f32.mrf.mxu0
  %v1510 = vadd.f32 0.0, %v1509
  %v1511 = vpop.f32.mrf.mxu0
  %v1512 = vpop.f32.mrf.mxu0
  %v1513 = vadd.f32 0.0, %v1512
  %v1514 = vpop.f32.mrf.mxu0
  %1515 = vmatprep.mubr.bf16.mxu0 0
  %1516 = vmatmul.mubr.bf16.gmra.mxu0 %v1326
  %v1517 = vpop.f32.mrf.mxu0
  %v1518 = vadd.f32 0.0, %v1517
  %v1519 = vpop.f32.mrf.mxu0
  %v1520 = vpop.f32.mrf.mxu0
  %v1521 = vadd.f32 0.0, %v1520
  %v1522 = vpop.f32.mrf.mxu0
  %1523 = vmatprep.mubr.bf16.mxu0 0
  %1524 = vmatmul.mubr.bf16.gmra.mxu0 %v1327
  %v1525 = vpop.f32.mrf.mxu0
  %v1526 = vadd.f32 0.0, %v1525
  %v1527 = vpop.f32.mrf.mxu0
  %v1528 = vpop.f32.mrf.mxu0
  %v1529 = vadd.f32 0.0, %v1528
  %v1530 = vpop.f32.mrf.mxu0
  %1531 = vmatprep.mubr.bf16.mxu0 0
  %1532 = vmatmul.mubr.bf16.gmra.mxu0 %v1328
  %v1533 = vpop.f32.mrf.mxu0
  %v1534 = vadd.f32 0.0, %v1533
  %v1535 = vpop.f32.mrf.mxu0
  %v1536 = vpop.f32.mrf.mxu0
  %v1537 = vadd.f32 0.0, %v1536
  %v1538 = vpop.f32.mrf.mxu0
  %1539 = vmatprep.mubr.bf16.mxu0 0
  %1540 = vmatmul.mubr.bf16.gmra.mxu0 %v1329
  %v1541 = vpop.f32.mrf.mxu0
  %v1542 = vadd.f32 0.0, %v1541
  %v1543 = vpop.f32.mrf.mxu0
  %v1544 = vpop.f32.mrf.mxu0
  %v1545 = vadd.f32 0.0, %v1544
  %v1546 = vpop.f32.mrf.mxu0
  %1547 = vmatprep.mubr.bf16.mxu0 0
  %1548 = vmatmul.mubr.bf16.gmra.mxu0 %v1330
  %v1549 = vpop.f32.mrf.mxu0
  %v1550 = vadd.f32 0.0, %v1549
  %v1551 = vpop.f32.mrf.mxu0
  %v1552 = vpop.f32.mrf.mxu0
  %v1553 = vadd.f32 0.0, %v1552
  %v1554 = vpop.f32.mrf.mxu0
  %1555 = vdwg.mxu0
  %v1572 = vunpack.c.l.b16 %v1299
  %v1573 = vunpack.c.l.b16 %v1300
  %v1574 = vunpack.c.l.b16 %v1301
  %v1575 = vunpack.c.l.b16 %v1302
  %v1576 = vunpack.c.l.b16 %v1303
  %v1577 = vunpack.c.l.b16 %v1304
  %v1578 = vunpack.c.l.b16 %v1305
  %v1579 = vunpack.c.l.b16 %v1306
  %v1580 = vunpack.c.l.b16 %v1307
  %v1581 = vunpack.c.l.b16 %v1308
  %v1582 = vunpack.c.l.b16 %v1309
  %v1583 = vunpack.c.l.b16 %v1310
  %v1584 = vunpack.c.l.b16 %v1311
  %v1585 = vunpack.c.l.b16 %v1312
  %v1586 = vunpack.c.l.b16 %v1313
  %v1587 = vunpack.c.l.b16 %v1314
  %v1588 = vpack.c.b16 %v1573, %v1572
  %v1589 = vpack.c.b16 %v1575, %v1574
  %v1590 = vpack.c.b16 %v1577, %v1576
  %v1591 = vpack.c.b16 %v1579, %v1578
  %v1592 = vpack.c.b16 %v1581, %v1580
  %v1593 = vpack.c.b16 %v1583, %v1582
  %v1594 = vpack.c.b16 %v1585, %v1584
  %v1595 = vpack.c.b16 %v1587, %v1586
  %1604 = vmatprep.subr.bf16.mxu0 0
  %1605 = vmatpush1.bf16.msra.mxu0 %v1595
  %1606 = vmatprep.subr.bf16.mxu0 0
  %1607 = vmatpush1.bf16.msra.mxu0 %v1594
  %1608 = vmatprep.subr.bf16.mxu0 0
  %1609 = vmatpush1.bf16.msra.mxu0 %v1593
  %1610 = vmatprep.subr.bf16.mxu0 0
  %1611 = vmatpush1.bf16.msra.mxu0 %v1592
  %1612 = vmatprep.subr.bf16.mxu0 0
  %1613 = vmatpush1.bf16.msra.mxu0 %v1591
  %1614 = vmatprep.subr.bf16.mxu0 0
  %1615 = vmatpush1.bf16.msra.mxu0 %v1590
  %1616 = vmatprep.subr.bf16.mxu0 0
  %1617 = vmatpush1.bf16.msra.mxu0 %v1589
  %1618 = vmatprep.subr.bf16.mxu0 0
  %1619 = vmatpush1.bf16.msra.mxu0 %v1588
  %1620 = vmatprep.subr.bf16.mxu0 0
  %1621 = vmatpush2.bf16.msra.mxu0 0
  %1622 = vmatprep.subr.bf16.mxu0 0
  %1623 = vmatpush2.bf16.msra.mxu0 0
  %1624 = vmatprep.subr.bf16.mxu0 0
  %1625 = vmatpush2.bf16.msra.mxu0 0
  %1626 = vmatprep.subr.bf16.mxu0 0
  %1627 = vmatpush2.bf16.msra.mxu0 0
  %1628 = vmatprep.subr.bf16.mxu0 0
  %1629 = vmatpush2.bf16.msra.mxu0 0
  %1630 = vmatprep.subr.bf16.mxu0 0
  %1631 = vmatpush2.bf16.msra.mxu0 0
  %1632 = vmatprep.subr.bf16.mxu0 0
  %1633 = vmatpush2.bf16.msra.mxu0 0
  %1634 = vmatprep.subr.bf16.mxu0 0
  %1635 = vmatpush2.bf16.msra.mxu0 0
  %1636 = vmatprep.mubr.bf16.mxu0 0
  %1637 = vmatmul.mubr.bf16.gmra.mxu0 %v1283
  %v1638 = vpop.f32.mrf.mxu0
  %v1639 = vadd.f32 %v1430, %v1638
  %v1640 = vpop.f32.mrf.mxu0
  %v1641 = vpop.f32.mrf.mxu0
  %v1642 = vadd.f32 %v1433, %v1641
  %v1643 = vpop.f32.mrf.mxu0
  %1644 = vmatprep.mubr.bf16.mxu0 0
  %1645 = vmatmul.mubr.bf16.gmra.mxu0 %v1284
  %v1646 = vpop.f32.mrf.mxu0
  %v1647 = vadd.f32 %v1438, %v1646
  %v1648 = vpop.f32.mrf.mxu0
  %v1649 = vpop.f32.mrf.mxu0
  %v1650 = vadd.f32 %v1441, %v1649
  %v1651 = vpop.f32.mrf.mxu0
  %1652 = vmatprep.mubr.bf16.mxu0 0
  %1653 = vmatmul.mubr.bf16.gmra.mxu0 %v1285
  %v1654 = vpop.f32.mrf.mxu0
  %v1655 = vadd.f32 %v1446, %v1654
  %v1656 = vpop.f32.mrf.mxu0
  %v1657 = vpop.f32.mrf.mxu0
  %v1658 = vadd.f32 %v1449, %v1657
  %v1659 = vpop.f32.mrf.mxu0
  %1660 = vmatprep.mubr.bf16.mxu0 0
  %1661 = vmatmul.mubr.bf16.gmra.mxu0 %v1286
  %v1662 = vpop.f32.mrf.mxu0
  %v1663 = vadd.f32 %v1454, %v1662
  %v1664 = vpop.f32.mrf.mxu0
  %v1665 = vpop.f32.mrf.mxu0
  %v1666 = vadd.f32 %v1457, %v1665
  %v1667 = vpop.f32.mrf.mxu0
  %1668 = vmatprep.mubr.bf16.mxu0 0
  %1669 = vmatmul.mubr.bf16.gmra.mxu0 %v1287
  %v1670 = vpop.f32.mrf.mxu0
  %v1671 = vadd.f32 %v1462, %v1670
  %v1672 = vpop.f32.mrf.mxu0
  %v1673 = vpop.f32.mrf.mxu0
  %v1674 = vadd.f32 %v1465, %v1673
  %v1675 = vpop.f32.mrf.mxu0
  %1676 = vmatprep.mubr.bf16.mxu0 0
  %1677 = vmatmul.mubr.bf16.gmra.mxu0 %v1288
  %v1678 = vpop.f32.mrf.mxu0
  %v1679 = vadd.f32 %v1470, %v1678
  %v1680 = vpop.f32.mrf.mxu0
  %v1681 = vpop.f32.mrf.mxu0
  %v1682 = vadd.f32 %v1473, %v1681
  %v1683 = vpop.f32.mrf.mxu0
  %1684 = vmatprep.mubr.bf16.mxu0 0
  %1685 = vmatmul.mubr.bf16.gmra.mxu0 %v1289
  %v1686 = vpop.f32.mrf.mxu0
  %v1687 = vadd.f32 %v1478, %v1686
  %v1688 = vpop.f32.mrf.mxu0
  %v1689 = vpop.f32.mrf.mxu0
  %v1690 = vadd.f32 %v1481, %v1689
  %v1691 = vpop.f32.mrf.mxu0
  %1692 = vmatprep.mubr.bf16.mxu0 0
  %1693 = vmatmul.mubr.bf16.gmra.mxu0 %v1290
  %v1694 = vpop.f32.mrf.mxu0
  %v1695 = vadd.f32 %v1486, %v1694
  %v1696 = vpop.f32.mrf.mxu0
  %v1697 = vpop.f32.mrf.mxu0
  %v1698 = vadd.f32 %v1489, %v1697
  %v1699 = vpop.f32.mrf.mxu0
  %1700 = vmatprep.mubr.bf16.mxu0 0
  %1701 = vmatmul.mubr.bf16.gmra.mxu0 %v1291
  %v1702 = vpop.f32.mrf.mxu0
  %v1703 = vadd.f32 %v1494, %v1702
  %v1704 = vpop.f32.mrf.mxu0
  %v1705 = vpop.f32.mrf.mxu0
  %v1706 = vadd.f32 %v1497, %v1705
  %v1707 = vpop.f32.mrf.mxu0
  %1708 = vmatprep.mubr.bf16.mxu0 0
  %1709 = vmatmul.mubr.bf16.gmra.mxu0 %v1292
  %v1710 = vpop.f32.mrf.mxu0
  %v1711 = vadd.f32 %v1502, %v1710
  %v1712 = vpop.f32.mrf.mxu0
  %v1713 = vpop.f32.mrf.mxu0
  %v1714 = vadd.f32 %v1505, %v1713
  %v1715 = vpop.f32.mrf.mxu0
  %1716 = vmatprep.mubr.bf16.mxu0 0
  %1717 = vmatmul.mubr.bf16.gmra.mxu0 %v1293
  %v1718 = vpop.f32.mrf.mxu0
  %v1719 = vadd.f32 %v1510, %v1718
  %v1720 = vpop.f32.mrf.mxu0
  %v1721 = vpop.f32.mrf.mxu0
  %v1722 = vadd.f32 %v1513, %v1721
  %v1723 = vpop.f32.mrf.mxu0
  %1724 = vmatprep.mubr.bf16.mxu0 0
  %1725 = vmatmul.mubr.bf16.gmra.mxu0 %v1294
  %v1726 = vpop.f32.mrf.mxu0
  %v1727 = vadd.f32 %v1518, %v1726
  %v1728 = vpop.f32.mrf.mxu0
  %v1729 = vpop.f32.mrf.mxu0
  %v1730 = vadd.f32 %v1521, %v1729
  %v1731 = vpop.f32.mrf.mxu0
  %1732 = vmatprep.mubr.bf16.mxu0 0
  %1733 = vmatmul.mubr.bf16.gmra.mxu0 %v1295
  %v1734 = vpop.f32.mrf.mxu0
  %v1735 = vadd.f32 %v1526, %v1734
  %v1736 = vpop.f32.mrf.mxu0
  %v1737 = vpop.f32.mrf.mxu0
  %v1738 = vadd.f32 %v1529, %v1737
  %v1739 = vpop.f32.mrf.mxu0
  %1740 = vmatprep.mubr.bf16.mxu0 0
  %1741 = vmatmul.mubr.bf16.gmra.mxu0 %v1296
  %v1742 = vpop.f32.mrf.mxu0
  %v1743 = vadd.f32 %v1534, %v1742
  %v1744 = vpop.f32.mrf.mxu0
  %v1745 = vpop.f32.mrf.mxu0
  %v1746 = vadd.f32 %v1537, %v1745
  %v1747 = vpop.f32.mrf.mxu0
  %1748 = vmatprep.mubr.bf16.mxu0 0
  %1749 = vmatmul.mubr.bf16.gmra.mxu0 %v1297
  %v1750 = vpop.f32.mrf.mxu0
  %v1751 = vadd.f32 %v1542, %v1750
  %v1752 = vpop.f32.mrf.mxu0
  %v1753 = vpop.f32.mrf.mxu0
  %v1754 = vadd.f32 %v1545, %v1753
  %v1755 = vpop.f32.mrf.mxu0
  %1756 = vmatprep.mubr.bf16.mxu0 0
  %1757 = vmatmul.mubr.bf16.gmra.mxu0 %v1298
  %v1758 = vpop.f32.mrf.mxu0
  %v1759 = vadd.f32 %v1550, %v1758
  %v1760 = vpop.f32.mrf.mxu0
  %v1761 = vpop.f32.mrf.mxu0
  %v1762 = vadd.f32 %v1553, %v1761
  %v1763 = vpop.f32.mrf.mxu0
  %1764 = vdwg.mxu0
  %v1765 = vld [vmem:[%s5] sm:$0xf]
  %v1766 = vld [vmem:[%s5 + $0x4] sm:$0xf]
  %v1767 = vld [vmem:[%s5 + $0x8] sm:$0xf]
  %v1768 = vld [vmem:[%s5 + $0xc] sm:$0xf]
  %v1769 = vld [vmem:[%s5 + $0x10] sm:$0xf]
  %v1770 = vld [vmem:[%s5 + $0x14] sm:$0xf]
  %v1771 = vld [vmem:[%s5 + $0x18] sm:$0xf]
  %v1772 = vld [vmem:[%s5 + $0x1c] sm:$0xf]
  %v1773 = vld [vmem:[%s5 + $0x20] sm:$0xf]
  %v1774 = vld [vmem:[%s5 + $0x24] sm:$0xf]
  %v1775 = vld [vmem:[%s5 + $0x28] sm:$0xf]
  %v1776 = vld [vmem:[%s5 + $0x2c] sm:$0xf]
  %v1777 = vld [vmem:[%s5 + $0x30] sm:$0xf]
  %v1778 = vld [vmem:[%s5 + $0x34] sm:$0xf]
  %v1779 = vld [vmem:[%s5 + $0x38] sm:$0xf]
  %v1780 = vld [vmem:[%s5 + $0x3c] sm:$0xf]
  %v1813 = vunpack.c.l.b16 %v1251
  %v1814 = vunpack.c.l.b16 %v1252
  %v1815 = vunpack.c.l.b16 %v1253
  %v1816 = vunpack.c.l.b16 %v1254
  %v1817 = vunpack.c.l.b16 %v1255
  %v1818 = vunpack.c.l.b16 %v1256
  %v1819 = vunpack.c.l.b16 %v1257
  %v1820 = vunpack.c.l.b16 %v1258
  %v1821 = vunpack.c.l.b16 %v1259
  %v1822 = vunpack.c.l.b16 %v1260
  %v1823 = vunpack.c.l.b16 %v1261
  %v1824 = vunpack.c.l.b16 %v1262
  %v1825 = vunpack.c.l.b16 %v1263
  %v1826 = vunpack.c.l.b16 %v1264
  %v1827 = vunpack.c.l.b16 %v1265
  %v1828 = vunpack.c.l.b16 %v1266
  %v1829 = vunpack.c.l.b16 %v1267
  %v1830 = vunpack.c.l.b16 %v1268
  %v1831 = vunpack.c.l.b16 %v1269
  %v1832 = vunpack.c.l.b16 %v1270
  %v1833 = vunpack.c.l.b16 %v1271
  %v1834 = vunpack.c.l.b16 %v1272
  %v1835 = vunpack.c.l.b16 %v1273
  %v1836 = vunpack.c.l.b16 %v1274
  %v1837 = vunpack.c.l.b16 %v1275
  %v1838 = vunpack.c.l.b16 %v1276
  %v1839 = vunpack.c.l.b16 %v1277
  %v1840 = vunpack.c.l.b16 %v1278
  %v1841 = vunpack.c.l.b16 %v1279
  %v1842 = vunpack.c.l.b16 %v1280
  %v1843 = vunpack.c.l.b16 %v1281
  %v1844 = vunpack.c.l.b16 %v1282
  %v1845 = vpack.c.b16 %v1814, %v1813
  %v1846 = vpack.c.b16 %v1816, %v1815
  %v1847 = vpack.c.b16 %v1818, %v1817
  %v1848 = vpack.c.b16 %v1820, %v1819
  %v1849 = vpack.c.b16 %v1822, %v1821
  %v1850 = vpack.c.b16 %v1824, %v1823
  %v1851 = vpack.c.b16 %v1826, %v1825
  %v1852 = vpack.c.b16 %v1828, %v1827
  %v1853 = vpack.c.b16 %v1830, %v1829
  %v1854 = vpack.c.b16 %v1832, %v1831
  %v1855 = vpack.c.b16 %v1834, %v1833
  %v1856 = vpack.c.b16 %v1836, %v1835
  %v1857 = vpack.c.b16 %v1838, %v1837
  %v1858 = vpack.c.b16 %v1840, %v1839
  %v1859 = vpack.c.b16 %v1842, %v1841
  %v1860 = vpack.c.b16 %v1844, %v1843
  %v1893 = vunpack.c.l.b16 %v1765
  %v1894 = vunpack.c.l.b16 %v1766
  %v1895 = vunpack.c.l.b16 %v1767
  %v1896 = vunpack.c.l.b16 %v1768
  %v1897 = vunpack.c.l.b16 %v1769
  %v1898 = vunpack.c.l.b16 %v1770
  %v1899 = vunpack.c.l.b16 %v1771
  %v1900 = vunpack.c.l.b16 %v1772
  %v1901 = vunpack.c.l.b16 %v1773
  %v1902 = vunpack.c.l.b16 %v1774
  %v1903 = vunpack.c.l.b16 %v1775
  %v1904 = vunpack.c.l.b16 %v1776
  %v1905 = vunpack.c.l.b16 %v1777
  %v1906 = vunpack.c.l.b16 %v1778
  %v1907 = vunpack.c.l.b16 %v1779
  %v1908 = vunpack.c.l.b16 %v1780
  %v1909 = vpack.c.b16 %v1894, %v1893
  %v1910 = vpack.c.b16 %v1896, %v1895
  %v1911 = vpack.c.b16 %v1898, %v1897
  %v1912 = vpack.c.b16 %v1900, %v1899
  %v1913 = vpack.c.b16 %v1902, %v1901
  %v1914 = vpack.c.b16 %v1904, %v1903
  %v1915 = vpack.c.b16 %v1906, %v1905
  %v1916 = vpack.c.b16 %v1908, %v1907
  %1925 = vmatprep.subr.bf16.mxu0 0
  %1926 = vmatpush1.bf16.msra.mxu0 %v1916
  %1927 = vmatprep.subr.bf16.mxu0 0
  %1928 = vmatpush1.bf16.msra.mxu0 %v1915
  %1929 = vmatprep.subr.bf16.mxu0 0
  %1930 = vmatpush1.bf16.msra.mxu0 %v1914
  %1931 = vmatprep.subr.bf16.mxu0 0
  %1932 = vmatpush1.bf16.msra.mxu0 %v1913
  %1933 = vmatprep.subr.bf16.mxu0 0
  %1934 = vmatpush1.bf16.msra.mxu0 %v1912
  %1935 = vmatprep.subr.bf16.mxu0 0
  %1936 = vmatpush1.bf16.msra.mxu0 %v1911
  %1937 = vmatprep.subr.bf16.mxu0 0
  %1938 = vmatpush1.bf16.msra.mxu0 %v1910
  %1939 = vmatprep.subr.bf16.mxu0 0
  %1940 = vmatpush1.bf16.msra.mxu0 %v1909
  %1941 = vmatprep.subr.bf16.mxu0 0
  %1942 = vmatpush2.bf16.msra.mxu0 0
  %1943 = vmatprep.subr.bf16.mxu0 0
  %1944 = vmatpush2.bf16.msra.mxu0 0
  %1945 = vmatprep.subr.bf16.mxu0 0
  %1946 = vmatpush2.bf16.msra.mxu0 0
  %1947 = vmatprep.subr.bf16.mxu0 0
  %1948 = vmatpush2.bf16.msra.mxu0 0
  %1949 = vmatprep.subr.bf16.mxu0 0
  %1950 = vmatpush2.bf16.msra.mxu0 0
  %1951 = vmatprep.subr.bf16.mxu0 0
  %1952 = vmatpush2.bf16.msra.mxu0 0
  %1953 = vmatprep.subr.bf16.mxu0 0
  %1954 = vmatpush2.bf16.msra.mxu0 0
  %1955 = vmatprep.subr.bf16.mxu0 0
  %1956 = vmatpush2.bf16.msra.mxu0 0
  %1957 = vmatprep.mubr.bf16.mxu0 0
  %1958 = vmatmul.mubr.bf16.gmra.mxu0 %v1845
  %v1959 = vpop.f32.mrf.mxu0
  %v1960 = vadd.f32 0.0, %v1959
  %v1961 = vpop.f32.mrf.mxu0
  %v1962 = vpop.f32.mrf.mxu0
  %v1963 = vadd.f32 0.0, %v1962
  %v1964 = vpop.f32.mrf.mxu0
  %1965 = vmatprep.mubr.bf16.mxu0 0
  %1966 = vmatmul.mubr.bf16.gmra.mxu0 %v1846
  %v1967 = vpop.f32.mrf.mxu0
  %v1968 = vadd.f32 0.0, %v1967
  %v1969 = vpop.f32.mrf.mxu0
  %v1970 = vpop.f32.mrf.mxu0
  %v1971 = vadd.f32 0.0, %v1970
  %v1972 = vpop.f32.mrf.mxu0
  %1973 = vmatprep.mubr.bf16.mxu0 0
  %1974 = vmatmul.mubr.bf16.gmra.mxu0 %v1847
  %v1975 = vpop.f32.mrf.mxu0
  %v1976 = vadd.f32 0.0, %v1975
  %v1977 = vpop.f32.mrf.mxu0
  %v1978 = vpop.f32.mrf.mxu0
  %v1979 = vadd.f32 0.0, %v1978
  %v1980 = vpop.f32.mrf.mxu0
  %1981 = vmatprep.mubr.bf16.mxu0 0
  %1982 = vmatmul.mubr.bf16.gmra.mxu0 %v1848
  %v1983 = vpop.f32.mrf.mxu0
  %v1984 = vadd.f32 0.0, %v1983
  %v1985 = vpop.f32.mrf.mxu0
  %v1986 = vpop.f32.mrf.mxu0
  %v1987 = vadd.f32 0.0, %v1986
  %v1988 = vpop.f32.mrf.mxu0
  %1989 = vmatprep.mubr.bf16.mxu0 0
  %1990 = vmatmul.mubr.bf16.gmra.mxu0 %v1849
  %v1991 = vpop.f32.mrf.mxu0
  %v1992 = vadd.f32 0.0, %v1991
  %v1993 = vpop.f32.mrf.mxu0
  %v1994 = vpop.f32.mrf.mxu0
  %v1995 = vadd.f32 0.0, %v1994
  %v1996 = vpop.f32.mrf.mxu0
  %1997 = vmatprep.mubr.bf16.mxu0 0
  %1998 = vmatmul.mubr.bf16.gmra.mxu0 %v1850
  %v1999 = vpop.f32.mrf.mxu0
  %v2000 = vadd.f32 0.0, %v1999
  %v2001 = vpop.f32.mrf.mxu0
  %v2002 = vpop.f32.mrf.mxu0
  %v2003 = vadd.f32 0.0, %v2002
  %v2004 = vpop.f32.mrf.mxu0
  %2005 = vmatprep.mubr.bf16.mxu0 0
  %2006 = vmatmul.mubr.bf16.gmra.mxu0 %v1851
  %v2007 = vpop.f32.mrf.mxu0
  %v2008 = vadd.f32 0.0, %v2007
  %v2009 = vpop.f32.mrf.mxu0
  %v2010 = vpop.f32.mrf.mxu0
  %v2011 = vadd.f32 0.0, %v2010
  %v2012 = vpop.f32.mrf.mxu0
  %2013 = vmatprep.mubr.bf16.mxu0 0
  %2014 = vmatmul.mubr.bf16.gmra.mxu0 %v1852
  %v2015 = vpop.f32.mrf.mxu0
  %v2016 = vadd.f32 0.0, %v2015
  %v2017 = vpop.f32.mrf.mxu0
  %v2018 = vpop.f32.mrf.mxu0
  %v2019 = vadd.f32 0.0, %v2018
  %v2020 = vpop.f32.mrf.mxu0
  %2021 = vmatprep.mubr.bf16.mxu0 0
  %2022 = vmatmul.mubr.bf16.gmra.mxu0 %v1853
  %v2023 = vpop.f32.mrf.mxu0
  %v2024 = vadd.f32 0.0, %v2023
  %v2025 = vpop.f32.mrf.mxu0
  %v2026 = vpop.f32.mrf.mxu0
  %v2027 = vadd.f32 0.0, %v2026
  %v2028 = vpop.f32.mrf.mxu0
  %2029 = vmatprep.mubr.bf16.mxu0 0
  %2030 = vmatmul.mubr.bf16.gmra.mxu0 %v1854
  %v2031 = vpop.f32.mrf.mxu0
  %v2032 = vadd.f32 0.0, %v2031
  %v2033 = vpop.f32.mrf.mxu0
  %v2034 = vpop.f32.mrf.mxu0
  %v2035 = vadd.f32 0.0, %v2034
  %v2036 = vpop.f32.mrf.mxu0
  %2037 = vmatprep.mubr.bf16.mxu0 0
  %2038 = vmatmul.mubr.bf16.gmra.mxu0 %v1855
  %v2039 = vpop.f32.mrf.mxu0
  %v2040 = vadd.f32 0.0, %v2039
  %v2041 = vpop.f32.mrf.mxu0
  %v2042 = vpop.f32.mrf.mxu0
  %v2043 = vadd.f32 0.0, %v2042
  %v2044 = vpop.f32.mrf.mxu0
  %2045 = vmatprep.mubr.bf16.mxu0 0
  %2046 = vmatmul.mubr.bf16.gmra.mxu0 %v1856
  %v2047 = vpop.f32.mrf.mxu0
  %v2048 = vadd.f32 0.0, %v2047
  %v2049 = vpop.f32.mrf.mxu0
  %v2050 = vpop.f32.mrf.mxu0
  %v2051 = vadd.f32 0.0, %v2050
  %v2052 = vpop.f32.mrf.mxu0
  %2053 = vmatprep.mubr.bf16.mxu0 0
  %2054 = vmatmul.mubr.bf16.gmra.mxu0 %v1857
  %v2055 = vpop.f32.mrf.mxu0
  %v2056 = vadd.f32 0.0, %v2055
  %v2057 = vpop.f32.mrf.mxu0
  %v2058 = vpop.f32.mrf.mxu0
  %v2059 = vadd.f32 0.0, %v2058
  %v2060 = vpop.f32.mrf.mxu0
  %2061 = vmatprep.mubr.bf16.mxu0 0
  %2062 = vmatmul.mubr.bf16.gmra.mxu0 %v1858
  %v2063 = vpop.f32.mrf.mxu0
  %v2064 = vadd.f32 0.0, %v2063
  %v2065 = vpop.f32.mrf.mxu0
  %v2066 = vpop.f32.mrf.mxu0
  %v2067 = vadd.f32 0.0, %v2066
  %v2068 = vpop.f32.mrf.mxu0
  %2069 = vmatprep.mubr.bf16.mxu0 0
  %2070 = vmatmul.mubr.bf16.gmra.mxu0 %v1859
  %v2071 = vpop.f32.mrf.mxu0
  %v2072 = vadd.f32 0.0, %v2071
  %v2073 = vpop.f32.mrf.mxu0
  %v2074 = vpop.f32.mrf.mxu0
  %v2075 = vadd.f32 0.0, %v2074
  %v2076 = vpop.f32.mrf.mxu0
  %2077 = vmatprep.mubr.bf16.mxu0 0
  %2078 = vmatmul.mubr.bf16.gmra.mxu0 %v1860
  %v2079 = vpop.f32.mrf.mxu0
  %v2080 = vadd.f32 0.0, %v2079
  %v2081 = vpop.f32.mrf.mxu0
  %v2082 = vpop.f32.mrf.mxu0
  %v2083 = vadd.f32 0.0, %v2082
  %v2084 = vpop.f32.mrf.mxu0
  %2085 = vdwg.mxu0
  %v2086 = vadd.f32 %v1639, %v1960
  %v2087 = vadd.f32 %v1642, %v1963
  %v2088 = vadd.f32 %v1647, %v1968
  %v2089 = vadd.f32 %v1650, %v1971
  %v2090 = vadd.f32 %v1655, %v1976
  %v2091 = vadd.f32 %v1658, %v1979
  %v2092 = vadd.f32 %v1663, %v1984
  %v2093 = vadd.f32 %v1666, %v1987
  %v2094 = vadd.f32 %v1671, %v1992
  %v2095 = vadd.f32 %v1674, %v1995
  %v2096 = vadd.f32 %v1679, %v2000
  %v2097 = vadd.f32 %v1682, %v2003
  %v2098 = vadd.f32 %v1687, %v2008
  %v2099 = vadd.f32 %v1690, %v2011
  %v2100 = vadd.f32 %v1695, %v2016
  %v2101 = vadd.f32 %v1698, %v2019
  %v2102 = vadd.f32 %v1703, %v2024
  %v2103 = vadd.f32 %v1706, %v2027
  %v2104 = vadd.f32 %v1711, %v2032
  %v2105 = vadd.f32 %v1714, %v2035
  %v2106 = vadd.f32 %v1719, %v2040
  %v2107 = vadd.f32 %v1722, %v2043
  %v2108 = vadd.f32 %v1727, %v2048
  %v2109 = vadd.f32 %v1730, %v2051
  %v2110 = vadd.f32 %v1735, %v2056
  %v2111 = vadd.f32 %v1738, %v2059
  %v2112 = vadd.f32 %v1743, %v2064
  %v2113 = vadd.f32 %v1746, %v2067
  %v2114 = vadd.f32 %v1751, %v2072
  %v2115 = vadd.f32 %v1754, %v2075
  %v2116 = vadd.f32 %v1759, %v2080
  %v2117 = vadd.f32 %v1762, %v2083
  %v2118 = vld [vmem:[%s6] sm:$0x1]
  %v2120 = vlaneseq
  %v2121 = vshrl.u32 %v2120, 7
  %v2122 = vsub.s32 0, %v2121
  %v2123 = vrot.slane %v2118, %v2122
  %v2125 = vadd.f32 %v2086, %v2123
  %v2126 = vadd.f32 %v2087, %v2123
  %v2127 = vadd.f32 %v2088, %v2123
  %v2128 = vadd.f32 %v2089, %v2123
  %v2129 = vadd.f32 %v2090, %v2123
  %v2130 = vadd.f32 %v2091, %v2123
  %v2131 = vadd.f32 %v2092, %v2123
  %v2132 = vadd.f32 %v2093, %v2123
  %v2133 = vadd.f32 %v2094, %v2123
  %v2134 = vadd.f32 %v2095, %v2123
  %v2135 = vadd.f32 %v2096, %v2123
  %v2136 = vadd.f32 %v2097, %v2123
  %v2137 = vadd.f32 %v2098, %v2123
  %v2138 = vadd.f32 %v2099, %v2123
  %v2139 = vadd.f32 %v2100, %v2123
  %v2140 = vadd.f32 %v2101, %v2123
  %v2141 = vadd.f32 %v2102, %v2123
  %v2142 = vadd.f32 %v2103, %v2123
  %v2143 = vadd.f32 %v2104, %v2123
  %v2144 = vadd.f32 %v2105, %v2123
  %v2145 = vadd.f32 %v2106, %v2123
  %v2146 = vadd.f32 %v2107, %v2123
  %v2147 = vadd.f32 %v2108, %v2123
  %v2148 = vadd.f32 %v2109, %v2123
  %v2149 = vadd.f32 %v2110, %v2123
  %v2150 = vadd.f32 %v2111, %v2123
  %v2151 = vadd.f32 %v2112, %v2123
  %v2152 = vadd.f32 %v2113, %v2123
  %v2153 = vadd.f32 %v2114, %v2123
  %v2154 = vadd.f32 %v2115, %v2123
  %v2155 = vadd.f32 %v2116, %v2123
  %v2156 = vadd.f32 %v2117, %v2123
  %v2157 = vpack.c.bf16 %v2126, %v2125
  %v2158 = vpack.c.bf16 %v2128, %v2127
  %v2159 = vpack.c.bf16 %v2130, %v2129
  %v2160 = vpack.c.bf16 %v2132, %v2131
  %v2161 = vpack.c.bf16 %v2134, %v2133
  %v2162 = vpack.c.bf16 %v2136, %v2135
  %v2163 = vpack.c.bf16 %v2138, %v2137
  %v2164 = vpack.c.bf16 %v2140, %v2139
  %v2165 = vpack.c.bf16 %v2142, %v2141
  %v2166 = vpack.c.bf16 %v2144, %v2143
  %v2167 = vpack.c.bf16 %v2146, %v2145
  %v2168 = vpack.c.bf16 %v2148, %v2147
  %v2169 = vpack.c.bf16 %v2150, %v2149
  %v2170 = vpack.c.bf16 %v2152, %v2151
  %v2171 = vpack.c.bf16 %v2154, %v2153
  %v2172 = vpack.c.bf16 %v2156, %v2155
  %v2189 = vunpack.c.l.b16 %v2157
  %v2190 = vunpack.c.h.b16 %v2157
  %v2191 = vunpack.c.l.b16 %v2158
  %v2192 = vunpack.c.h.b16 %v2158
  %v2193 = vunpack.c.l.b16 %v2159
  %v2194 = vunpack.c.h.b16 %v2159
  %v2195 = vunpack.c.l.b16 %v2160
  %v2196 = vunpack.c.h.b16 %v2160
  %v2197 = vunpack.c.l.b16 %v2161
  %v2198 = vunpack.c.h.b16 %v2161
  %v2199 = vunpack.c.l.b16 %v2162
  %v2200 = vunpack.c.h.b16 %v2162
  %v2201 = vunpack.c.l.b16 %v2163
  %v2202 = vunpack.c.h.b16 %v2163
  %v2203 = vunpack.c.l.b16 %v2164
  %v2204 = vunpack.c.h.b16 %v2164
  %v2205 = vunpack.c.l.b16 %v2165
  %v2206 = vunpack.c.h.b16 %v2165
  %v2207 = vunpack.c.l.b16 %v2166
  %v2208 = vunpack.c.h.b16 %v2166
  %v2209 = vunpack.c.l.b16 %v2167
  %v2210 = vunpack.c.h.b16 %v2167
  %v2211 = vunpack.c.l.b16 %v2168
  %v2212 = vunpack.c.h.b16 %v2168
  %v2213 = vunpack.c.l.b16 %v2169
  %v2214 = vunpack.c.h.b16 %v2169
  %v2215 = vunpack.c.l.b16 %v2170
  %v2216 = vunpack.c.h.b16 %v2170
  %v2217 = vunpack.c.l.b16 %v2171
  %v2218 = vunpack.c.h.b16 %v2171
  %v2219 = vunpack.c.l.b16 %v2172
  %v2220 = vunpack.c.h.b16 %v2172
  %v2221 = vpack.c.b16 %v2189, %v2189
  %v2222 = vpack.c.b16 %v2190, %v2190
  %v2223 = vpack.c.b16 %v2191, %v2191
  %v2224 = vpack.c.b16 %v2192, %v2192
  %v2225 = vpack.c.b16 %v2193, %v2193
  %v2226 = vpack.c.b16 %v2194, %v2194
  %v2227 = vpack.c.b16 %v2195, %v2195
  %v2228 = vpack.c.b16 %v2196, %v2196
  %v2229 = vpack.c.b16 %v2197, %v2197
  %v2230 = vpack.c.b16 %v2198, %v2198
  %v2231 = vpack.c.b16 %v2199, %v2199
  %v2232 = vpack.c.b16 %v2200, %v2200
  %v2233 = vpack.c.b16 %v2201, %v2201
  %v2234 = vpack.c.b16 %v2202, %v2202
  %v2235 = vpack.c.b16 %v2203, %v2203
  %v2236 = vpack.c.b16 %v2204, %v2204
  %v2237 = vpack.c.b16 %v2205, %v2205
  %v2238 = vpack.c.b16 %v2206, %v2206
  %v2239 = vpack.c.b16 %v2207, %v2207
  %v2240 = vpack.c.b16 %v2208, %v2208
  %v2241 = vpack.c.b16 %v2209, %v2209
  %v2242 = vpack.c.b16 %v2210, %v2210
  %v2243 = vpack.c.b16 %v2211, %v2211
  %v2244 = vpack.c.b16 %v2212, %v2212
  %v2245 = vpack.c.b16 %v2213, %v2213
  %v2246 = vpack.c.b16 %v2214, %v2214
  %v2247 = vpack.c.b16 %v2215, %v2215
  %v2248 = vpack.c.b16 %v2216, %v2216
  %v2249 = vpack.c.b16 %v2217, %v2217
  %v2250 = vpack.c.b16 %v2218, %v2218
  %v2251 = vpack.c.b16 %v2219, %v2219
  %v2252 = vpack.c.b16 %v2220, %v2220
  %2285 = vst [vmem:[%s7] sm:$0xf] %v2221
  %2286 = vst [vmem:[%s7 + $0x4] sm:$0xf] %v2222
  %2287 = vst [vmem:[%s7 + $0x8] sm:$0xf] %v2223
  %2288 = vst [vmem:[%s7 + $0xc] sm:$0xf] %v2224
  %2289 = vst [vmem:[%s7 + $0x10] sm:$0xf] %v2225
  %2290 = vst [vmem:[%s7 + $0x14] sm:$0xf] %v2226
  %2291 = vst [vmem:[%s7 + $0x18] sm:$0xf] %v2227
  %2292 = vst [vmem:[%s7 + $0x1c] sm:$0xf] %v2228
  %2293 = vst [vmem:[%s7 + $0x20] sm:$0xf] %v2229
  %2294 = vst [vmem:[%s7 + $0x24] sm:$0xf] %v2230
  %2295 = vst [vmem:[%s7 + $0x28] sm:$0xf] %v2231
  %2296 = vst [vmem:[%s7 + $0x2c] sm:$0xf] %v2232
  %2297 = vst [vmem:[%s7 + $0x30] sm:$0xf] %v2233
  %2298 = vst [vmem:[%s7 + $0x34] sm:$0xf] %v2234
  %2299 = vst [vmem:[%s7 + $0x38] sm:$0xf] %v2235
  %2300 = vst [vmem:[%s7 + $0x3c] sm:$0xf] %v2236
  %2301 = vst [vmem:[%s7 + $0x40] sm:$0xf] %v2237
  %2302 = vst [vmem:[%s7 + $0x44] sm:$0xf] %v2238
  %2303 = vst [vmem:[%s7 + $0x48] sm:$0xf] %v2239
  %2304 = vst [vmem:[%s7 + $0x4c] sm:$0xf] %v2240
  %2305 = vst [vmem:[%s7 + $0x50] sm:$0xf] %v2241
  %2306 = vst [vmem:[%s7 + $0x54] sm:$0xf] %v2242
  %2307 = vst [vmem:[%s7 + $0x58] sm:$0xf] %v2243
  %2308 = vst [vmem:[%s7 + $0x5c] sm:$0xf] %v2244
  %2309 = vst [vmem:[%s7 + $0x60] sm:$0xf] %v2245
  %2310 = vst [vmem:[%s7 + $0x64] sm:$0xf] %v2246
  %2311 = vst [vmem:[%s7 + $0x68] sm:$0xf] %v2247
  %2312 = vst [vmem:[%s7 + $0x6c] sm:$0xf] %v2248
  %2313 = vst [vmem:[%s7 + $0x70] sm:$0xf] %v2249
  %2314 = vst [vmem:[%s7 + $0x74] sm:$0xf] %v2250
  %2315 = vst [vmem:[%s7 + $0x78] sm:$0xf] %v2251
  %2316 = vst [vmem:[%s7 + $0x7c] sm:$0xf] %v2252
  // Predicated region
  $region30: #{botrgcn_fmoe_double_forward.7} parent=0 // pred_check
    _
  $region31: #{botrgcn_fmoe_double_forward.7} parent=0 // pred_check_branch
    %2318 = sbr.rel (0) target = $region33
  $region32: #{botrgcn_fmoe_double_forward.7} parent=0 // pred_region
    _
  $region33: #{botrgcn_fmoe_double_forward.7} parent=0 // pred_fallthru
    _
  // Predicated region
  $region34: #{botrgcn_fmoe_double_forward.7} parent=0 // pred_check
    _
  $region35: #{botrgcn_fmoe_double_forward.7} parent=0 // pred_check_branch
    %2320 = sbr.rel (0) target = $region37
  $region36: #{botrgcn_fmoe_double_forward.7} parent=0 // pred_region
    _
  $region37: #{botrgcn_fmoe_double_forward.7} parent=0 // pred_fallthru
    _

</llo_original>
